<compile_context>
chip_gen: v6e
topology: v6e:2x2x1
jax: 0.10.0
libtpu: 0.0.40
codegen_flags: <defaults>
</compile_context>

<pallas_src>
import functools

import jax
import jax.numpy as jnp
from jax.experimental import pallas as pl
from jax.experimental.pallas import tpu as pltpu

num_atom_type = 9
num_charge = 5
num_chirality_tag = 4
num_bond_direction = 4
num_bond_type = 5

_LN_EPS = 1e-5
_LEAKY_SLOPE = 0.01
_EDGE_FEAT_PAD = 16          # num_bond_type + num_bond_direction (=9) padded to 16


def _round_up(x, m):
    return ((x + m - 1) // m) * m


# ----------------------------------------------------------------------------
# Fused Pallas kernel
# ----------------------------------------------------------------------------
def _fused_gnn_kernel(num_layer, num_row_tiles, row_tile, npad, adj_resident,
                      adj_ref, h0_ref, ee_ref,
                      w1_ref, b1_ref, w2_ref, b2_ref, gm_ref, bt_ref,
                      pool_ref, wc1_ref, bc1_ref, wc2_ref, bc2_ref,
                      out_ref, h_scr, init_sem):
    l = pl.program_id(0)                     # layer index (outer, sequential)
    t = pl.program_id(1)                     # node-row tile index
    rslot = jax.lax.rem(l, 2)                # slot holding previous layer's h
    wslot = 1 - rslot                        # slot this layer writes

    # --- one-time init: DMA the (pre-padded, bf16) initial node embeddings ---
    @pl.when(jnp.logical_and(l == 0, t == 0))
    def _():
        cp = pltpu.make_async_copy(h0_ref, h_scr.at[0], init_sem)
        cp.start()
        cp.wait()

    # --- once per layer: stage this layer's edge embeddings into the trailing
    #     16 rows of the read slot so aggregation is a single K=npad+16 matmul
    @pl.when(t == 0)
    def _():
        rview = h_scr.at[rslot]
        rview[pl.ds(npad, _EDGE_FEAT_PAD), :] = ee_ref[0]

    # --- GIN aggregation for this row tile (bf16 MXU, f32 accumulate) --------
    row0 = pl.multiple_of(t * row_tile, row_tile)
    if adj_resident:
        a_tile = adj_ref[pl.ds(row0, row_tile), :]   # resident adj: slice rows
    else:
        a_tile = adj_ref[...]                        # streamed adj: tile is the block
    agg = jnp.dot(a_tile, h_scr[rslot], preferred_element_type=jnp.float32)

    # --- GIN MLP: Linear(D, 2D) -> ReLU -> Linear(2D, D)  (bf16 MXU, f32 acc) -
    z = jnp.dot(agg.astype(jnp.bfloat16), w1_ref[0],
                preferred_element_type=jnp.float32) + b1_ref[0]
    z = jnp.maximum(z, 0.0)
    z = jnp.dot(z.astype(jnp.bfloat16), w2_ref[0],
                preferred_element_type=jnp.float32) + b2_ref[0]

    # --- LayerNorm over the feature (lane) axis, eps=1e-5, affine (f32) ------
    mu = jnp.mean(z, axis=-1, keepdims=True)
    var = jnp.mean(jnp.square(z - mu), axis=-1, keepdims=True)
    zn = (z - mu) * jax.lax.rsqrt(var + _LN_EPS)
    zn = zn * gm_ref[0] + bt_ref[0]

    # ReLU on every layer except the last (dropout with p=0 is identity);
    # branch with pl.when so the untaken path is never computed.
    is_last = l == num_layer - 1
    dst = h_scr.at[wslot]

    @pl.when(is_last)
    def _():
        dst[pl.ds(row0, row_tile), :] = zn.astype(jnp.bfloat16)

    @pl.when(jnp.logical_not(is_last))
    def _():
        dst[pl.ds(row0, row_tile), :] = jnp.maximum(zn, 0.0).astype(jnp.bfloat16)

    # --- epilogue: global mean pool + contrast head (only once, at the end) --
    @pl.when(jnp.logical_and(is_last, t == num_row_tiles - 1))
    def _():
        fin_slot = num_layer % 2              # static parity of the final write
        h_fin = h_scr[fin_slot].astype(jnp.float32)
        # pool has zero weight on padded nodes and on the 16 edge-emb rows
        c = jnp.dot(pool_ref[...], h_fin, preferred_element_type=jnp.float32)
        zc = jnp.dot(c, wc1_ref[...],
                     preferred_element_type=jnp.float32) + bc1_ref[...]
        zc = jnp.where(zc >= 0, zc, _LEAKY_SLOPE * zc)
        out_ref[...] = jnp.dot(zc, wc2_ref[...],
                               preferred_element_type=jnp.float32) + bc2_ref[...]


def fused_pretrained_gnn(adj, h0, ee, w1, b1, w2, b2, gm, bt,
                         pool, wc1, bc1, wc2, bc2, *,
                         row_tile=256, adj_resident_max_bytes=12 * 2**20):
    num_layer = w1.shape[0]
    npad_e, emb = h0.shape                    # npad + _EDGE_FEAT_PAD
    npad = npad_e - _EDGE_FEAT_PAD
    hid = w1.shape[2]
    g = pool.shape[0]
    feat = wc1.shape[1]
    feat_half = wc2.shape[1]
    assert npad % row_tile == 0
    num_row_tiles = npad // row_tile

    adj_bytes = adj.size * adj.dtype.itemsize
    adj_resident = adj_bytes <= adj_resident_max_bytes

    kernel = functools.partial(_fused_gnn_kernel, num_layer, num_row_tiles,
                               row_tile, npad, adj_resident)

    if adj_resident:
        # constant block index -> fetched from HBM exactly once for all layers
        adj_spec = pl.BlockSpec((npad, npad_e), lambda l, t: (0, 0))
        adj_vmem = 2 * adj_bytes
    else:
        # stream row tiles; deeper buffering hides the per-layer re-fetch
        adj_spec = pl.BlockSpec((row_tile, npad_e), lambda l, t: (t, 0),
                                pipeline_mode=pl.Buffered(3))
        adj_vmem = 3 * row_tile * npad_e * adj.dtype.itemsize

    def _nbytes(a):
        return a.size * a.dtype.itemsize

    per_layer_bytes = ((ee[0].size + w1[0].size + w2[0].size) * 2
                       + (b1[0].size + b2[0].size + gm[0].size + bt[0].size) * 4)
    const_bytes = (_nbytes(pool) + _nbytes(wc1) + _nbytes(bc1)
                   + _nbytes(wc2) + _nbytes(bc2) + g * feat_half * 4)
    scratch_bytes = 2 * npad_e * emb * 2
    est = adj_vmem + 2 * (per_layer_bytes + const_bytes) + scratch_bytes
    # clamp: headroom above the estimate, but stay well under v7x's 64 MiB/TC
    vmem_limit = int(min(100 * 2**20, max(32 * 2**20, int(1.5 * est))))

    grid_spec = pltpu.PrefetchScalarGridSpec(
        num_scalar_prefetch=0,
        grid=(num_layer, num_row_tiles),
        in_specs=[
            adj_spec,                                                  # adj + ecnt cols (bf16)
            pl.BlockSpec(memory_space=pl.ANY),                         # h0 (bf16, stays in HBM)
            pl.BlockSpec((1, _EDGE_FEAT_PAD, emb), lambda l, t: (l, 0, 0)),  # ee (stacked)
            pl.BlockSpec((1, emb, hid), lambda l, t: (l, 0, 0)),       # w1
            pl.BlockSpec((1, 1, hid), lambda l, t: (l, 0, 0)),         # b1
            pl.BlockSpec((1, hid, emb), lambda l, t: (l, 0, 0)),       # w2
            pl.BlockSpec((1, 1, emb), lambda l, t: (l, 0, 0)),         # b2
            pl.BlockSpec((1, 1, emb), lambda l, t: (l, 0, 0)),         # gamma
            pl.BlockSpec((1, 1, emb), lambda l, t: (l, 0, 0)),         # beta
            pl.BlockSpec((g, npad_e), lambda l, t: (0, 0)),            # pool
            pl.BlockSpec((emb, feat), lambda l, t: (0, 0)),            # wc1
            pl.BlockSpec((1, feat), lambda l, t: (0, 0)),              # bc1
            pl.BlockSpec((feat, feat_half), lambda l, t: (0, 0)),      # wc2
            pl.BlockSpec((1, feat_half), lambda l, t: (0, 0)),         # bc2
        ],
        out_specs=pl.BlockSpec((g, feat_half), lambda l, t: (0, 0)),
        scratch_shapes=[pltpu.VMEM((2, npad_e, emb), jnp.bfloat16),
                        pltpu.SemaphoreType.DMA(())],
    )
    return pl.pallas_call(
        kernel,
        out_shape=jax.ShapeDtypeStruct((g, feat_half), jnp.float32),
        grid_spec=grid_spec,
        compiler_params=pltpu.CompilerParams(
            dimension_semantics=("arbitrary", "arbitrary"),
            vmem_limit_bytes=vmem_limit),
    )(adj, h0, ee, w1, b1, w2, b2, gm, bt, pool, wc1, bc1, wc2, bc2)


# ----------------------------------------------------------------------------
# Parameter initialization (deterministic, mirrors module __init__ shapes)
# ----------------------------------------------------------------------------
def _xavier_uniform(key, shape):
    limit = (6.0 / (shape[0] + shape[1])) ** 0.5
    return jax.random.uniform(key, shape, jnp.float32, -limit, limit)


def _linear(key, in_dim, out_dim):
    k_w, k_b = jax.random.split(key)
    bound = 1.0 / (in_dim ** 0.5)
    w = jax.random.uniform(k_w, (in_dim, out_dim), jnp.float32, -bound, bound)
    b = jax.random.uniform(k_b, (1, out_dim), jnp.float32, -bound, bound)
    return w, b


def init_params(key, num_layer, emb_dim, feat_dim):
    keys = jax.random.split(key, 8 + 6 * num_layer)
    ki = iter(keys)
    params = {
        "xe1": _xavier_uniform(next(ki), (num_atom_type + 1, emb_dim)),
        "xe2": _xavier_uniform(next(ki), (num_chirality_tag + 1, emb_dim)),
        "xe3": _xavier_uniform(next(ki), (num_charge + 1, emb_dim)),
        "layers": [],
    }
    for _ in range(num_layer):
        w1, b1 = _linear(next(ki), emb_dim, 2 * emb_dim)
        w2, b2 = _linear(next(ki), 2 * emb_dim, emb_dim)
        params["layers"].append({
            "ee1": _xavier_uniform(next(ki), (num_bond_type, emb_dim)),
            "ee2": _xavier_uniform(next(ki), (num_bond_direction, emb_dim)),
            "w1": w1, "b1": b1, "w2": w2, "b2": b2,
            "gamma": jnp.ones((1, emb_dim), jnp.float32),
            "beta": jnp.zeros((1, emb_dim), jnp.float32),
        })
    # contrast head: reset_parameters() zeros the weights, tiny-normal biases
    params["wc1"] = jnp.zeros((emb_dim, feat_dim), jnp.float32)
    params["bc1"] = 0.0004 * jax.random.normal(next(ki), (1, feat_dim), jnp.float32)
    params["wc2"] = jnp.zeros((feat_dim, feat_dim // 2), jnp.float32)
    params["bc2"] = 0.0004 * jax.random.normal(next(ki), (1, feat_dim // 2), jnp.float32)
    return params


# ----------------------------------------------------------------------------
# Forward pass (masked=False): h = GNN(...) ; c = contrast(global_mean_pool(h))
# ----------------------------------------------------------------------------
def pretrained_gnn_forward(params, x, edge_index, edge_attr, batch, num_graphs,
                           *, row_tile=256):
    n = x.shape[0]
    emb_dim = params["xe1"].shape[1]
    # pad node count so the MXU contraction dim is large/aligned and the row
    # tiling divides evenly; padded nodes are isolated (zero adjacency
    # columns, zero edge counts, zero pooling weight) so they never affect
    # real nodes.
    npad = _round_up(max(n, 128), max(row_tile, 128))
    npad_e = npad + _EDGE_FEAT_PAD

    # initial node embedding: emb1(x0) + emb2(x1) + emb3(x2)   (JAX glue gather)
    h0 = params["xe1"][x[:, 0]] + params["xe2"][x[:, 1]] + params["xe3"][x[:, 2]]
    # pre-pad to (npad+16, emb) and store bf16: it is copied straight into the
    # bf16 ping-pong scratch by the kernel (trailing 16 rows are overwritten
    # with layer-0 edge embeddings before first use).
    h0 = jnp.pad(h0, ((0, npad_e - n), (0, 0))).astype(jnp.bfloat16)

    # add self-loops (edge_attr = [num_bond_type - 1, 0]) for real nodes only
    loop = jnp.arange(n, dtype=edge_index.dtype)
    src = jnp.concatenate([edge_index[0], loop])
    dst = jnp.concatenate([edge_index[1], loop])
    self_attr = jnp.stack(
        [jnp.full((n,), num_bond_type - 1, edge_attr.dtype),
         jnp.zeros((n,), edge_attr.dtype)], axis=1)
    ea = jnp.concatenate([edge_attr, self_attr], axis=0)

    # dense adjacency with 16 extra columns of per-node bond-type/direction
    # counts, so the per-layer edge-embedding sum folds into the SAME matmul:
    #   agg = [A | ecnt] @ [h ; ee_l]        (K = npad + 16)
    adj = jnp.zeros((npad, npad_e), jnp.float32)
    adj = adj.at[dst, src].add(1.0)
    adj = adj.at[dst, npad + ea[:, 0]].add(1.0)
    adj = adj.at[dst, npad + num_bond_type + ea[:, 1]].add(1.0)
    adj = adj.astype(jnp.bfloat16)            # small integer counts: exact in bf16

    # stack per-layer parameters on a leading (L, ...) axis
    layers = params["layers"]
    ee = jnp.stack([
        jnp.concatenate(
            [lp["ee1"], lp["ee2"],
             jnp.zeros((_EDGE_FEAT_PAD - num_bond_type - num_bond_direction,
                        emb_dim), jnp.float32)], axis=0)
        for lp in layers]).astype(jnp.bfloat16)                   # (L, 16, D)
    w1 = jnp.stack([lp["w1"] for lp in layers]).astype(jnp.bfloat16)
    b1 = jnp.stack([lp["b1"] for lp in layers])
    w2 = jnp.stack([lp["w2"] for lp in layers]).astype(jnp.bfloat16)
    b2 = jnp.stack([lp["b2"] for lp in layers])
    gm = jnp.stack([lp["gamma"] for lp in layers])
    bt = jnp.stack([lp["beta"] for lp in layers])

    # global mean pool as a (num_graphs, npad+16) averaging matrix
    # (padded nodes and the 16 edge-embedding rows get weight 0)
    batch_p = jnp.concatenate([batch.astype(jnp.int32),
                               jnp.full((npad_e - n,), -1, jnp.int32)])
    onehot = (batch_p[None, :] ==
              jnp.arange(num_graphs, dtype=jnp.int32)[:, None]).astype(jnp.float32)
    pool = onehot / jnp.maximum(onehot.sum(axis=1, keepdims=True), 1.0)

    return fused_pretrained_gnn(adj, h0, ee, w1, b1, w2, b2, gm, bt,
                                pool, params["wc1"], params["bc1"],
                                params["wc2"], params["bc2"],
                                row_tile=row_tile)


# ----------------------------------------------------------------------------
if __name__ == "__main__":
    key = jax.random.PRNGKey(0)
    ks = iter(jax.random.split(key, 16))

    # small shapes consistent with the module
    N, E, G = 16, 24, 2          # nodes, edges, graphs
    num_layer, emb_dim, feat_dim = 3, 128, 256

    x = jnp.stack([
        jax.random.randint(next(ks), (N,), 0, num_atom_type + 1),
        jax.random.randint(next(ks), (N,), 0, num_chirality_tag + 1),
        jax.random.randint(next(ks), (N,), 0, num_charge + 1),
    ], axis=1)
    edge_index = jnp.stack([
        jax.random.randint(next(ks), (E,), 0, N),
        jax.random.randint(next(ks), (E,), 0, N),
    ], axis=0)
    edge_attr = jnp.stack([
        jax.random.randint(next(ks), (E,), 0, num_bond_type - 1),
        jax.random.randint(next(ks), (E,), 0, num_bond_direction - 1),
    ], axis=1)
    batch = jnp.concatenate([
        jnp.zeros((N // 2,), jnp.int32), jnp.ones((N - N // 2,), jnp.int32)])

    params = init_params(next(ks), num_layer, emb_dim, feat_dim)

    c = pretrained_gnn_forward(params, x, edge_index, edge_attr, batch, G,
                               row_tile=256)
    c = jax.block_until_ready(c)
    assert c.shape == (G, feat_dim // 2) and c.dtype == jnp.float32
    assert bool(jnp.all(jnp.isfinite(c)))
    print("KERNEL_OK")
</pallas_src>

<mosaic_0001>
module attributes {stable_mosaic.version = 11 : i64} {
  func.func @_fused_gnn_kernel(%arg0: i32, %arg1: i32, %arg2: memref<256x272xbf16, #tpu.memory_space<vmem>>, %arg3: memref<272x128xbf16, #tpu.memory_space<any>>, %arg4: memref<1x16x128xbf16, #tpu.memory_space<vmem>>, %arg5: memref<1x128x256xbf16, #tpu.memory_space<vmem>>, %arg6: memref<1x1x256xf32, #tpu.memory_space<vmem>>, %arg7: memref<1x256x128xbf16, #tpu.memory_space<vmem>>, %arg8: memref<1x1x128xf32, #tpu.memory_space<vmem>>, %arg9: memref<1x1x128xf32, #tpu.memory_space<vmem>>, %arg10: memref<1x1x128xf32, #tpu.memory_space<vmem>>, %arg11: memref<2x272xf32, #tpu.memory_space<vmem>>, %arg12: memref<128x256xf32, #tpu.memory_space<vmem>>, %arg13: memref<1x256xf32, #tpu.memory_space<vmem>>, %arg14: memref<256x128xf32, #tpu.memory_space<vmem>>, %arg15: memref<1x128xf32, #tpu.memory_space<vmem>>, %arg16: memref<2x128xf32, #tpu.memory_space<vmem>>, %arg17: memref<2x272x128xbf16, #tpu.memory_space<vmem>>, %arg18: memref<!tpu.dma_semaphore, #tpu.memory_space<semaphore_mem>>) attributes {dimension_semantics = [#tpu.dimension_semantics<arbitrary>, #tpu.dimension_semantics<arbitrary>], iteration_bounds = array<i64: 3, 1>, scalar_prefetch = 0 : i64, scratch_operands = 2 : i64, tpu.core_type = #tpu.core_type<tc>, window_params = [{pipeline_mode = #tpu.pipeline_mode<synchronous>, transform_indices = @transform_0, window_bounds = array<i64: 256, 272>}, {}, {transform_indices = @transform_2, window_bounds = array<i64: 1, 16, 128>}, {transform_indices = @transform_3, window_bounds = array<i64: 1, 128, 256>}, {transform_indices = @transform_4, window_bounds = array<i64: 1, 1, 256>}, {transform_indices = @transform_5, window_bounds = array<i64: 1, 256, 128>}, {transform_indices = @transform_6, window_bounds = array<i64: 1, 1, 128>}, {transform_indices = @transform_7, window_bounds = array<i64: 1, 1, 128>}, {transform_indices = @transform_8, window_bounds = array<i64: 1, 1, 128>}, {pipeline_mode = #tpu.pipeline_mode<synchronous>, transform_indices = @transform_9, window_bounds = array<i64: 2, 272>}, {pipeline_mode = #tpu.pipeline_mode<synchronous>, transform_indices = @transform_10, window_bounds = array<i64: 128, 256>}, {pipeline_mode = #tpu.pipeline_mode<synchronous>, transform_indices = @transform_11, window_bounds = array<i64: 1, 256>}, {pipeline_mode = #tpu.pipeline_mode<synchronous>, transform_indices = @transform_12, window_bounds = array<i64: 256, 128>}, {pipeline_mode = #tpu.pipeline_mode<synchronous>, transform_indices = @transform_13, window_bounds = array<i64: 1, 128>}, {pipeline_mode = #tpu.pipeline_mode<synchronous>, transform_indices = @transform_14, window_bounds = array<i64: 2, 128>}]} {
    %c2_i32 = arith.constant 2 : i32
    %0 = arith.remsi %arg0, %c2_i32 : i32
    %c1_i32 = arith.constant 1 : i32
    %1 = arith.subi %c1_i32, %0 : i32
    %c0_i32 = arith.constant 0 : i32
    %2 = arith.cmpi eq, %arg0, %c0_i32 : i32
    %c0_i32_0 = arith.constant 0 : i32
    %3 = arith.cmpi eq, %arg1, %c0_i32_0 : i32
    %4 = arith.andi %2, %3 : i1
    %5 = arith.extui %4 : i1 to i32
    %c0_i32_1 = arith.constant 0 : i32
    %6 = arith.cmpi ne, %5, %c0_i32_1 : i32
    scf.if %6 {
      %c0_i32_37 = arith.constant 0 : i32
      %c0_i32_38 = arith.constant 0 : i32
      %c0_i32_39 = arith.constant 0 : i32
      %72 = tpu.memref_slice %arg17[%c0_i32_37, %c0_i32_38, %c0_i32_39] : memref<2x272x128xbf16, #tpu.memory_space<vmem>> -> memref<1x272x128xbf16, #tpu.memory_space<vmem>>
      %73 = tpu.memref_squeeze %72 : memref<1x272x128xbf16, #tpu.memory_space<vmem>> -> memref<272x128xbf16, #tpu.memory_space<vmem>>
      tpu.enqueue_dma source(%arg3 : memref<272x128xbf16, #tpu.memory_space<any>>) target(%73 : memref<272x128xbf16, #tpu.memory_space<vmem>>) target_semaphore(%arg18 : memref<!tpu.dma_semaphore, #tpu.memory_space<semaphore_mem>>)
      %c0_i32_40 = arith.constant 0 : i32
      %c0_i32_41 = arith.constant 0 : i32
      %c0_i32_42 = arith.constant 0 : i32
      %74 = tpu.memref_slice %arg17[%c0_i32_40, %c0_i32_41, %c0_i32_42] : memref<2x272x128xbf16, #tpu.memory_space<vmem>> -> memref<1x272x128xbf16, #tpu.memory_space<vmem>>
      %75 = tpu.memref_squeeze %74 : memref<1x272x128xbf16, #tpu.memory_space<vmem>> -> memref<272x128xbf16, #tpu.memory_space<vmem>>
      tpu.wait_dma2 semaphore(%arg18 : memref<!tpu.dma_semaphore, #tpu.memory_space<semaphore_mem>>) src(%arg3 : memref<272x128xbf16, #tpu.memory_space<any>>) dst(%75 : memref<272x128xbf16, #tpu.memory_space<vmem>>)
    } else {
    }
    %c0_i32_2 = arith.constant 0 : i32
    %7 = arith.cmpi eq, %arg1, %c0_i32_2 : i32
    %8 = arith.extui %7 : i1 to i32
    %c0_i32_3 = arith.constant 0 : i32
    %9 = arith.cmpi ne, %8, %c0_i32_3 : i32
    scf.if %9 {
      %c0_37 = arith.constant 0 : index
      %c0_38 = arith.constant 0 : index
      %c0_39 = arith.constant 0 : index
      %72 = vector.load %arg4[%c0_37, %c0_38, %c0_39] : memref<1x16x128xbf16, #tpu.memory_space<vmem>>, vector<1x16x128xbf16>
      %73 = vector.shape_cast %72 : vector<1x16x128xbf16> to vector<16x128xbf16>
      %c0_i32_40 = arith.constant 0 : i32
      %c0_i32_41 = arith.constant 0 : i32
      %74 = tpu.memref_slice %arg17[%0, %c0_i32_40, %c0_i32_41] : memref<2x272x128xbf16, #tpu.memory_space<vmem>> -> memref<1x272x128xbf16, #tpu.memory_space<vmem>>
      %75 = tpu.memref_squeeze %74 : memref<1x272x128xbf16, #tpu.memory_space<vmem>> -> memref<272x128xbf16, #tpu.memory_space<vmem>>
      %c256 = arith.constant 256 : index
      %c0_42 = arith.constant 0 : index
      %76 = vector.load %75[%c256, %c0_42] : memref<272x128xbf16, #tpu.memory_space<vmem>>, vector<16x128xbf16>
      tpu.vector_store %75[%c256, %c0_42], %73 {strides = array<i32>} : memref<272x128xbf16, #tpu.memory_space<vmem>>, vector<16x128xbf16>,
    } else {
    }
    %c256_i32 = arith.constant 256 : i32
    %10 = arith.muli %arg1, %c256_i32 : i32
    %11 = tpu.assume_multiple %10, 256 : i32
    %12 = arith.index_cast %11 : i32 to index
    %c0 = arith.constant 0 : index
    %13 = vector.load %arg2[%12, %c0] : memref<256x272xbf16, #tpu.memory_space<vmem>>, vector<256x272xbf16>
    %14 = arith.index_cast %0 : i32 to index
    %c0_4 = arith.constant 0 : index
    %c0_5 = arith.constant 0 : index
    %15 = vector.load %arg17[%14, %c0_4, %c0_5] : memref<2x272x128xbf16, #tpu.memory_space<vmem>>, vector<1x272x128xbf16>
    %16 = vector.shape_cast %15 : vector<1x272x128xbf16> to vector<272x128xbf16>
    %cst = arith.constant dense<0.000000e+00> : vector<256x128xf32>
    %17 = tpu.matmul %13, %16, %cst {dimension_numbers = #tpu.dot_dimension_numbers<[1], [0], [0], [1], [0, 0, 1, 1], [], []>} : vector<256x272xbf16>, vector<272x128xbf16>, vector<256x128xf32> -> vector<256x128xf32>
    %18 = arith.truncf %17 : vector<256x128xf32> to vector<256x128xbf16>
    %c0_6 = arith.constant 0 : index
    %c0_7 = arith.constant 0 : index
    %c0_8 = arith.constant 0 : index
    %19 = vector.load %arg5[%c0_6, %c0_7, %c0_8] : memref<1x128x256xbf16, #tpu.memory_space<vmem>>, vector<1x128x256xbf16>
    %20 = vector.shape_cast %19 : vector<1x128x256xbf16> to vector<128x256xbf16>
    %cst_9 = arith.constant dense<0.000000e+00> : vector<256x256xf32>
    %21 = tpu.matmul %18, %20, %cst_9 {dimension_numbers = #tpu.dot_dimension_numbers<[1], [0], [0], [1], [0, 0, 1, 1], [], []>} : vector<256x128xbf16>, vector<128x256xbf16>, vector<256x256xf32> -> vector<256x256xf32>
    %c0_10 = arith.constant 0 : index
    %c0_11 = arith.constant 0 : index
    %c0_12 = arith.constant 0 : index
    %22 = vector.load %arg6[%c0_10, %c0_11, %c0_12] : memref<1x1x256xf32, #tpu.memory_space<vmem>>, vector<1x1x256xf32>
    %23 = vector.shape_cast %22 : vector<1x1x256xf32> to vector<1x256xf32>
    %24 = vector.broadcast %23 : vector<1x256xf32> to vector<256x256xf32>
    %25 = arith.addf %21, %24 : vector<256x256xf32>
    %cst_13 = arith.constant 0.000000e+00 : f32
    %26 = vector.broadcast %cst_13 : f32 to vector<256x256xf32>
    %27 = arith.maximumf %25, %26 : vector<256x256xf32>
    %28 = arith.truncf %27 : vector<256x256xf32> to vector<256x256xbf16>
    %c0_14 = arith.constant 0 : index
    %c0_15 = arith.constant 0 : index
    %c0_16 = arith.constant 0 : index
    %29 = vector.load %arg7[%c0_14, %c0_15, %c0_16] : memref<1x256x128xbf16, #tpu.memory_space<vmem>>, vector<1x256x128xbf16>
    %30 = vector.shape_cast %29 : vector<1x256x128xbf16> to vector<256x128xbf16>
    %cst_17 = arith.constant dense<0.000000e+00> : vector<256x128xf32>
    %31 = tpu.matmul %28, %30, %cst_17 {dimension_numbers = #tpu.dot_dimension_numbers<[1], [0], [0], [1], [0, 0, 1, 1], [], []>} : vector<256x256xbf16>, vector<256x128xbf16>, vector<256x128xf32> -> vector<256x128xf32>
    %c0_18 = arith.constant 0 : index
    %c0_19 = arith.constant 0 : index
    %c0_20 = arith.constant 0 : index
    %32 = vector.load %arg8[%c0_18, %c0_19, %c0_20] : memref<1x1x128xf32, #tpu.memory_space<vmem>>, vector<1x1x128xf32>
    %33 = vector.shape_cast %32 : vector<1x1x128xf32> to vector<1x128xf32>
    %34 = vector.broadcast %33 : vector<1x128xf32> to vector<256x128xf32>
    %35 = arith.addf %31, %34 : vector<256x128xf32>
    %cst_21 = arith.constant dense<0.000000e+00> : vector<256xf32>
    %36 = vector.multi_reduction <add>, %35, %cst_21 [1] : vector<256x128xf32> to vector<256xf32>
    %37 = vector.shape_cast %36 : vector<256xf32> to vector<256x1xf32>
    %cst_22 = arith.constant 1.280000e+02 : f32
    %38 = vector.broadcast %cst_22 : f32 to vector<256x1xf32>
    %39 = arith.divf %37, %38 : vector<256x1xf32>
    %40 = vector.broadcast %39 : vector<256x1xf32> to vector<256x128xf32>
    %41 = arith.subf %35, %40 : vector<256x128xf32>
    %42 = arith.mulf %41, %41 : vector<256x128xf32>
    %cst_23 = arith.constant dense<0.000000e+00> : vector<256xf32>
    %43 = vector.multi_reduction <add>, %42, %cst_23 [1] : vector<256x128xf32> to vector<256xf32>
    %44 = vector.shape_cast %43 : vector<256xf32> to vector<256x1xf32>
    %cst_24 = arith.constant 1.280000e+02 : f32
    %45 = vector.broadcast %cst_24 : f32 to vector<256x1xf32>
    %46 = arith.divf %44, %45 : vector<256x1xf32>
    %47 = vector.broadcast %39 : vector<256x1xf32> to vector<256x128xf32>
    %48 = arith.subf %35, %47 : vector<256x128xf32>
    %cst_25 = arith.constant 9.99999974E-6 : f32
    %49 = vector.broadcast %cst_25 : f32 to vector<256x1xf32>
    %50 = arith.addf %46, %49 : vector<256x1xf32>
    %51 = math.rsqrt %50 : vector<256x1xf32>
    %52 = vector.broadcast %51 : vector<256x1xf32> to vector<256x128xf32>
    %53 = arith.mulf %48, %52 : vector<256x128xf32>
    %c0_26 = arith.constant 0 : index
    %c0_27 = arith.constant 0 : index
    %c0_28 = arith.constant 0 : index
    %54 = vector.load %arg9[%c0_26, %c0_27, %c0_28] : memref<1x1x128xf32, #tpu.memory_space<vmem>>, vector<1x1x128xf32>
    %55 = vector.shape_cast %54 : vector<1x1x128xf32> to vector<1x128xf32>
    %56 = vector.broadcast %55 : vector<1x128xf32> to vector<256x128xf32>
    %57 = arith.mulf %53, %56 : vector<256x128xf32>
    %c0_29 = arith.constant 0 : index
    %c0_30 = arith.constant 0 : index
    %c0_31 = arith.constant 0 : index
    %58 = vector.load %arg10[%c0_29, %c0_30, %c0_31] : memref<1x1x128xf32, #tpu.memory_space<vmem>>, vector<1x1x128xf32>
    %59 = vector.shape_cast %58 : vector<1x1x128xf32> to vector<1x128xf32>
    %60 = vector.broadcast %59 : vector<1x128xf32> to vector<256x128xf32>
    %61 = arith.addf %57, %60 : vector<256x128xf32>
    %c2_i32_32 = arith.constant 2 : i32
    %62 = arith.cmpi eq, %arg0, %c2_i32_32 : i32
    %63 = arith.extui %62 : i1 to i32
    %c0_i32_33 = arith.constant 0 : i32
    %64 = arith.cmpi ne, %63, %c0_i32_33 : i32
    scf.if %64 {
      %72 = arith.truncf %61 : vector<256x128xf32> to vector<256x128xbf16>
      %c0_i32_37 = arith.constant 0 : i32
      %c0_i32_38 = arith.constant 0 : i32
      %73 = tpu.memref_slice %arg17[%1, %c0_i32_37, %c0_i32_38] : memref<2x272x128xbf16, #tpu.memory_space<vmem>> -> memref<1x272x128xbf16, #tpu.memory_space<vmem>>
      %74 = tpu.memref_squeeze %73 : memref<1x272x128xbf16, #tpu.memory_space<vmem>> -> memref<272x128xbf16, #tpu.memory_space<vmem>>
      %75 = arith.index_cast %11 : i32 to index
      %c0_39 = arith.constant 0 : index
      %76 = vector.load %74[%75, %c0_39] : memref<272x128xbf16, #tpu.memory_space<vmem>>, vector<256x128xbf16>
      tpu.vector_store %74[%75, %c0_39], %72 {strides = array<i32>} : memref<272x128xbf16, #tpu.memory_space<vmem>>, vector<256x128xbf16>,
    } else {
    }
    %true = arith.constant true
    %65 = arith.xori %62, %true : i1
    %66 = arith.extui %65 : i1 to i32
    %c0_i32_34 = arith.constant 0 : i32
    %67 = arith.cmpi ne, %66, %c0_i32_34 : i32
    scf.if %67 {
      %cst_37 = arith.constant 0.000000e+00 : f32
      %72 = vector.broadcast %cst_37 : f32 to vector<256x128xf32>
      %73 = arith.maximumf %61, %72 : vector<256x128xf32>
      %74 = arith.truncf %73 : vector<256x128xf32> to vector<256x128xbf16>
      %c0_i32_38 = arith.constant 0 : i32
      %c0_i32_39 = arith.constant 0 : i32
      %75 = tpu.memref_slice %arg17[%1, %c0_i32_38, %c0_i32_39] : memref<2x272x128xbf16, #tpu.memory_space<vmem>> -> memref<1x272x128xbf16, #tpu.memory_space<vmem>>
      %76 = tpu.memref_squeeze %75 : memref<1x272x128xbf16, #tpu.memory_space<vmem>> -> memref<272x128xbf16, #tpu.memory_space<vmem>>
      %77 = arith.index_cast %11 : i32 to index
      %c0_40 = arith.constant 0 : index
      %78 = vector.load %76[%77, %c0_40] : memref<272x128xbf16, #tpu.memory_space<vmem>>, vector<256x128xbf16>
      tpu.vector_store %76[%77, %c0_40], %74 {strides = array<i32>} : memref<272x128xbf16, #tpu.memory_space<vmem>>, vector<256x128xbf16>,
    } else {
    }
    %c0_i32_35 = arith.constant 0 : i32
    %68 = arith.cmpi eq, %arg1, %c0_i32_35 : i32
    %69 = arith.andi %62, %68 : i1
    %70 = arith.extui %69 : i1 to i32
    %c0_i32_36 = arith.constant 0 : i32
    %71 = arith.cmpi ne, %70, %c0_i32_36 : i32
    scf.if %71 {
      %c1 = arith.constant 1 : index
      %c0_37 = arith.constant 0 : index
      %c0_38 = arith.constant 0 : index
      %72 = vector.load %arg17[%c1, %c0_37, %c0_38] : memref<2x272x128xbf16, #tpu.memory_space<vmem>>, vector<1x272x128xbf16>
      %73 = vector.shape_cast %72 : vector<1x272x128xbf16> to vector<272x128xbf16>
      %74 = arith.extf %73 : vector<272x128xbf16> to vector<272x128xf32>
      %c0_39 = arith.constant 0 : index
      %c0_40 = arith.constant 0 : index
      %75 = vector.load %arg11[%c0_39, %c0_40] : memref<2x272xf32, #tpu.memory_space<vmem>>, vector<2x272xf32>
      %cst_41 = arith.constant dense<0.000000e+00> : vector<2x128xf32>
      %76 = tpu.matmul %75, %74, %cst_41 {dimension_numbers = #tpu.dot_dimension_numbers<[1], [0], [0], [1], [0, 0, 1, 1], [], []>} : vector<2x272xf32>, vector<272x128xf32>, vector<2x128xf32> -> vector<2x128xf32>
      %c0_42 = arith.constant 0 : index
      %c0_43 = arith.constant 0 : index
      %77 = vector.load %arg12[%c0_42, %c0_43] : memref<128x256xf32, #tpu.memory_space<vmem>>, vector<128x256xf32>
      %cst_44 = arith.constant dense<0.000000e+00> : vector<2x256xf32>
      %78 = tpu.matmul %76, %77, %cst_44 {dimension_numbers = #tpu.dot_dimension_numbers<[1], [0], [0], [1], [0, 0, 1, 1], [], []>} : vector<2x128xf32>, vector<128x256xf32>, vector<2x256xf32> -> vector<2x256xf32>
      %c0_45 = arith.constant 0 : index
      %c0_46 = arith.constant 0 : index
      %79 = vector.load %arg13[%c0_45, %c0_46] : memref<1x256xf32, #tpu.memory_space<vmem>>, vector<1x256xf32>
      %80 = vector.broadcast %79 : vector<1x256xf32> to vector<2x256xf32>
      %81 = arith.addf %78, %80 : vector<2x256xf32>
      %cst_47 = arith.constant 0.000000e+00 : f32
      %82 = vector.broadcast %cst_47 : f32 to vector<2x256xf32>
      %83 = arith.cmpf oge, %81, %82 : vector<2x256xf32>
      %cst_48 = arith.constant 0.00999999977 : f32
      %84 = vector.broadcast %cst_48 : f32 to vector<2x256xf32>
      %85 = arith.mulf %84, %81 : vector<2x256xf32>
      %86 = arith.select %83, %81, %85 : vector<2x256xi1>, vector<2x256xf32>
      %c0_49 = arith.constant 0 : index
      %c0_50 = arith.constant 0 : index
      %87 = vector.load %arg14[%c0_49, %c0_50] : memref<256x128xf32, #tpu.memory_space<vmem>>, vector<256x128xf32>
      %cst_51 = arith.constant dense<0.000000e+00> : vector<2x128xf32>
      %88 = tpu.matmul %86, %87, %cst_51 {dimension_numbers = #tpu.dot_dimension_numbers<[1], [0], [0], [1], [0, 0, 1, 1], [], []>} : vector<2x256xf32>, vector<256x128xf32>, vector<2x128xf32> -> vector<2x128xf32>
      %c0_52 = arith.constant 0 : index
      %c0_53 = arith.constant 0 : index
      %89 = vector.load %arg15[%c0_52, %c0_53] : memref<1x128xf32, #tpu.memory_space<vmem>>, vector<1x128xf32>
      %90 = vector.broadcast %89 : vector<1x128xf32> to vector<2x128xf32>
      %91 = arith.addf %88, %90 : vector<2x128xf32>
      %c0_54 = arith.constant 0 : index
      %c0_55 = arith.constant 0 : index
      %92 = vector.load %arg16[%c0_54, %c0_55] : memref<2x128xf32, #tpu.memory_space<vmem>>, vector<2x128xf32>
      tpu.vector_store %arg16[%c0_54, %c0_55], %91 {strides = array<i32>} : memref<2x128xf32, #tpu.memory_space<vmem>>, vector<2x128xf32>,
    } else {
    }
    return
  }
  func.func @transform_0(%arg0: i32, %arg1: i32) -> (i32, i32) {
    %c0_i32 = arith.constant 0 : i32
    %c0_i32_0 = arith.constant 0 : i32
    %c0_i32_1 = arith.constant 0 : i32
    return %c0_i32, %c0_i32_0 : i32, i32
  }
  func.func @transform_2(%arg0: i32, %arg1: i32) -> (i32, i32, i32) {
    %c0_i32 = arith.constant 0 : i32
    %c0_i32_0 = arith.constant 0 : i32
    %c0_i32_1 = arith.constant 0 : i32
    return %arg0, %c0_i32, %c0_i32_0 : i32, i32, i32
  }
  func.func @transform_3(%arg0: i32, %arg1: i32) -> (i32, i32, i32) {
    %c0_i32 = arith.constant 0 : i32
    %c0_i32_0 = arith.constant 0 : i32
    %c0_i32_1 = arith.constant 0 : i32
    return %arg0, %c0_i32, %c0_i32_0 : i32, i32, i32
  }
  func.func @transform_4(%arg0: i32, %arg1: i32) -> (i32, i32, i32) {
    %c0_i32 = arith.constant 0 : i32
    %c0_i32_0 = arith.constant 0 : i32
    %c0_i32_1 = arith.constant 0 : i32
    return %arg0, %c0_i32, %c0_i32_0 : i32, i32, i32
  }
  func.func @transform_5(%arg0: i32, %arg1: i32) -> (i32, i32, i32) {
    %c0_i32 = arith.constant 0 : i32
    %c0_i32_0 = arith.constant 0 : i32
    %c0_i32_1 = arith.constant 0 : i32
    return %arg0, %c0_i32, %c0_i32_0 : i32, i32, i32
  }
  func.func @transform_6(%arg0: i32, %arg1: i32) -> (i32, i32, i32) {
    %c0_i32 = arith.constant 0 : i32
    %c0_i32_0 = arith.constant 0 : i32
    %c0_i32_1 = arith.constant 0 : i32
    return %arg0, %c0_i32, %c0_i32_0 : i32, i32, i32
  }
  func.func @transform_7(%arg0: i32, %arg1: i32) -> (i32, i32, i32) {
    %c0_i32 = arith.constant 0 : i32
    %c0_i32_0 = arith.constant 0 : i32
    %c0_i32_1 = arith.constant 0 : i32
    return %arg0, %c0_i32, %c0_i32_0 : i32, i32, i32
  }
  func.func @transform_8(%arg0: i32, %arg1: i32) -> (i32, i32, i32) {
    %c0_i32 = arith.constant 0 : i32
    %c0_i32_0 = arith.constant 0 : i32
    %c0_i32_1 = arith.constant 0 : i32
    return %arg0, %c0_i32, %c0_i32_0 : i32, i32, i32
  }
  func.func @transform_9(%arg0: i32, %arg1: i32) -> (i32, i32) {
    %c0_i32 = arith.constant 0 : i32
    %c0_i32_0 = arith.constant 0 : i32
    %c0_i32_1 = arith.constant 0 : i32
    return %c0_i32, %c0_i32_0 : i32, i32
  }
  func.func @transform_10(%arg0: i32, %arg1: i32) -> (i32, i32) {
    %c0_i32 = arith.constant 0 : i32
    %c0_i32_0 = arith.constant 0 : i32
    %c0_i32_1 = arith.constant 0 : i32
    return %c0_i32, %c0_i32_0 : i32, i32
  }
  func.func @transform_11(%arg0: i32, %arg1: i32) -> (i32, i32) {
    %c0_i32 = arith.constant 0 : i32
    %c0_i32_0 = arith.constant 0 : i32
    %c0_i32_1 = arith.constant 0 : i32
    return %c0_i32, %c0_i32_0 : i32, i32
  }
  func.func @transform_12(%arg0: i32, %arg1: i32) -> (i32, i32) {
    %c0_i32 = arith.constant 0 : i32
    %c0_i32_0 = arith.constant 0 : i32
    %c0_i32_1 = arith.constant 0 : i32
    return %c0_i32, %c0_i32_0 : i32, i32
  }
  func.func @transform_13(%arg0: i32, %arg1: i32) -> (i32, i32) {
    %c0_i32 = arith.constant 0 : i32
    %c0_i32_0 = arith.constant 0 : i32
    %c0_i32_1 = arith.constant 0 : i32
    return %c0_i32, %c0_i32_0 : i32, i32
  }
  func.func @transform_14(%arg0: i32, %arg1: i32) -> (i32, i32) {
    %c0_i32 = arith.constant 0 : i32
    %c0_i32_0 = arith.constant 0 : i32
    %c0_i32_1 = arith.constant 0 : i32
    return %c0_i32, %c0_i32_0 : i32, i32
  }
}

</mosaic_0001>

<llo_original>
// kernel: tpu_custom_call.1
$region0: #{tpu_custom_call.1}
  #allocation0 [shape = 'u32[]', space=smem, size = 0x4, offset = 0x4, fixed_abs, tag = 'smem constant byte address 0x4 - core index']
  #allocation1 [shape = 'u32[144,128]{1,0:T(1,128)}', space=vmem, size = 0x12000, scoped, tag = 'internal scratch']
  #allocation2 [shape = 'bf16[2,272,128]{2,1,0:T(8,128)(2,1)}', space=vmem, size = 0x22000, scoped, tag = 'scratch operand']
  #allocation3 [shape = 's32[1]{0}', space=sflag, size = 0x4, scoped, tag = 'scratch operand']
  #allocation11 [shape = 's32[]', space=sflag, size = 0x4, offset = 0, fixed_abs, tag = 'sflag constant byte address 0x0 - dummy sync flag']
  #allocation12 [shape = 's32[]', space=sflag, size = 0x4, offset = 0, fixed_abs, tag = 'sflag constant byte address 0x0 - dummy sync flag']
  #allocation13 [shape = 'u32[]', space=smem, size = 0x4, offset = 0x44, fixed_abs, tag = 'smem constant byte address 0x44 - assertion arg 0']
  #allocation14 [shape = 'u32[]', space=smem, size = 0x4, offset = 0x48, fixed_abs, tag = 'smem constant byte address 0x48 - assertion arg 1']
  %s0 = inlined_call_operand.vmem [shape: bf16[256,272], index: 0, kind: input, shape index: {}]
  %s1 = inlined_call_operand.hbm [shape: bf16[272,128], index: 1, kind: input, shape index: {}]
  %s2 = inlined_call_operand.hbm [shape: bf16[3,16,128], index: 2, kind: input, shape index: {}]
  %s3 = inlined_call_operand.vmem [shape: bf16[3,128,256], index: 3, kind: input, shape index: {}]
  %s4 = inlined_call_operand.vmem [shape: f32[3,1,256], index: 4, kind: input, shape index: {}]
  %s5 = inlined_call_operand.hbm [shape: bf16[3,256,128], index: 5, kind: input, shape index: {}]
  %s6 = inlined_call_operand.vmem [shape: f32[3,1,128], index: 6, kind: input, shape index: {}]
  %s7 = inlined_call_operand.vmem [shape: f32[3,1,128], index: 7, kind: input, shape index: {}]
  %s8 = inlined_call_operand.vmem [shape: f32[3,1,128], index: 8, kind: input, shape index: {}]
  %s9 = inlined_call_operand.vmem [shape: f32[2,272], index: 9, kind: input, shape index: {}]
  %s10 = inlined_call_operand.vmem [shape: f32[128,256], index: 10, kind: input, shape index: {}]
  %s11 = inlined_call_operand.vmem [shape: f32[1,256], index: 11, kind: input, shape index: {}]
  %s12 = inlined_call_operand.hbm [shape: f32[256,128], index: 12, kind: input, shape index: {}]
  %s13 = inlined_call_operand.vmem [shape: f32[1,128], index: 13, kind: input, shape index: {}]
  %s14 = inlined_call_operand.hbm [shape: f32[2,128], index: 14, kind: output, shape index: {}]
  %s15 = sld [smem:[#allocation0]]
  $region121: #{tpu_custom_call.1} parent=0
    _
  %s17 = ssub.s32 1, %s15
  %s18 = scalar_select 0, %s17, %s15
  $region1: #{tpu_custom_call.1} parent=0
    #allocation4 [shape = 'u8[8192]{0}', space=vmem, size = 0x2000, scoped, tag = 'input window, operand 2']
    #allocation5 [shape = 's32[2]{0}', space=sflag, size = 0x8, scoped, tag = 'scoped memory for tpu_custom_call.1']
    #allocation6 [shape = 's32[2]{0}', space=sflag, size = 0x8, scoped, tag = 'scoped memory for tpu_custom_call.1']
    #allocation7 [shape = 'u8[131072]{0}', space=vmem, size = 0x20000, scoped, tag = 'input window, operand 5']
    #allocation8 [shape = 's32[2]{0}', space=sflag, size = 0x8, scoped, tag = 'scoped memory for tpu_custom_call.1']
    #allocation9 [shape = 'u8[131072]{0}', space=vmem, size = 0x20000, scoped, tag = 'input window, operand 12, single buffered']
    #allocation10 [shape = 'u8[1024]{0}', space=vmem, size = 0x400, scoped, tag = 'output window, operand 0, single buffered']
    %19 = vsyncpa [#allocation5], 0
    %s20 = scalar_lea.sflag [#allocation5], 1
    %21 = vsyncpa %s20, 0
    %22 = vsyncpa [#allocation8], 0
    %s23 = scalar_lea.sflag [#allocation8], 1
    %24 = vsyncpa %s23, 0
    %25 = vsyncpa [#allocation6], 0
    loop: start=0, step=1, limit=5
    $region2: #{tpu_custom_call.1} parent=1 // loop_pre_header
      _
    $region3: #{tpu_custom_call.1} parent=1 // loop_header
      %s27 = sphi 0, %s31
      %p28 = scmp.ge.s32.totalorder %s27, 5
      %s34 = sphi 0, %s46
      %s35 = sphi 0, %s42
      %s36 = sphi 0, %s34
      %s37 = sphi 0, %s35
      %s38 = sphi 0, %s36
      %s39 = sphi 0, %s37
      %s47 = sphi 0, %s47
      %s49 = sphi 0, %s47
      %s50 = sphi 0, %s49
      %s64 = sphi 0, %s50
      %s70 = sphi 0, %s72
      %s73 = sphi 0, %s70
      %s74 = sphi 0, %s73
      %s90 = sphi 0, %s74
      %s96 = sphi 0, %s98
      %s99 = sphi 0, %s96
      %s100 = sphi 0, %s99
      %s116 = sphi 0, %s100
      %s122 = sphi 0, %s124
      %s125 = sphi 0, %s122
      %s126 = sphi 0, %s125
      %s142 = sphi 0, %s126
      %s148 = sphi 0, %s150
      %s151 = sphi 0, %s148
      %s152 = sphi 0, %s151
      %s168 = sphi 0, %s152
      %s174 = sphi 0, %s176
      %s177 = sphi 0, %s174
      %s178 = sphi 0, %s177
      %s194 = sphi 0, %s178
      %s200 = sphi 0, %s202
      %s203 = sphi 0, %s200
      %s204 = sphi 0, %s203
      %s220 = sphi 0, %s204
      %s226 = sphi 0, %s228
      %s229 = sphi 0, %s226
      %s230 = sphi 0, %s229
      %s246 = sphi 0, %s230
      %s250 = sphi 0, %s250
      %s252 = sphi 0, %s250
      %s253 = sphi 0, %s252
      %s267 = sphi 0, %s253
      %s271 = sphi 0, %s271
      %s273 = sphi 0, %s271
      %s274 = sphi 0, %s273
      %s288 = sphi 0, %s274
      %s292 = sphi 0, %s292
      %s294 = sphi 0, %s292
      %s295 = sphi 0, %s294
      %s309 = sphi 0, %s295
      %s313 = sphi 0, %s313
      %s315 = sphi 0, %s313
      %s316 = sphi 0, %s315
      %s330 = sphi 0, %s316
      %s334 = sphi 0, %s334
      %s336 = sphi 0, %s334
      %s337 = sphi 0, %s336
      %s351 = sphi 0, %s337
      %s355 = sphi 0, %s355
      %s357 = sphi 0, %s355
      %s358 = sphi 0, %s357
      %s372 = sphi 0, %s358
    $region4: #{tpu_custom_call.1} parent=1 // loop_header_branch
      %30 = sbr.rel (%p28) target = $region8
    $region5: #{tpu_custom_call.1} parent=1 // loop_body
      %s32 = ssub.s32 %s27, 1
      %s33 = ssub.s32 %s27, 2
      %s40 = sadd.s32 1, %s35
      %p41 = scmp.ge.s32.totalorder %s40, 1
      %s42 = scalar_select %p41, 0, %s40
      %s43 = sadd.s32 1, %s34
      %s44 = scalar_select %p41, %s43, %s34
      %p45 = scmp.ge.s32.totalorder %s44, 3
      %s46 = scalar_select %p45, 0, %s44
      %s48 = sadd.s32 %s47, 1
      %p51 = scmp.eq.s32.totalorder %s27, 2
      %p52 = scmp.ne.s32.totalorder %s47, %s49
      %p53 = scmp.eq.s32.totalorder %s27, 0
      %p54 = por %p52, %p53
      %p55 = scmp.ne.s32.totalorder %s47, %s49
      %p56 = scmp.eq.s32.totalorder %s32, 2
      %p57 = por %p55, %p56
      %p58 = scmp.ne.s32.totalorder %s49, %s50
      %p59 = scmp.eq.s32.totalorder %s32, 0
      %p60 = por %p58, %p59
      %p61 = scmp.ne.s32.totalorder %s49, %s50
      %p62 = scmp.eq.s32.totalorder %s33, 2
      %p63 = por %p61, %p62
      %p65 = scmp.ne.s32.totalorder %s50, %s64
      %p66 = scmp.eq.s32.totalorder %s33, 0
      %p67 = por %p65, %p66
      %s68 = ssub.s32 %s34, %s46
      %p69 = scmp.eq.s32.totalorder %s68, 0
      %s71 = sadd.s32 %s70, 1
      %s72 = scalar_select %p69, %s70, %s71
      %p75 = pneg %p69
      %p76 = scmp.eq.s32.totalorder %s27, 2
      %p77 = por %p75, %p76
      %p78 = scmp.ne.s32.totalorder %s70, %s73
      %p79 = scmp.eq.s32.totalorder %s27, 0
      %p80 = por %p78, %p79
      %p81 = scmp.ne.s32.totalorder %s70, %s73
      %p82 = scmp.eq.s32.totalorder %s32, 2
      %p83 = por %p81, %p82
      %p84 = scmp.ne.s32.totalorder %s73, %s74
      %p85 = scmp.eq.s32.totalorder %s32, 0
      %p86 = por %p84, %p85
      %p87 = scmp.ne.s32.totalorder %s73, %s74
      %p88 = scmp.eq.s32.totalorder %s33, 2
      %p89 = por %p87, %p88
      %p91 = scmp.ne.s32.totalorder %s74, %s90
      %p92 = scmp.eq.s32.totalorder %s33, 0
      %p93 = por %p91, %p92
      %s94 = ssub.s32 %s34, %s46
      %p95 = scmp.eq.s32.totalorder %s94, 0
      %s97 = sadd.s32 %s96, 1
      %s98 = scalar_select %p95, %s96, %s97
      %p101 = pneg %p95
      %p102 = scmp.eq.s32.totalorder %s27, 2
      %p103 = por %p101, %p102
      %p104 = scmp.ne.s32.totalorder %s96, %s99
      %p105 = scmp.eq.s32.totalorder %s27, 0
      %p106 = por %p104, %p105
      %p107 = scmp.ne.s32.totalorder %s96, %s99
      %p108 = scmp.eq.s32.totalorder %s32, 2
      %p109 = por %p107, %p108
      %p110 = scmp.ne.s32.totalorder %s99, %s100
      %p111 = scmp.eq.s32.totalorder %s32, 0
      %p112 = por %p110, %p111
      %p113 = scmp.ne.s32.totalorder %s99, %s100
      %p114 = scmp.eq.s32.totalorder %s33, 2
      %p115 = por %p113, %p114
      %p117 = scmp.ne.s32.totalorder %s100, %s116
      %p118 = scmp.eq.s32.totalorder %s33, 0
      %p119 = por %p117, %p118
      %s120 = ssub.s32 %s34, %s46
      %p121 = scmp.eq.s32.totalorder %s120, 0
      %s123 = sadd.s32 %s122, 1
      %s124 = scalar_select %p121, %s122, %s123
      %p127 = pneg %p121
      %p128 = scmp.eq.s32.totalorder %s27, 2
      %p129 = por %p127, %p128
      %p130 = scmp.ne.s32.totalorder %s122, %s125
      %p131 = scmp.eq.s32.totalorder %s27, 0
      %p132 = por %p130, %p131
      %p133 = scmp.ne.s32.totalorder %s122, %s125
      %p134 = scmp.eq.s32.totalorder %s32, 2
      %p135 = por %p133, %p134
      %p136 = scmp.ne.s32.totalorder %s125, %s126
      %p137 = scmp.eq.s32.totalorder %s32, 0
      %p138 = por %p136, %p137
      %p139 = scmp.ne.s32.totalorder %s125, %s126
      %p140 = scmp.eq.s32.totalorder %s33, 2
      %p141 = por %p139, %p140
      %p143 = scmp.ne.s32.totalorder %s126, %s142
      %p144 = scmp.eq.s32.totalorder %s33, 0
      %p145 = por %p143, %p144
      %s146 = ssub.s32 %s34, %s46
      %p147 = scmp.eq.s32.totalorder %s146, 0
      %s149 = sadd.s32 %s148, 1
      %s150 = scalar_select %p147, %s148, %s149
      %p153 = pneg %p147
      %p154 = scmp.eq.s32.totalorder %s27, 2
      %p155 = por %p153, %p154
      %p156 = scmp.ne.s32.totalorder %s148, %s151
      %p157 = scmp.eq.s32.totalorder %s27, 0
      %p158 = por %p156, %p157
      %p159 = scmp.ne.s32.totalorder %s148, %s151
      %p160 = scmp.eq.s32.totalorder %s32, 2
      %p161 = por %p159, %p160
      %p162 = scmp.ne.s32.totalorder %s151, %s152
      %p163 = scmp.eq.s32.totalorder %s32, 0
      %p164 = por %p162, %p163
      %p165 = scmp.ne.s32.totalorder %s151, %s152
      %p166 = scmp.eq.s32.totalorder %s33, 2
      %p167 = por %p165, %p166
      %p169 = scmp.ne.s32.totalorder %s152, %s168
      %p170 = scmp.eq.s32.totalorder %s33, 0
      %p171 = por %p169, %p170
      %s172 = ssub.s32 %s34, %s46
      %p173 = scmp.eq.s32.totalorder %s172, 0
      %s175 = sadd.s32 %s174, 1
      %s176 = scalar_select %p173, %s174, %s175
      %p179 = pneg %p173
      %p180 = scmp.eq.s32.totalorder %s27, 2
      %p181 = por %p179, %p180
      %p182 = scmp.ne.s32.totalorder %s174, %s177
      %p183 = scmp.eq.s32.totalorder %s27, 0
      %p184 = por %p182, %p183
      %p185 = scmp.ne.s32.totalorder %s174, %s177
      %p186 = scmp.eq.s32.totalorder %s32, 2
      %p187 = por %p185, %p186
      %p188 = scmp.ne.s32.totalorder %s177, %s178
      %p189 = scmp.eq.s32.totalorder %s32, 0
      %p190 = por %p188, %p189
      %p191 = scmp.ne.s32.totalorder %s177, %s178
      %p192 = scmp.eq.s32.totalorder %s33, 2
      %p193 = por %p191, %p192
      %p195 = scmp.ne.s32.totalorder %s178, %s194
      %p196 = scmp.eq.s32.totalorder %s33, 0
      %p197 = por %p195, %p196
      %s198 = ssub.s32 %s34, %s46
      %p199 = scmp.eq.s32.totalorder %s198, 0
      %s201 = sadd.s32 %s200, 1
      %s202 = scalar_select %p199, %s200, %s201
      %p205 = pneg %p199
      %p206 = scmp.eq.s32.totalorder %s27, 2
      %p207 = por %p205, %p206
      %p208 = scmp.ne.s32.totalorder %s200, %s203
      %p209 = scmp.eq.s32.totalorder %s27, 0
      %p210 = por %p208, %p209
      %p211 = scmp.ne.s32.totalorder %s200, %s203
      %p212 = scmp.eq.s32.totalorder %s32, 2
      %p213 = por %p211, %p212
      %p214 = scmp.ne.s32.totalorder %s203, %s204
      %p215 = scmp.eq.s32.totalorder %s32, 0
      %p216 = por %p214, %p215
      %p217 = scmp.ne.s32.totalorder %s203, %s204
      %p218 = scmp.eq.s32.totalorder %s33, 2
      %p219 = por %p217, %p218
      %p221 = scmp.ne.s32.totalorder %s204, %s220
      %p222 = scmp.eq.s32.totalorder %s33, 0
      %p223 = por %p221, %p222
      %s224 = ssub.s32 %s34, %s46
      %p225 = scmp.eq.s32.totalorder %s224, 0
      %s227 = sadd.s32 %s226, 1
      %s228 = scalar_select %p225, %s226, %s227
      %p231 = pneg %p225
      %p232 = scmp.eq.s32.totalorder %s27, 2
      %p233 = por %p231, %p232
      %p234 = scmp.ne.s32.totalorder %s226, %s229
      %p235 = scmp.eq.s32.totalorder %s27, 0
      %p236 = por %p234, %p235
      %p237 = scmp.ne.s32.totalorder %s226, %s229
      %p238 = scmp.eq.s32.totalorder %s32, 2
      %p239 = por %p237, %p238
      %p240 = scmp.ne.s32.totalorder %s229, %s230
      %p241 = scmp.eq.s32.totalorder %s32, 0
      %p242 = por %p240, %p241
      %p243 = scmp.ne.s32.totalorder %s229, %s230
      %p244 = scmp.eq.s32.totalorder %s33, 2
      %p245 = por %p243, %p244
      %p247 = scmp.ne.s32.totalorder %s230, %s246
      %p248 = scmp.eq.s32.totalorder %s33, 0
      %p249 = por %p247, %p248
      %s251 = sadd.s32 %s250, 1
      %p254 = scmp.eq.s32.totalorder %s27, 2
      %p255 = scmp.ne.s32.totalorder %s250, %s252
      %p256 = scmp.eq.s32.totalorder %s27, 0
      %p257 = por %p255, %p256
      %p258 = scmp.ne.s32.totalorder %s250, %s252
      %p259 = scmp.eq.s32.totalorder %s32, 2
      %p260 = por %p258, %p259
      %p261 = scmp.ne.s32.totalorder %s252, %s253
      %p262 = scmp.eq.s32.totalorder %s32, 0
      %p263 = por %p261, %p262
      %p264 = scmp.ne.s32.totalorder %s252, %s253
      %p265 = scmp.eq.s32.totalorder %s33, 2
      %p266 = por %p264, %p265
      %p268 = scmp.ne.s32.totalorder %s253, %s267
      %p269 = scmp.eq.s32.totalorder %s33, 0
      %p270 = por %p268, %p269
      %s272 = sadd.s32 %s271, 1
      %p275 = scmp.eq.s32.totalorder %s27, 2
      %p276 = scmp.ne.s32.totalorder %s271, %s273
      %p277 = scmp.eq.s32.totalorder %s27, 0
      %p278 = por %p276, %p277
      %p279 = scmp.ne.s32.totalorder %s271, %s273
      %p280 = scmp.eq.s32.totalorder %s32, 2
      %p281 = por %p279, %p280
      %p282 = scmp.ne.s32.totalorder %s273, %s274
      %p283 = scmp.eq.s32.totalorder %s32, 0
      %p284 = por %p282, %p283
      %p285 = scmp.ne.s32.totalorder %s273, %s274
      %p286 = scmp.eq.s32.totalorder %s33, 2
      %p287 = por %p285, %p286
      %p289 = scmp.ne.s32.totalorder %s274, %s288
      %p290 = scmp.eq.s32.totalorder %s33, 0
      %p291 = por %p289, %p290
      %s293 = sadd.s32 %s292, 1
      %p296 = scmp.eq.s32.totalorder %s27, 2
      %p297 = scmp.ne.s32.totalorder %s292, %s294
      %p298 = scmp.eq.s32.totalorder %s27, 0
      %p299 = por %p297, %p298
      %p300 = scmp.ne.s32.totalorder %s292, %s294
      %p301 = scmp.eq.s32.totalorder %s32, 2
      %p302 = por %p300, %p301
      %p303 = scmp.ne.s32.totalorder %s294, %s295
      %p304 = scmp.eq.s32.totalorder %s32, 0
      %p305 = por %p303, %p304
      %p306 = scmp.ne.s32.totalorder %s294, %s295
      %p307 = scmp.eq.s32.totalorder %s33, 2
      %p308 = por %p306, %p307
      %p310 = scmp.ne.s32.totalorder %s295, %s309
      %p311 = scmp.eq.s32.totalorder %s33, 0
      %p312 = por %p310, %p311
      %s314 = sadd.s32 %s313, 1
      %p317 = scmp.eq.s32.totalorder %s27, 2
      %p318 = scmp.ne.s32.totalorder %s313, %s315
      %p319 = scmp.eq.s32.totalorder %s27, 0
      %p320 = por %p318, %p319
      %p321 = scmp.ne.s32.totalorder %s313, %s315
      %p322 = scmp.eq.s32.totalorder %s32, 2
      %p323 = por %p321, %p322
      %p324 = scmp.ne.s32.totalorder %s315, %s316
      %p325 = scmp.eq.s32.totalorder %s32, 0
      %p326 = por %p324, %p325
      %p327 = scmp.ne.s32.totalorder %s315, %s316
      %p328 = scmp.eq.s32.totalorder %s33, 2
      %p329 = por %p327, %p328
      %p331 = scmp.ne.s32.totalorder %s316, %s330
      %p332 = scmp.eq.s32.totalorder %s33, 0
      %p333 = por %p331, %p332
      %s335 = sadd.s32 %s334, 1
      %p338 = scmp.eq.s32.totalorder %s27, 2
      %p339 = scmp.ne.s32.totalorder %s334, %s336
      %p340 = scmp.eq.s32.totalorder %s27, 0
      %p341 = por %p339, %p340
      %p342 = scmp.ne.s32.totalorder %s334, %s336
      %p343 = scmp.eq.s32.totalorder %s32, 2
      %p344 = por %p342, %p343
      %p345 = scmp.ne.s32.totalorder %s336, %s337
      %p346 = scmp.eq.s32.totalorder %s32, 0
      %p347 = por %p345, %p346
      %p348 = scmp.ne.s32.totalorder %s336, %s337
      %p349 = scmp.eq.s32.totalorder %s33, 2
      %p350 = por %p348, %p349
      %p352 = scmp.ne.s32.totalorder %s337, %s351
      %p353 = scmp.eq.s32.totalorder %s33, 0
      %p354 = por %p352, %p353
      %s356 = sadd.s32 %s355, 1
      %p359 = scmp.eq.s32.totalorder %s27, 2
      %p360 = scmp.ne.s32.totalorder %s355, %s357
      %p361 = scmp.eq.s32.totalorder %s27, 0
      %p362 = por %p360, %p361
      %p363 = scmp.ne.s32.totalorder %s355, %s357
      %p364 = scmp.eq.s32.totalorder %s32, 2
      %p365 = por %p363, %p364
      %p366 = scmp.ne.s32.totalorder %s357, %s358
      %p367 = scmp.eq.s32.totalorder %s32, 0
      %p368 = por %p366, %p367
      %p369 = scmp.ne.s32.totalorder %s357, %s358
      %p370 = scmp.eq.s32.totalorder %s33, 2
      %p371 = por %p369, %p370
      %p373 = scmp.ne.s32.totalorder %s358, %s372
      %p374 = scmp.eq.s32.totalorder %s33, 0
      %p375 = por %p373, %p374
      %p376 = scmp.le.s32.totalorder 1, %s27
      %p377 = scmp.lt.s32.totalorder %s27, 4
      %p378 = pnand %p376, %p377
      %p379 = pneg %p378
      // Predicated region
      $region9: #{tpu_custom_call.1} parent=5 // pred_check
        _
      $region10: #{tpu_custom_call.1} parent=5 // pred_check_branch
        %381 = sbr.rel (%p378) target = $region12
      $region11: #{tpu_custom_call.1} parent=5 // pred_region
        %s382 = ssub.s32 %s27, 1
        // Predicated region
        $region13: #{tpu_custom_call.1} parent=11 // pred_check
          %p383 = pneg %p60
        $region14: #{tpu_custom_call.1} parent=11 // pred_check_branch
          %385 = sbr.rel (%p383) target = $region16
        $region15: #{tpu_custom_call.1} parent=11 // pred_region
          _
        $region16: #{tpu_custom_call.1} parent=11 // pred_fallthru
          _
        // Predicated region
        $region17: #{tpu_custom_call.1} parent=11 // pred_check
          %p386 = pneg %p263
        $region18: #{tpu_custom_call.1} parent=11 // pred_check_branch
          %388 = sbr.rel (%p386) target = $region20
        $region19: #{tpu_custom_call.1} parent=11 // pred_region
          _
        $region20: #{tpu_custom_call.1} parent=11 // pred_fallthru
          _
        // Predicated region
        $region21: #{tpu_custom_call.1} parent=11 // pred_check
          %p389 = pneg %p284
        $region22: #{tpu_custom_call.1} parent=11 // pred_check_branch
          %391 = sbr.rel (%p389) target = $region24
        $region23: #{tpu_custom_call.1} parent=11 // pred_region
          _
        $region24: #{tpu_custom_call.1} parent=11 // pred_fallthru
          _
        // Predicated region
        $region25: #{tpu_custom_call.1} parent=11 // pred_check
          %p392 = pneg %p305
        $region26: #{tpu_custom_call.1} parent=11 // pred_check_branch
          %394 = sbr.rel (%p392) target = $region28
        $region27: #{tpu_custom_call.1} parent=11 // pred_region
          _
        $region28: #{tpu_custom_call.1} parent=11 // pred_fallthru
          _
        // Predicated region
        $region29: #{tpu_custom_call.1} parent=11 // pred_check
          %p395 = pneg %p326
        $region30: #{tpu_custom_call.1} parent=11 // pred_check_branch
          %397 = sbr.rel (%p395) target = $region32
        $region31: #{tpu_custom_call.1} parent=11 // pred_region
          %s399 = ssub.s32 4096, 4096
          %400 = vsyncadd [#allocation8], %s399
          %s401 = sshll.u32 [#allocation9], 4
          %s402 = int_to_ptr.vmem [resolvable:$true] %s401
          %407 = dma.hbm_to_vmem [thread:$0]  %s12, 4096, %s402, [#allocation8], 128, 128, 8
        $region32: #{tpu_custom_call.1} parent=11 // pred_fallthru
          _
        // Predicated region
        $region33: #{tpu_custom_call.1} parent=11 // pred_check
          %p408 = pneg %p347
        $region34: #{tpu_custom_call.1} parent=11 // pred_check_branch
          %410 = sbr.rel (%p408) target = $region36
        $region35: #{tpu_custom_call.1} parent=11 // pred_region
          _
        $region36: #{tpu_custom_call.1} parent=11 // pred_fallthru
          _
      $region12: #{tpu_custom_call.1} parent=5 // pred_fallthru
        _
      %p411 = scmp.lt.s32.totalorder %s27, 3
      // Predicated region
      $region37: #{tpu_custom_call.1} parent=5 // pred_check
        %p412 = pneg %p411
      $region38: #{tpu_custom_call.1} parent=5 // pred_check_branch
        %414 = sbr.rel (%p412) target = $region40
      $region39: #{tpu_custom_call.1} parent=5 // pred_region
        // Predicated region
        $region41: #{tpu_custom_call.1} parent=39 // pred_check
          %p415 = pneg %p80
        $region42: #{tpu_custom_call.1} parent=39 // pred_check_branch
          %417 = sbr.rel (%p415) target = $region44
        $region43: #{tpu_custom_call.1} parent=39 // pred_region
          %s418 = sand.u32 %s70, 1
          %s419 = scalar_lea.sflag [#allocation5], %s418
          %s420 = sand.u32 %s70, 1
          %s421 = smul.addr %s420, 8
          %s422 = scalar_lea.vmem [#allocation4], %s421
          %s424 = ssub.s32 128, 128
          %425 = vsyncadd %s419, %s424
          %s426 = smul.addr %s34, 2
          %s427 = smul.addr %s426, 64
          %s428 = scalar_lea.hbm %s2, %s427
          %s429 = sshll.u32 %s422, 4
          %s430 = int_to_ptr.vmem [resolvable:$true] %s429
          %435 = dma.hbm_to_vmem [thread:$0]  %s428, 128, %s430, %s419, 64, 64, 4
        $region44: #{tpu_custom_call.1} parent=39 // pred_fallthru
          _
        // Predicated region
        $region45: #{tpu_custom_call.1} parent=39 // pred_check
          %p436 = pneg %p106
        $region46: #{tpu_custom_call.1} parent=39 // pred_check_branch
          %438 = sbr.rel (%p436) target = $region48
        $region47: #{tpu_custom_call.1} parent=39 // pred_region
          %p439 = scmp.lt.s32.totalorder %s34, 2
          %s440 = scalar_select %p439, %s34, 2
          %s441 = smul.addr %s440, 32
          %s442 = smul.addr %s441, 4
          %s443 = scalar_lea.vmem %s3, %s442
        $region48: #{tpu_custom_call.1} parent=39 // pred_fallthru
          _
        // Predicated region
        $region49: #{tpu_custom_call.1} parent=39 // pred_check
          %p444 = pneg %p132
        $region50: #{tpu_custom_call.1} parent=39 // pred_check_branch
          %446 = sbr.rel (%p444) target = $region52
        $region51: #{tpu_custom_call.1} parent=39 // pred_region
          %p447 = scmp.lt.s32.totalorder %s34, 2
          %s448 = scalar_select %p447, %s34, 2
          %s449 = smul.addr %s448, 2
          %s450 = scalar_lea.vmem %s4, %s449
        $region52: #{tpu_custom_call.1} parent=39 // pred_fallthru
          _
        // Predicated region
        $region53: #{tpu_custom_call.1} parent=39 // pred_check
          %p451 = pneg %p158
        $region54: #{tpu_custom_call.1} parent=39 // pred_check_branch
          %453 = sbr.rel (%p451) target = $region56
        $region55: #{tpu_custom_call.1} parent=39 // pred_region
          %s454 = sand.u32 %s27, 1
          %s455 = scalar_lea.sflag [#allocation8], %s454
          %s456 = sand.u32 %s148, 1
          %s457 = smul.addr %s456, 128
          %s458 = scalar_lea.vmem [#allocation7], %s457
          %s460 = ssub.s32 2048, 2048
          %461 = vsyncadd %s455, %s460
          %s462 = smul.addr %s34, 32
          %s463 = smul.addr %s462, 64
          %s464 = scalar_lea.hbm %s5, %s463
          %s465 = sshll.u32 %s458, 4
          %s466 = int_to_ptr.vmem [resolvable:$true] %s465
          %471 = dma.hbm_to_vmem [thread:$0]  %s464, 2048, %s466, %s455, 64, 64, 4
        $region56: #{tpu_custom_call.1} parent=39 // pred_fallthru
          _
        // Predicated region
        $region57: #{tpu_custom_call.1} parent=39 // pred_check
          %p472 = pneg %p184
        $region58: #{tpu_custom_call.1} parent=39 // pred_check_branch
          %474 = sbr.rel (%p472) target = $region60
        $region59: #{tpu_custom_call.1} parent=39 // pred_region
          %p475 = scmp.lt.s32.totalorder %s34, 2
          %s476 = scalar_select %p475, %s34, 2
          %s477 = scalar_lea.vmem %s6, %s476
        $region60: #{tpu_custom_call.1} parent=39 // pred_fallthru
          _
        // Predicated region
        $region61: #{tpu_custom_call.1} parent=39 // pred_check
          %p478 = pneg %p210
        $region62: #{tpu_custom_call.1} parent=39 // pred_check_branch
          %480 = sbr.rel (%p478) target = $region64
        $region63: #{tpu_custom_call.1} parent=39 // pred_region
          %p481 = scmp.lt.s32.totalorder %s34, 2
          %s482 = scalar_select %p481, %s34, 2
          %s483 = scalar_lea.vmem %s7, %s482
        $region64: #{tpu_custom_call.1} parent=39 // pred_fallthru
          _
        // Predicated region
        $region65: #{tpu_custom_call.1} parent=39 // pred_check
          %p484 = pneg %p236
        $region66: #{tpu_custom_call.1} parent=39 // pred_check_branch
          %486 = sbr.rel (%p484) target = $region68
        $region67: #{tpu_custom_call.1} parent=39 // pred_region
          %p487 = scmp.lt.s32.totalorder %s34, 2
          %s488 = scalar_select %p487, %s34, 2
          %s489 = scalar_lea.vmem %s8, %s488
        $region68: #{tpu_custom_call.1} parent=39 // pred_fallthru
          _
      $region40: #{tpu_custom_call.1} parent=5 // pred_fallthru
        _
      %p490 = scmp.le.s32.totalorder 1, %s27
      %p491 = scmp.lt.s32.totalorder %s27, 4
      %p492 = pnand %p490, %p491
      %p493 = pneg %p492
      // Predicated region
      $region69: #{tpu_custom_call.1} parent=5 // pred_check
        _
      $region70: #{tpu_custom_call.1} parent=5 // pred_check_branch
        %495 = sbr.rel (%p492) target = $region72
      $region71: #{tpu_custom_call.1} parent=5 // pred_region
        %s496 = ssub.s32 %s27, 1
        %s497 = sand.u32 %s73, 1
        %s498 = scalar_lea.sflag [#allocation5], %s497
        %s499 = sand.u32 %s73, 1
        %s500 = smul.addr %s499, 8
        %s501 = scalar_lea.vmem [#allocation4], %s500
        // Predicated region
        $region73: #{tpu_custom_call.1} parent=71 // pred_check
          %p502 = pneg %p86
        $region74: #{tpu_custom_call.1} parent=71 // pred_check_branch
          %504 = sbr.rel (%p502) target = $region76
        $region75: #{tpu_custom_call.1} parent=71 // pred_region
          %505 = dma.done %s498, 128
        $region76: #{tpu_custom_call.1} parent=71 // pred_fallthru
          _
        %s506 = sand.u32 %s32, 1
        %s507 = scalar_lea.sflag [#allocation8], %s506
        %s508 = sand.u32 %s151, 1
        %s509 = smul.addr %s508, 128
        %s510 = scalar_lea.vmem [#allocation7], %s509
        // Predicated region
        $region77: #{tpu_custom_call.1} parent=71 // pred_check
          %p511 = pneg %p164
        $region78: #{tpu_custom_call.1} parent=71 // pred_check_branch
          %513 = sbr.rel (%p511) target = $region80
        $region79: #{tpu_custom_call.1} parent=71 // pred_region
          %514 = dma.done %s507, 2048
        $region80: #{tpu_custom_call.1} parent=71 // pred_fallthru
          _
        // Predicated region
        $region81: #{tpu_custom_call.1} parent=71 // pred_check
          %p515 = pneg %p326
        $region82: #{tpu_custom_call.1} parent=71 // pred_check_branch
          %517 = sbr.rel (%p515) target = $region84
        $region83: #{tpu_custom_call.1} parent=71 // pred_region
          %518 = dma.done [#allocation8], 4096
        $region84: #{tpu_custom_call.1} parent=71 // pred_fallthru
          _
        %p519 = pneg %p60
        %p520 = pneg %p57
        %s521 = sand.u32 %s73, 1
        %s522 = scalar_lea.sflag [#allocation5], %s521
        %s523 = sand.u32 %s73, 1
        %s524 = smul.addr %s523, 8
        %s525 = scalar_lea.vmem [#allocation4], %s524
        %p526 = pneg %p86
        %p527 = pneg %p83
        %p528 = scmp.lt.s32.totalorder %s36, 2
        %s529 = scalar_select %p528, %s36, 2
        %s530 = smul.addr %s529, 32
        %s531 = smul.addr %s530, 4
        %s532 = scalar_lea.vmem %s3, %s531
        %p533 = pneg %p112
        %p534 = pneg %p109
        %p535 = scmp.lt.s32.totalorder %s36, 2
        %s536 = scalar_select %p535, %s36, 2
        %s537 = smul.addr %s536, 2
        %s538 = scalar_lea.vmem %s4, %s537
        %p539 = pneg %p138
        %p540 = pneg %p135
        %s541 = sand.u32 %s32, 1
        %s542 = scalar_lea.sflag [#allocation8], %s541
        %s543 = sand.u32 %s151, 1
        %s544 = smul.addr %s543, 128
        %s545 = scalar_lea.vmem [#allocation7], %s544
        %p546 = pneg %p164
        %p547 = pneg %p161
        %p548 = scmp.lt.s32.totalorder %s36, 2
        %s549 = scalar_select %p548, %s36, 2
        %s550 = scalar_lea.vmem %s6, %s549
        %p551 = pneg %p190
        %p552 = pneg %p187
        %p553 = scmp.lt.s32.totalorder %s36, 2
        %s554 = scalar_select %p553, %s36, 2
        %s555 = scalar_lea.vmem %s7, %s554
        %p556 = pneg %p216
        %p557 = pneg %p213
        %p558 = scmp.lt.s32.totalorder %s36, 2
        %s559 = scalar_select %p558, %s36, 2
        %s560 = scalar_lea.vmem %s8, %s559
        %p561 = pneg %p242
        %p562 = pneg %p239
        %p563 = pneg %p263
        %p564 = pneg %p260
        %p565 = pneg %p284
        %p566 = pneg %p281
        %p567 = pneg %p305
        %p568 = pneg %p302
        %p569 = pneg %p326
        %p570 = pneg %p323
        %p571 = pneg %p347
        %p572 = pneg %p344
        %p573 = pneg %p368
        %p574 = pneg %p365
        %p575 = scmp.lt.s32.totalorder %s36, 2
        %s576 = scalar_select %p575, %s36, 2
        %s577 = smul.addr %s576, 32
        %s578 = smul.addr %s577, 4
        %s579 = scalar_lea.vmem %s3, %s578
        %p580 = scmp.lt.s32.totalorder %s36, 2
        %s581 = scalar_select %p580, %s36, 2
        %s582 = smul.addr %s581, 2
        %s583 = scalar_lea.vmem %s4, %s582
        %p584 = scmp.lt.s32.totalorder %s36, 2
        %s585 = scalar_select %p584, %s36, 2
        %s586 = scalar_lea.vmem %s6, %s585
        %p587 = scmp.lt.s32.totalorder %s36, 2
        %s588 = scalar_select %p587, %s36, 2
        %s589 = scalar_lea.vmem %s7, %s588
        %p590 = scmp.lt.s32.totalorder %s36, 2
        %s591 = scalar_select %p590, %s36, 2
        %s592 = scalar_lea.vmem %s8, %s591
        %p594 = scmp.lt.s32.totalorder %s36, 0
        %s595 = ssub.s32 0, %s36
        %s596 = scalar_select %p594, %s595, %s36
        %s597 = sand.u32 %s596, 1
        %s598 = ssub.s32 0, %s597
        %s599 = scalar_select %p594, %s598, %s597
        %s600 = ssub.s32 1, %s599
        %p601 = scmp.eq.s32.totalorder %s36, 0
        %p602 = scmp.eq.s32.totalorder %s37, 0
        %p603 = pnand %p601, %p602
        %p604 = pneg %p603
        // Predicated region
        $region85: #{tpu_custom_call.1} parent=71 // pred_check
          _
        $region86: #{tpu_custom_call.1} parent=71 // pred_check_branch
          %606 = sbr.rel (%p603) target = $region88
        $region87: #{tpu_custom_call.1} parent=71 // pred_region
          // Predicated region
          $region89: #{tpu_custom_call.1} parent=87 // pred_check
            _
          $region90: #{tpu_custom_call.1} parent=87 // pred_check_branch
            %608 = sbr.rel target = $region92
          $region91: #{tpu_custom_call.1} parent=87 // pred_region
            %609 = sst [smem:[#allocation13]] [#allocation12]
            %610 = sst [smem:[#allocation14]] [#allocation11]
          $region92: #{tpu_custom_call.1} parent=87 // pred_fallthru
            _
          %612 = shalt.err (0)
          %s614 = sshll.u32 [#allocation2], 4
          %s615 = int_to_ptr.vmem [resolvable:$true] %s614
          %617 = dma.hbm_to_vmem [thread:$0]  %s1, 2176, %s615, [#allocation3]
          %s618 = smul.u32 4, 34
          %s619 = smul.u32 %s618, 1
          %s620 = sshll.u32 %s619, 4
          %621 = dma.done [#allocation3], %s620
        $region88: #{tpu_custom_call.1} parent=71 // pred_fallthru
          _
        // Predicated region
        $region93: #{tpu_custom_call.1} parent=71 // pred_check
          %p622 = pneg %p602
        $region94: #{tpu_custom_call.1} parent=71 // pred_check_branch
          %624 = sbr.rel (%p622) target = $region96
        $region95: #{tpu_custom_call.1} parent=71 // pred_region
          %v625 = vld [vmem:[%s501] sm:$0xf]
          %v626 = vld [vmem:[%s501 + $0x4] sm:$0xf]
          %s627 = smul.u32 %s599, 34
          %s628 = smul.addr %s627, 4
          %s629 = scalar_lea.vmem [#allocation2], %s628
          %630 = vst [vmem:[%s629 + $0x80] sm:$0xf] %v625
          %631 = vst [vmem:[%s629 + $0x84] sm:$0xf] %v626
        $region96: #{tpu_custom_call.1} parent=71 // pred_fallthru
          _
        %s632 = smul.u32 %s37, 256
        %s633 = sshra.s32 %s632, 3
        %s634 = sand.u32 %s632, 7
        %s635 = smul.u32 %s633, 3
        %s636 = smul.addr %s635, 4
        %s637 = scalar_lea.vmem %s0, %s636
        %v638 = vld [vmem:[%s637] sm:$0xff]
        %v639 = vld [vmem:[%s637 + $0x8] sm:$0xf]
        %v640 = vld [vmem:[%s637 + $0xc] sm:$0xff]
        %v641 = vld [vmem:[%s637 + $0x14] sm:$0xf]
        %v642 = vld [vmem:[%s637 + $0x18] sm:$0xff]
        %v643 = vld [vmem:[%s637 + $0x20] sm:$0xf]
        %v644 = vld [vmem:[%s637 + $0x24] sm:$0xff]
        %v645 = vld [vmem:[%s637 + $0x2c] sm:$0xf]
        %v646 = vld [vmem:[%s637 + $0x30] sm:$0xff]
        %v647 = vld [vmem:[%s637 + $0x38] sm:$0xf]
        %v648 = vld [vmem:[%s637 + $0x3c] sm:$0xff]
        %v649 = vld [vmem:[%s637 + $0x44] sm:$0xf]
        %v650 = vld [vmem:[%s637 + $0x48] sm:$0xff]
        %v651 = vld [vmem:[%s637 + $0x50] sm:$0xf]
        %v652 = vld [vmem:[%s637 + $0x54] sm:$0xff]
        %v653 = vld [vmem:[%s637 + $0x5c] sm:$0xf]
        %v654 = vld [vmem:[%s637 + $0x60] sm:$0xff]
        %v655 = vld [vmem:[%s637 + $0x68] sm:$0xf]
        %v656 = vld [vmem:[%s637 + $0x6c] sm:$0xff]
        %v657 = vld [vmem:[%s637 + $0x74] sm:$0xf]
        %v658 = vld [vmem:[%s637 + $0x78] sm:$0xff]
        %v659 = vld [vmem:[%s637 + $0x80] sm:$0xf]
        %v660 = vld [vmem:[%s637 + $0x84] sm:$0xff]
        %v661 = vld [vmem:[%s637 + $0x8c] sm:$0xf]
        %v662 = vld [vmem:[%s637 + $0x90] sm:$0xff]
        %v663 = vld [vmem:[%s637 + $0x98] sm:$0xf]
        %v664 = vld [vmem:[%s637 + $0x9c] sm:$0xff]
        %v665 = vld [vmem:[%s637 + $0xa4] sm:$0xf]
        %v666 = vld [vmem:[%s637 + $0xa8] sm:$0xff]
        %v667 = vld [vmem:[%s637 + $0xb0] sm:$0xf]
        %v668 = vld [vmem:[%s637 + $0xb4] sm:$0xff]
        %v669 = vld [vmem:[%s637 + $0xbc] sm:$0xf]
        %v670 = vld [vmem:[%s637 + $0xc0] sm:$0xff]
        %v671 = vld [vmem:[%s637 + $0xc8] sm:$0xf]
        %v672 = vld [vmem:[%s637 + $0xcc] sm:$0xff]
        %v673 = vld [vmem:[%s637 + $0xd4] sm:$0xf]
        %v674 = vld [vmem:[%s637 + $0xd8] sm:$0xff]
        %v675 = vld [vmem:[%s637 + $0xe0] sm:$0xf]
        %v676 = vld [vmem:[%s637 + $0xe4] sm:$0xff]
        %v677 = vld [vmem:[%s637 + $0xec] sm:$0xf]
        %v678 = vld [vmem:[%s637 + $0xf0] sm:$0xff]
        %v679 = vld [vmem:[%s637 + $0xf8] sm:$0xf]
        %v680 = vld [vmem:[%s637 + $0xfc] sm:$0xff]
        %v681 = vld [vmem:[%s637 + $0x104] sm:$0xf]
        %v682 = vld [vmem:[%s637 + $0x108] sm:$0xff]
        %v683 = vld [vmem:[%s637 + $0x110] sm:$0xf]
        %v684 = vld [vmem:[%s637 + $0x114] sm:$0xff]
        %v685 = vld [vmem:[%s637 + $0x11c] sm:$0xf]
        %v686 = vld [vmem:[%s637 + $0x120] sm:$0xff]
        %v687 = vld [vmem:[%s637 + $0x128] sm:$0xf]
        %v688 = vld [vmem:[%s637 + $0x12c] sm:$0xff]
        %v689 = vld [vmem:[%s637 + $0x134] sm:$0xf]
        %v690 = vld [vmem:[%s637 + $0x138] sm:$0xff]
        %v691 = vld [vmem:[%s637 + $0x140] sm:$0xf]
        %v692 = vld [vmem:[%s637 + $0x144] sm:$0xff]
        %v693 = vld [vmem:[%s637 + $0x14c] sm:$0xf]
        %v694 = vld [vmem:[%s637 + $0x150] sm:$0xff]
        %v695 = vld [vmem:[%s637 + $0x158] sm:$0xf]
        %v696 = vld [vmem:[%s637 + $0x15c] sm:$0xff]
        %v697 = vld [vmem:[%s637 + $0x164] sm:$0xf]
        %v698 = vld [vmem:[%s637 + $0x168] sm:$0xff]
        %v699 = vld [vmem:[%s637 + $0x170] sm:$0xf]
        %v700 = vld [vmem:[%s637 + $0x174] sm:$0xff]
        %v701 = vld [vmem:[%s637 + $0x17c] sm:$0xf]
        %s702 = smul.u32 %s599, 34
        %s703 = smul.addr %s702, 4
        %s704 = scalar_lea.vmem [#allocation2], %s703
        %v705 = vld [vmem:[%s704] sm:$0xf]
        %v706 = vld [vmem:[%s704 + $0x4] sm:$0xf]
        %v707 = vld [vmem:[%s704 + $0x8] sm:$0xf]
        %v708 = vld [vmem:[%s704 + $0xc] sm:$0xf]
        %v709 = vld [vmem:[%s704 + $0x10] sm:$0xf]
        %v710 = vld [vmem:[%s704 + $0x14] sm:$0xf]
        %v711 = vld [vmem:[%s704 + $0x18] sm:$0xf]
        %v712 = vld [vmem:[%s704 + $0x1c] sm:$0xf]
        %v713 = vld [vmem:[%s704 + $0x20] sm:$0xf]
        %v714 = vld [vmem:[%s704 + $0x24] sm:$0xf]
        %v715 = vld [vmem:[%s704 + $0x28] sm:$0xf]
        %v716 = vld [vmem:[%s704 + $0x2c] sm:$0xf]
        %v717 = vld [vmem:[%s704 + $0x30] sm:$0xf]
        %v718 = vld [vmem:[%s704 + $0x34] sm:$0xf]
        %v719 = vld [vmem:[%s704 + $0x38] sm:$0xf]
        %v720 = vld [vmem:[%s704 + $0x3c] sm:$0xf]
        %v721 = vld [vmem:[%s704 + $0x40] sm:$0xf]
        %v722 = vld [vmem:[%s704 + $0x44] sm:$0xf]
        %v723 = vld [vmem:[%s704 + $0x48] sm:$0xf]
        %v724 = vld [vmem:[%s704 + $0x4c] sm:$0xf]
        %v725 = vld [vmem:[%s704 + $0x50] sm:$0xf]
        %v726 = vld [vmem:[%s704 + $0x54] sm:$0xf]
        %v727 = vld [vmem:[%s704 + $0x58] sm:$0xf]
        %v728 = vld [vmem:[%s704 + $0x5c] sm:$0xf]
        %v729 = vld [vmem:[%s704 + $0x60] sm:$0xf]
        %v730 = vld [vmem:[%s704 + $0x64] sm:$0xf]
        %v731 = vld [vmem:[%s704 + $0x68] sm:$0xf]
        %v732 = vld [vmem:[%s704 + $0x6c] sm:$0xf]
        %v733 = vld [vmem:[%s704 + $0x70] sm:$0xf]
        %v734 = vld [vmem:[%s704 + $0x74] sm:$0xf]
        %v735 = vld [vmem:[%s704 + $0x78] sm:$0xf]
        %v736 = vld [vmem:[%s704 + $0x7c] sm:$0xf]
        %v737 = vld [vmem:[%s704 + $0x80] sm:$0xf]
        %v738 = vld [vmem:[%s704 + $0x84] sm:$0xf]
        %v803 = vunpack.c.l.b16 %v638
        %v804 = vunpack.c.h.b16 %v638
        %v805 = vunpack.c.l.b16 %v639
        %v806 = vunpack.c.l.b16 %v640
        %v807 = vunpack.c.h.b16 %v640
        %v808 = vunpack.c.l.b16 %v641
        %v809 = vunpack.c.l.b16 %v642
        %v810 = vunpack.c.h.b16 %v642
        %v811 = vunpack.c.l.b16 %v643
        %v812 = vunpack.c.l.b16 %v644
        %v813 = vunpack.c.h.b16 %v644
        %v814 = vunpack.c.l.b16 %v645
        %v815 = vunpack.c.l.b16 %v646
        %v816 = vunpack.c.h.b16 %v646
        %v817 = vunpack.c.l.b16 %v647
        %v818 = vunpack.c.l.b16 %v648
        %v819 = vunpack.c.h.b16 %v648
        %v820 = vunpack.c.l.b16 %v649
        %v821 = vunpack.c.l.b16 %v650
        %v822 = vunpack.c.h.b16 %v650
        %v823 = vunpack.c.l.b16 %v651
        %v824 = vunpack.c.l.b16 %v652
        %v825 = vunpack.c.h.b16 %v652
        %v826 = vunpack.c.l.b16 %v653
        %v827 = vunpack.c.l.b16 %v654
        %v828 = vunpack.c.h.b16 %v654
        %v829 = vunpack.c.l.b16 %v655
        %v830 = vunpack.c.l.b16 %v656
        %v831 = vunpack.c.h.b16 %v656
        %v832 = vunpack.c.l.b16 %v657
        %v833 = vunpack.c.l.b16 %v658
        %v834 = vunpack.c.h.b16 %v658
        %v835 = vunpack.c.l.b16 %v659
        %v836 = vunpack.c.l.b16 %v660
        %v837 = vunpack.c.h.b16 %v660
        %v838 = vunpack.c.l.b16 %v661
        %v839 = vunpack.c.l.b16 %v662
        %v840 = vunpack.c.h.b16 %v662
        %v841 = vunpack.c.l.b16 %v663
        %v842 = vunpack.c.l.b16 %v664
        %v843 = vunpack.c.h.b16 %v664
        %v844 = vunpack.c.l.b16 %v665
        %v845 = vunpack.c.l.b16 %v666
        %v846 = vunpack.c.h.b16 %v666
        %v847 = vunpack.c.l.b16 %v667
        %v848 = vunpack.c.l.b16 %v668
        %v849 = vunpack.c.h.b16 %v668
        %v850 = vunpack.c.l.b16 %v669
        %v851 = vunpack.c.l.b16 %v670
        %v852 = vunpack.c.h.b16 %v670
        %v853 = vunpack.c.l.b16 %v671
        %v854 = vunpack.c.l.b16 %v672
        %v855 = vunpack.c.h.b16 %v672
        %v856 = vunpack.c.l.b16 %v673
        %v857 = vunpack.c.l.b16 %v674
        %v858 = vunpack.c.h.b16 %v674
        %v859 = vunpack.c.l.b16 %v675
        %v860 = vunpack.c.l.b16 %v676
        %v861 = vunpack.c.h.b16 %v676
        %v862 = vunpack.c.l.b16 %v677
        %v863 = vunpack.c.l.b16 %v678
        %v864 = vunpack.c.h.b16 %v678
        %v865 = vunpack.c.l.b16 %v679
        %v866 = vunpack.c.l.b16 %v680
        %v867 = vunpack.c.h.b16 %v680
        %v868 = vunpack.c.l.b16 %v681
        %v869 = vunpack.c.l.b16 %v682
        %v870 = vunpack.c.h.b16 %v682
        %v871 = vunpack.c.l.b16 %v683
        %v872 = vunpack.c.l.b16 %v684
        %v873 = vunpack.c.h.b16 %v684
        %v874 = vunpack.c.l.b16 %v685
        %v875 = vunpack.c.l.b16 %v686
        %v876 = vunpack.c.h.b16 %v686
        %v877 = vunpack.c.l.b16 %v687
        %v878 = vunpack.c.l.b16 %v688
        %v879 = vunpack.c.h.b16 %v688
        %v880 = vunpack.c.l.b16 %v689
        %v881 = vunpack.c.l.b16 %v690
        %v882 = vunpack.c.h.b16 %v690
        %v883 = vunpack.c.l.b16 %v691
        %v884 = vunpack.c.l.b16 %v692
        %v885 = vunpack.c.h.b16 %v692
        %v886 = vunpack.c.l.b16 %v693
        %v887 = vunpack.c.l.b16 %v694
        %v888 = vunpack.c.h.b16 %v694
        %v889 = vunpack.c.l.b16 %v695
        %v890 = vunpack.c.l.b16 %v696
        %v891 = vunpack.c.h.b16 %v696
        %v892 = vunpack.c.l.b16 %v697
        %v893 = vunpack.c.l.b16 %v698
        %v894 = vunpack.c.h.b16 %v698
        %v895 = vunpack.c.l.b16 %v699
        %v896 = vunpack.c.l.b16 %v700
        %v897 = vunpack.c.h.b16 %v700
        %v898 = vunpack.c.l.b16 %v701
        %v899 = vpack.c.b16 %v806, %v803
        %v900 = vpack.c.b16 %v807, %v804
        %v901 = vpack.c.b16 %v808, %v805
        %v902 = vpack.c.b16 %v812, %v809
        %v903 = vpack.c.b16 %v813, %v810
        %v904 = vpack.c.b16 %v814, %v811
        %v905 = vpack.c.b16 %v818, %v815
        %v906 = vpack.c.b16 %v819, %v816
        %v907 = vpack.c.b16 %v820, %v817
        %v908 = vpack.c.b16 %v824, %v821
        %v909 = vpack.c.b16 %v825, %v822
        %v910 = vpack.c.b16 %v826, %v823
        %v911 = vpack.c.b16 %v830, %v827
        %v912 = vpack.c.b16 %v831, %v828
        %v913 = vpack.c.b16 %v832, %v829
        %v914 = vpack.c.b16 %v836, %v833
        %v915 = vpack.c.b16 %v837, %v834
        %v916 = vpack.c.b16 %v838, %v835
        %v917 = vpack.c.b16 %v842, %v839
        %v918 = vpack.c.b16 %v843, %v840
        %v919 = vpack.c.b16 %v844, %v841
        %v920 = vpack.c.b16 %v848, %v845
        %v921 = vpack.c.b16 %v849, %v846
        %v922 = vpack.c.b16 %v850, %v847
        %v923 = vpack.c.b16 %v854, %v851
        %v924 = vpack.c.b16 %v855, %v852
        %v925 = vpack.c.b16 %v856, %v853
        %v926 = vpack.c.b16 %v860, %v857
        %v927 = vpack.c.b16 %v861, %v858
        %v928 = vpack.c.b16 %v862, %v859
        %v929 = vpack.c.b16 %v866, %v863
        %v930 = vpack.c.b16 %v867, %v864
        %v931 = vpack.c.b16 %v868, %v865
        %v932 = vpack.c.b16 %v872, %v869
        %v933 = vpack.c.b16 %v873, %v870
        %v934 = vpack.c.b16 %v874, %v871
        %v935 = vpack.c.b16 %v878, %v875
        %v936 = vpack.c.b16 %v879, %v876
        %v937 = vpack.c.b16 %v880, %v877
        %v938 = vpack.c.b16 %v884, %v881
        %v939 = vpack.c.b16 %v885, %v882
        %v940 = vpack.c.b16 %v886, %v883
        %v941 = vpack.c.b16 %v890, %v887
        %v942 = vpack.c.b16 %v891, %v888
        %v943 = vpack.c.b16 %v892, %v889
        %v944 = vpack.c.b16 %v896, %v893
        %v945 = vpack.c.b16 %v897, %v894
        %v946 = vpack.c.b16 %v898, %v895
        %v1013 = vunpack.c.l.b16 %v705
        %v1014 = vunpack.c.l.b16 %v706
        %v1015 = vunpack.c.l.b16 %v707
        %v1016 = vunpack.c.l.b16 %v708
        %v1017 = vunpack.c.l.b16 %v709
        %v1018 = vunpack.c.l.b16 %v710
        %v1019 = vunpack.c.l.b16 %v711
        %v1020 = vunpack.c.l.b16 %v712
        %v1021 = vunpack.c.l.b16 %v713
        %v1022 = vunpack.c.l.b16 %v714
        %v1023 = vunpack.c.l.b16 %v715
        %v1024 = vunpack.c.l.b16 %v716
        %v1025 = vunpack.c.l.b16 %v717
        %v1026 = vunpack.c.l.b16 %v718
        %v1027 = vunpack.c.l.b16 %v719
        %v1028 = vunpack.c.l.b16 %v720
        %v1029 = vunpack.c.l.b16 %v721
        %v1030 = vunpack.c.l.b16 %v722
        %v1031 = vunpack.c.l.b16 %v723
        %v1032 = vunpack.c.l.b16 %v724
        %v1033 = vunpack.c.l.b16 %v725
        %v1034 = vunpack.c.l.b16 %v726
        %v1035 = vunpack.c.l.b16 %v727
        %v1036 = vunpack.c.l.b16 %v728
        %v1037 = vunpack.c.l.b16 %v729
        %v1038 = vunpack.c.l.b16 %v730
        %v1039 = vunpack.c.l.b16 %v731
        %v1040 = vunpack.c.l.b16 %v732
        %v1041 = vunpack.c.l.b16 %v733
        %v1042 = vunpack.c.l.b16 %v734
        %v1043 = vunpack.c.l.b16 %v735
        %v1044 = vunpack.c.l.b16 %v736
        %v1045 = vunpack.c.l.b16 %v737
        %v1046 = vunpack.c.l.b16 %v738
        %v1047 = vpack.c.b16 %v1014, %v1013
        %v1048 = vpack.c.b16 %v1016, %v1015
        %v1049 = vpack.c.b16 %v1018, %v1017
        %v1050 = vpack.c.b16 %v1020, %v1019
        %v1051 = vpack.c.b16 %v1022, %v1021
        %v1052 = vpack.c.b16 %v1024, %v1023
        %v1053 = vpack.c.b16 %v1026, %v1025
        %v1054 = vpack.c.b16 %v1028, %v1027
        %v1055 = vpack.c.b16 %v1030, %v1029
        %v1056 = vpack.c.b16 %v1032, %v1031
        %v1057 = vpack.c.b16 %v1034, %v1033
        %v1058 = vpack.c.b16 %v1036, %v1035
        %v1059 = vpack.c.b16 %v1038, %v1037
        %v1060 = vpack.c.b16 %v1040, %v1039
        %v1061 = vpack.c.b16 %v1042, %v1041
        %v1062 = vpack.c.b16 %v1044, %v1043
        %v1063 = vpack.c.b16 %v1046, %v1045
        %vm1081 = vcmask 130048
        %v1083 = vsel %vm1081, %v901, 0
        %v1086 = vsel %vm1081, %v904, 0
        %v1089 = vsel %vm1081, %v907, 0
        %v1092 = vsel %vm1081, %v910, 0
        %v1095 = vsel %vm1081, %v913, 0
        %v1098 = vsel %vm1081, %v916, 0
        %v1101 = vsel %vm1081, %v919, 0
        %v1104 = vsel %vm1081, %v922, 0
        %v1107 = vsel %vm1081, %v925, 0
        %v1110 = vsel %vm1081, %v928, 0
        %v1113 = vsel %vm1081, %v931, 0
        %v1116 = vsel %vm1081, %v934, 0
        %v1119 = vsel %vm1081, %v937, 0
        %v1122 = vsel %vm1081, %v940, 0
        %v1125 = vsel %vm1081, %v943, 0
        %v1128 = vsel %vm1081, %v946, 0
        %1130 = vmatprep.subr.bf16.mxu0 0
        %1131 = vmatpush1.bf16.msra.mxu0 %v1054
        %1132 = vmatprep.subr.bf16.mxu0 0
        %1133 = vmatpush1.bf16.msra.mxu0 %v1053
        %1134 = vmatprep.subr.bf16.mxu0 0
        %1135 = vmatpush1.bf16.msra.mxu0 %v1052
        %1136 = vmatprep.subr.bf16.mxu0 0
        %1137 = vmatpush1.bf16.msra.mxu0 %v1051
        %1138 = vmatprep.subr.bf16.mxu0 0
        %1139 = vmatpush1.bf16.msra.mxu0 %v1050
        %1140 = vmatprep.subr.bf16.mxu0 0
        %1141 = vmatpush1.bf16.msra.mxu0 %v1049
        %1142 = vmatprep.subr.bf16.mxu0 0
        %1143 = vmatpush1.bf16.msra.mxu0 %v1048
        %1144 = vmatprep.subr.bf16.mxu0 0
        %1145 = vmatpush1.bf16.msra.mxu0 %v1047
        %1146 = vmatprep.subr.bf16.mxu0 0
        %1147 = vmatpush2.bf16.msra.mxu0 %v1062
        %1148 = vmatprep.subr.bf16.mxu0 0
        %1149 = vmatpush2.bf16.msra.mxu0 %v1061
        %1150 = vmatprep.subr.bf16.mxu0 0
        %1151 = vmatpush2.bf16.msra.mxu0 %v1060
        %1152 = vmatprep.subr.bf16.mxu0 0
        %1153 = vmatpush2.bf16.msra.mxu0 %v1059
        %1154 = vmatprep.subr.bf16.mxu0 0
        %1155 = vmatpush2.bf16.msra.mxu0 %v1058
        %1156 = vmatprep.subr.bf16.mxu0 0
        %1157 = vmatpush2.bf16.msra.mxu0 %v1057
        %1158 = vmatprep.subr.bf16.mxu0 0
        %1159 = vmatpush2.bf16.msra.mxu0 %v1056
        %1160 = vmatprep.subr.bf16.mxu0 0
        %1161 = vmatpush2.bf16.msra.mxu0 %v1055
        %1162 = vmatprep.mubr.bf16.mxu0 %v900
        %1163 = vmatmul.mubr.bf16.gmra.mxu0 %v899
        %v1164 = vpop.f32.mrf.mxu0
        %v1165 = vadd.f32 0.0, %v1164
        %v1166 = vpop.f32.mrf.mxu0
        %v1167 = vpop.f32.mrf.mxu0
        %v1168 = vadd.f32 0.0, %v1167
        %v1169 = vpop.f32.mrf.mxu0
        %1170 = vmatprep.mubr.bf16.mxu0 %v903
        %1171 = vmatmul.mubr.bf16.gmra.mxu0 %v902
        %v1172 = vpop.f32.mrf.mxu0
        %v1173 = vadd.f32 0.0, %v1172
        %v1174 = vpop.f32.mrf.mxu0
        %v1175 = vpop.f32.mrf.mxu0
        %v1176 = vadd.f32 0.0, %v1175
        %v1177 = vpop.f32.mrf.mxu0
        %1178 = vmatprep.mubr.bf16.mxu0 %v906
        %1179 = vmatmul.mubr.bf16.gmra.mxu0 %v905
        %v1180 = vpop.f32.mrf.mxu0
        %v1181 = vadd.f32 0.0, %v1180
        %v1182 = vpop.f32.mrf.mxu0
        %v1183 = vpop.f32.mrf.mxu0
        %v1184 = vadd.f32 0.0, %v1183
        %v1185 = vpop.f32.mrf.mxu0
        %1186 = vmatprep.mubr.bf16.mxu0 %v909
        %1187 = vmatmul.mubr.bf16.gmra.mxu0 %v908
        %v1188 = vpop.f32.mrf.mxu0
        %v1189 = vadd.f32 0.0, %v1188
        %v1190 = vpop.f32.mrf.mxu0
        %v1191 = vpop.f32.mrf.mxu0
        %v1192 = vadd.f32 0.0, %v1191
        %v1193 = vpop.f32.mrf.mxu0
        %1194 = vmatprep.mubr.bf16.mxu0 %v912
        %1195 = vmatmul.mubr.bf16.gmra.mxu0 %v911
        %v1196 = vpop.f32.mrf.mxu0
        %v1197 = vadd.f32 0.0, %v1196
        %v1198 = vpop.f32.mrf.mxu0
        %v1199 = vpop.f32.mrf.mxu0
        %v1200 = vadd.f32 0.0, %v1199
        %v1201 = vpop.f32.mrf.mxu0
        %1202 = vmatprep.mubr.bf16.mxu0 %v915
        %1203 = vmatmul.mubr.bf16.gmra.mxu0 %v914
        %v1204 = vpop.f32.mrf.mxu0
        %v1205 = vadd.f32 0.0, %v1204
        %v1206 = vpop.f32.mrf.mxu0
        %v1207 = vpop.f32.mrf.mxu0
        %v1208 = vadd.f32 0.0, %v1207
        %v1209 = vpop.f32.mrf.mxu0
        %1210 = vmatprep.mubr.bf16.mxu0 %v918
        %1211 = vmatmul.mubr.bf16.gmra.mxu0 %v917
        %v1212 = vpop.f32.mrf.mxu0
        %v1213 = vadd.f32 0.0, %v1212
        %v1214 = vpop.f32.mrf.mxu0
        %v1215 = vpop.f32.mrf.mxu0
        %v1216 = vadd.f32 0.0, %v1215
        %v1217 = vpop.f32.mrf.mxu0
        %1218 = vmatprep.mubr.bf16.mxu0 %v921
        %1219 = vmatmul.mubr.bf16.gmra.mxu0 %v920
        %v1220 = vpop.f32.mrf.mxu0
        %v1221 = vadd.f32 0.0, %v1220
        %v1222 = vpop.f32.mrf.mxu0
        %v1223 = vpop.f32.mrf.mxu0
        %v1224 = vadd.f32 0.0, %v1223
        %v1225 = vpop.f32.mrf.mxu0
        %1226 = vmatprep.mubr.bf16.mxu0 %v924
        %1227 = vmatmul.mubr.bf16.gmra.mxu0 %v923
        %v1228 = vpop.f32.mrf.mxu0
        %v1229 = vadd.f32 0.0, %v1228
        %v1230 = vpop.f32.mrf.mxu0
        %v1231 = vpop.f32.mrf.mxu0
        %v1232 = vadd.f32 0.0, %v1231
        %v1233 = vpop.f32.mrf.mxu0
        %1234 = vmatprep.mubr.bf16.mxu0 %v927
        %1235 = vmatmul.mubr.bf16.gmra.mxu0 %v926
        %v1236 = vpop.f32.mrf.mxu0
        %v1237 = vadd.f32 0.0, %v1236
        %v1238 = vpop.f32.mrf.mxu0
        %v1239 = vpop.f32.mrf.mxu0
        %v1240 = vadd.f32 0.0, %v1239
        %v1241 = vpop.f32.mrf.mxu0
        %1242 = vmatprep.mubr.bf16.mxu0 %v930
        %1243 = vmatmul.mubr.bf16.gmra.mxu0 %v929
        %v1244 = vpop.f32.mrf.mxu0
        %v1245 = vadd.f32 0.0, %v1244
        %v1246 = vpop.f32.mrf.mxu0
        %v1247 = vpop.f32.mrf.mxu0
        %v1248 = vadd.f32 0.0, %v1247
        %v1249 = vpop.f32.mrf.mxu0
        %1250 = vmatprep.mubr.bf16.mxu0 %v933
        %1251 = vmatmul.mubr.bf16.gmra.mxu0 %v932
        %v1252 = vpop.f32.mrf.mxu0
        %v1253 = vadd.f32 0.0, %v1252
        %v1254 = vpop.f32.mrf.mxu0
        %v1255 = vpop.f32.mrf.mxu0
        %v1256 = vadd.f32 0.0, %v1255
        %v1257 = vpop.f32.mrf.mxu0
        %1258 = vmatprep.mubr.bf16.mxu0 %v936
        %1259 = vmatmul.mubr.bf16.gmra.mxu0 %v935
        %v1260 = vpop.f32.mrf.mxu0
        %v1261 = vadd.f32 0.0, %v1260
        %v1262 = vpop.f32.mrf.mxu0
        %v1263 = vpop.f32.mrf.mxu0
        %v1264 = vadd.f32 0.0, %v1263
        %v1265 = vpop.f32.mrf.mxu0
        %1266 = vmatprep.mubr.bf16.mxu0 %v939
        %1267 = vmatmul.mubr.bf16.gmra.mxu0 %v938
        %v1268 = vpop.f32.mrf.mxu0
        %v1269 = vadd.f32 0.0, %v1268
        %v1270 = vpop.f32.mrf.mxu0
        %v1271 = vpop.f32.mrf.mxu0
        %v1272 = vadd.f32 0.0, %v1271
        %v1273 = vpop.f32.mrf.mxu0
        %1274 = vmatprep.mubr.bf16.mxu0 %v942
        %1275 = vmatmul.mubr.bf16.gmra.mxu0 %v941
        %v1276 = vpop.f32.mrf.mxu0
        %v1277 = vadd.f32 0.0, %v1276
        %v1278 = vpop.f32.mrf.mxu0
        %v1279 = vpop.f32.mrf.mxu0
        %v1280 = vadd.f32 0.0, %v1279
        %v1281 = vpop.f32.mrf.mxu0
        %1282 = vmatprep.mubr.bf16.mxu0 %v945
        %1283 = vmatmul.mubr.bf16.gmra.mxu0 %v944
        %v1284 = vpop.f32.mrf.mxu0
        %v1285 = vadd.f32 0.0, %v1284
        %v1286 = vpop.f32.mrf.mxu0
        %v1287 = vpop.f32.mrf.mxu0
        %v1288 = vadd.f32 0.0, %v1287
        %v1289 = vpop.f32.mrf.mxu0
        %1290 = vdwg.mxu0
        %1291 = vmatprep.subr.bf16.mxu0 0
        %1292 = vmatpush1.bf16.msra.mxu0 0
        %1293 = vmatprep.subr.bf16.mxu0 0
        %1294 = vmatpush1.bf16.msra.mxu0 0
        %1295 = vmatprep.subr.bf16.mxu0 0
        %1296 = vmatpush1.bf16.msra.mxu0 0
        %1297 = vmatprep.subr.bf16.mxu0 0
        %1298 = vmatpush1.bf16.msra.mxu0 0
        %1299 = vmatprep.subr.bf16.mxu0 0
        %1300 = vmatpush1.bf16.msra.mxu0 0
        %1301 = vmatprep.subr.bf16.mxu0 0
        %1302 = vmatpush1.bf16.msra.mxu0 0
        %1303 = vmatprep.subr.bf16.mxu0 0
        %1304 = vmatpush1.bf16.msra.mxu0 0
        %1305 = vmatprep.subr.bf16.mxu0 0
        %1306 = vmatpush1.bf16.msra.mxu0 %v1063
        %1307 = vmatprep.subr.bf16.mxu0 0
        %1308 = vmatpush2.bf16.msra.mxu0 0
        %1309 = vmatprep.subr.bf16.mxu0 0
        %1310 = vmatpush2.bf16.msra.mxu0 0
        %1311 = vmatprep.subr.bf16.mxu0 0
        %1312 = vmatpush2.bf16.msra.mxu0 0
        %1313 = vmatprep.subr.bf16.mxu0 0
        %1314 = vmatpush2.bf16.msra.mxu0 0
        %1315 = vmatprep.subr.bf16.mxu0 0
        %1316 = vmatpush2.bf16.msra.mxu0 0
        %1317 = vmatprep.subr.bf16.mxu0 0
        %1318 = vmatpush2.bf16.msra.mxu0 0
        %1319 = vmatprep.subr.bf16.mxu0 0
        %1320 = vmatpush2.bf16.msra.mxu0 0
        %1321 = vmatprep.subr.bf16.mxu0 0
        %1322 = vmatpush2.bf16.msra.mxu0 0
        %1323 = vmatprep.mubr.bf16.mxu0 0
        %1324 = vmatmul.mubr.bf16.gmra.mxu0 %v1083
        %v1325 = vpop.f32.mrf.mxu0
        %v1326 = vadd.f32 %v1165, %v1325
        %v1327 = vpop.f32.mrf.mxu0
        %v1328 = vpop.f32.mrf.mxu0
        %v1329 = vadd.f32 %v1168, %v1328
        %v1330 = vpop.f32.mrf.mxu0
        %1331 = vmatprep.mubr.bf16.mxu0 0
        %1332 = vmatmul.mubr.bf16.gmra.mxu0 %v1086
        %v1333 = vpop.f32.mrf.mxu0
        %v1334 = vadd.f32 %v1173, %v1333
        %v1335 = vpop.f32.mrf.mxu0
        %v1336 = vpop.f32.mrf.mxu0
        %v1337 = vadd.f32 %v1176, %v1336
        %v1338 = vpop.f32.mrf.mxu0
        %1339 = vmatprep.mubr.bf16.mxu0 0
        %1340 = vmatmul.mubr.bf16.gmra.mxu0 %v1089
        %v1341 = vpop.f32.mrf.mxu0
        %v1342 = vadd.f32 %v1181, %v1341
        %v1343 = vpop.f32.mrf.mxu0
        %v1344 = vpop.f32.mrf.mxu0
        %v1345 = vadd.f32 %v1184, %v1344
        %v1346 = vpop.f32.mrf.mxu0
        %1347 = vmatprep.mubr.bf16.mxu0 0
        %1348 = vmatmul.mubr.bf16.gmra.mxu0 %v1092
        %v1349 = vpop.f32.mrf.mxu0
        %v1350 = vadd.f32 %v1189, %v1349
        %v1351 = vpop.f32.mrf.mxu0
        %v1352 = vpop.f32.mrf.mxu0
        %v1353 = vadd.f32 %v1192, %v1352
        %v1354 = vpop.f32.mrf.mxu0
        %1355 = vmatprep.mubr.bf16.mxu0 0
        %1356 = vmatmul.mubr.bf16.gmra.mxu0 %v1095
        %v1357 = vpop.f32.mrf.mxu0
        %v1358 = vadd.f32 %v1197, %v1357
        %v1359 = vpop.f32.mrf.mxu0
        %v1360 = vpop.f32.mrf.mxu0
        %v1361 = vadd.f32 %v1200, %v1360
        %v1362 = vpop.f32.mrf.mxu0
        %1363 = vmatprep.mubr.bf16.mxu0 0
        %1364 = vmatmul.mubr.bf16.gmra.mxu0 %v1098
        %v1365 = vpop.f32.mrf.mxu0
        %v1366 = vadd.f32 %v1205, %v1365
        %v1367 = vpop.f32.mrf.mxu0
        %v1368 = vpop.f32.mrf.mxu0
        %v1369 = vadd.f32 %v1208, %v1368
        %v1370 = vpop.f32.mrf.mxu0
        %1371 = vmatprep.mubr.bf16.mxu0 0
        %1372 = vmatmul.mubr.bf16.gmra.mxu0 %v1101
        %v1373 = vpop.f32.mrf.mxu0
        %v1374 = vadd.f32 %v1213, %v1373
        %v1375 = vpop.f32.mrf.mxu0
        %v1376 = vpop.f32.mrf.mxu0
        %v1377 = vadd.f32 %v1216, %v1376
        %v1378 = vpop.f32.mrf.mxu0
        %1379 = vmatprep.mubr.bf16.mxu0 0
        %1380 = vmatmul.mubr.bf16.gmra.mxu0 %v1104
        %v1381 = vpop.f32.mrf.mxu0
        %v1382 = vadd.f32 %v1221, %v1381
        %v1383 = vpop.f32.mrf.mxu0
        %v1384 = vpop.f32.mrf.mxu0
        %v1385 = vadd.f32 %v1224, %v1384
        %v1386 = vpop.f32.mrf.mxu0
        %1387 = vmatprep.mubr.bf16.mxu0 0
        %1388 = vmatmul.mubr.bf16.gmra.mxu0 %v1107
        %v1389 = vpop.f32.mrf.mxu0
        %v1390 = vadd.f32 %v1229, %v1389
        %v1391 = vpop.f32.mrf.mxu0
        %v1392 = vpop.f32.mrf.mxu0
        %v1393 = vadd.f32 %v1232, %v1392
        %v1394 = vpop.f32.mrf.mxu0
        %1395 = vmatprep.mubr.bf16.mxu0 0
        %1396 = vmatmul.mubr.bf16.gmra.mxu0 %v1110
        %v1397 = vpop.f32.mrf.mxu0
        %v1398 = vadd.f32 %v1237, %v1397
        %v1399 = vpop.f32.mrf.mxu0
        %v1400 = vpop.f32.mrf.mxu0
        %v1401 = vadd.f32 %v1240, %v1400
        %v1402 = vpop.f32.mrf.mxu0
        %1403 = vmatprep.mubr.bf16.mxu0 0
        %1404 = vmatmul.mubr.bf16.gmra.mxu0 %v1113
        %v1405 = vpop.f32.mrf.mxu0
        %v1406 = vadd.f32 %v1245, %v1405
        %v1407 = vpop.f32.mrf.mxu0
        %v1408 = vpop.f32.mrf.mxu0
        %v1409 = vadd.f32 %v1248, %v1408
        %v1410 = vpop.f32.mrf.mxu0
        %1411 = vmatprep.mubr.bf16.mxu0 0
        %1412 = vmatmul.mubr.bf16.gmra.mxu0 %v1116
        %v1413 = vpop.f32.mrf.mxu0
        %v1414 = vadd.f32 %v1253, %v1413
        %v1415 = vpop.f32.mrf.mxu0
        %v1416 = vpop.f32.mrf.mxu0
        %v1417 = vadd.f32 %v1256, %v1416
        %v1418 = vpop.f32.mrf.mxu0
        %1419 = vmatprep.mubr.bf16.mxu0 0
        %1420 = vmatmul.mubr.bf16.gmra.mxu0 %v1119
        %v1421 = vpop.f32.mrf.mxu0
        %v1422 = vadd.f32 %v1261, %v1421
        %v1423 = vpop.f32.mrf.mxu0
        %v1424 = vpop.f32.mrf.mxu0
        %v1425 = vadd.f32 %v1264, %v1424
        %v1426 = vpop.f32.mrf.mxu0
        %1427 = vmatprep.mubr.bf16.mxu0 0
        %1428 = vmatmul.mubr.bf16.gmra.mxu0 %v1122
        %v1429 = vpop.f32.mrf.mxu0
        %v1430 = vadd.f32 %v1269, %v1429
        %v1431 = vpop.f32.mrf.mxu0
        %v1432 = vpop.f32.mrf.mxu0
        %v1433 = vadd.f32 %v1272, %v1432
        %v1434 = vpop.f32.mrf.mxu0
        %1435 = vmatprep.mubr.bf16.mxu0 0
        %1436 = vmatmul.mubr.bf16.gmra.mxu0 %v1125
        %v1437 = vpop.f32.mrf.mxu0
        %v1438 = vadd.f32 %v1277, %v1437
        %v1439 = vpop.f32.mrf.mxu0
        %v1440 = vpop.f32.mrf.mxu0
        %v1441 = vadd.f32 %v1280, %v1440
        %v1442 = vpop.f32.mrf.mxu0
        %1443 = vmatprep.mubr.bf16.mxu0 0
        %1444 = vmatmul.mubr.bf16.gmra.mxu0 %v1128
        %v1445 = vpop.f32.mrf.mxu0
        %v1446 = vadd.f32 %v1285, %v1445
        %v1447 = vpop.f32.mrf.mxu0
        %v1448 = vpop.f32.mrf.mxu0
        %v1449 = vadd.f32 %v1288, %v1448
        %v1450 = vpop.f32.mrf.mxu0
        %1451 = vdwg.mxu0
        %v1452 = vpack.c.bf16 %v1329, %v1326
        %v1453 = vpack.c.bf16 %v1337, %v1334
        %v1454 = vpack.c.bf16 %v1345, %v1342
        %v1455 = vpack.c.bf16 %v1353, %v1350
        %v1456 = vpack.c.bf16 %v1361, %v1358
        %v1457 = vpack.c.bf16 %v1369, %v1366
        %v1458 = vpack.c.bf16 %v1377, %v1374
        %v1459 = vpack.c.bf16 %v1385, %v1382
        %v1460 = vpack.c.bf16 %v1393, %v1390
        %v1461 = vpack.c.bf16 %v1401, %v1398
        %v1462 = vpack.c.bf16 %v1409, %v1406
        %v1463 = vpack.c.bf16 %v1417, %v1414
        %v1464 = vpack.c.bf16 %v1425, %v1422
        %v1465 = vpack.c.bf16 %v1433, %v1430
        %v1466 = vpack.c.bf16 %v1441, %v1438
        %v1467 = vpack.c.bf16 %v1449, %v1446
        %v1468 = vld [vmem:[%s579] sm:$0xff]
        %v1469 = vld [vmem:[%s579 + $0x8] sm:$0xff]
        %v1470 = vld [vmem:[%s579 + $0x10] sm:$0xff]
        %v1471 = vld [vmem:[%s579 + $0x18] sm:$0xff]
        %v1472 = vld [vmem:[%s579 + $0x20] sm:$0xff]
        %v1473 = vld [vmem:[%s579 + $0x28] sm:$0xff]
        %v1474 = vld [vmem:[%s579 + $0x30] sm:$0xff]
        %v1475 = vld [vmem:[%s579 + $0x38] sm:$0xff]
        %v1476 = vld [vmem:[%s579 + $0x40] sm:$0xff]
        %v1477 = vld [vmem:[%s579 + $0x48] sm:$0xff]
        %v1478 = vld [vmem:[%s579 + $0x50] sm:$0xff]
        %v1479 = vld [vmem:[%s579 + $0x58] sm:$0xff]
        %v1480 = vld [vmem:[%s579 + $0x60] sm:$0xff]
        %v1481 = vld [vmem:[%s579 + $0x68] sm:$0xff]
        %v1482 = vld [vmem:[%s579 + $0x70] sm:$0xff]
        %v1483 = vld [vmem:[%s579 + $0x78] sm:$0xff]
        %v1484 = vld [vmem:[%s583] sm:$0x3]
        %v1486 = vlaneseq
        %v1487 = vshrl.u32 %v1486, 7
        %v1488 = vsub.s32 0, %v1487
        %v1489 = vrot.slane %v1484, %v1488
        %v1490 = vlaneseq
        %v1491 = vshrl.u32 %v1490, 7
        %v1492 = vsub.s32 1, %v1491
        %v1493 = vrot.slane %v1484, %v1492
        %v1512 = vunpack.c.l.b16 %v1468
        %v1513 = vunpack.c.h.b16 %v1468
        %v1514 = vunpack.c.l.b16 %v1469
        %v1515 = vunpack.c.h.b16 %v1469
        %v1516 = vunpack.c.l.b16 %v1470
        %v1517 = vunpack.c.h.b16 %v1470
        %v1518 = vunpack.c.l.b16 %v1471
        %v1519 = vunpack.c.h.b16 %v1471
        %v1520 = vunpack.c.l.b16 %v1472
        %v1521 = vunpack.c.h.b16 %v1472
        %v1522 = vunpack.c.l.b16 %v1473
        %v1523 = vunpack.c.h.b16 %v1473
        %v1524 = vunpack.c.l.b16 %v1474
        %v1525 = vunpack.c.h.b16 %v1474
        %v1526 = vunpack.c.l.b16 %v1475
        %v1527 = vunpack.c.h.b16 %v1475
        %v1528 = vunpack.c.l.b16 %v1476
        %v1529 = vunpack.c.h.b16 %v1476
        %v1530 = vunpack.c.l.b16 %v1477
        %v1531 = vunpack.c.h.b16 %v1477
        %v1532 = vunpack.c.l.b16 %v1478
        %v1533 = vunpack.c.h.b16 %v1478
        %v1534 = vunpack.c.l.b16 %v1479
        %v1535 = vunpack.c.h.b16 %v1479
        %v1536 = vunpack.c.l.b16 %v1480
        %v1537 = vunpack.c.h.b16 %v1480
        %v1538 = vunpack.c.l.b16 %v1481
        %v1539 = vunpack.c.h.b16 %v1481
        %v1540 = vunpack.c.l.b16 %v1482
        %v1541 = vunpack.c.h.b16 %v1482
        %v1542 = vunpack.c.l.b16 %v1483
        %v1543 = vunpack.c.h.b16 %v1483
        %v1544 = vpack.c.b16 %v1514, %v1512
        %v1545 = vpack.c.b16 %v1515, %v1513
        %v1546 = vpack.c.b16 %v1518, %v1516
        %v1547 = vpack.c.b16 %v1519, %v1517
        %v1548 = vpack.c.b16 %v1522, %v1520
        %v1549 = vpack.c.b16 %v1523, %v1521
        %v1550 = vpack.c.b16 %v1526, %v1524
        %v1551 = vpack.c.b16 %v1527, %v1525
        %v1552 = vpack.c.b16 %v1530, %v1528
        %v1553 = vpack.c.b16 %v1531, %v1529
        %v1554 = vpack.c.b16 %v1534, %v1532
        %v1555 = vpack.c.b16 %v1535, %v1533
        %v1556 = vpack.c.b16 %v1538, %v1536
        %v1557 = vpack.c.b16 %v1539, %v1537
        %v1558 = vpack.c.b16 %v1542, %v1540
        %v1559 = vpack.c.b16 %v1543, %v1541
        %1576 = vmatprep.subr.bf16.mxu0 %v1559
        %1577 = vmatpush1.bf16.msra.mxu0 %v1558
        %1578 = vmatprep.subr.bf16.mxu0 %v1557
        %1579 = vmatpush1.bf16.msra.mxu0 %v1556
        %1580 = vmatprep.subr.bf16.mxu0 %v1555
        %1581 = vmatpush1.bf16.msra.mxu0 %v1554
        %1582 = vmatprep.subr.bf16.mxu0 %v1553
        %1583 = vmatpush1.bf16.msra.mxu0 %v1552
        %1584 = vmatprep.subr.bf16.mxu0 %v1551
        %1585 = vmatpush1.bf16.msra.mxu0 %v1550
        %1586 = vmatprep.subr.bf16.mxu0 %v1549
        %1587 = vmatpush1.bf16.msra.mxu0 %v1548
        %1588 = vmatprep.subr.bf16.mxu0 %v1547
        %1589 = vmatpush1.bf16.msra.mxu0 %v1546
        %1590 = vmatprep.subr.bf16.mxu0 %v1545
        %1591 = vmatpush1.bf16.msra.mxu0 %v1544
        %1592 = vmatprep.subr.bf16.mxu0 0
        %1593 = vmatpush2.bf16.msra.mxu0 0
        %1594 = vmatprep.subr.bf16.mxu0 0
        %1595 = vmatpush2.bf16.msra.mxu0 0
        %1596 = vmatprep.subr.bf16.mxu0 0
        %1597 = vmatpush2.bf16.msra.mxu0 0
        %1598 = vmatprep.subr.bf16.mxu0 0
        %1599 = vmatpush2.bf16.msra.mxu0 0
        %1600 = vmatprep.subr.bf16.mxu0 0
        %1601 = vmatpush2.bf16.msra.mxu0 0
        %1602 = vmatprep.subr.bf16.mxu0 0
        %1603 = vmatpush2.bf16.msra.mxu0 0
        %1604 = vmatprep.subr.bf16.mxu0 0
        %1605 = vmatpush2.bf16.msra.mxu0 0
        %1606 = vmatprep.subr.bf16.mxu0 0
        %1607 = vmatpush2.bf16.msra.mxu0 0
        %1608 = vmatprep.mubr.bf16.mxu0 0
        %1609 = vmatmul.mubr.bf16.gmra.mxu0 %v1452
        %v1610 = vpop.f32.mrf.mxu0
        %v1611 = vadd.f32 %v1489, %v1610
        %v1612 = vpop.f32.mrf.mxu0
        %v1613 = vadd.f32 %v1493, %v1612
        %v1614 = vpop.f32.mrf.mxu0
        %v1615 = vadd.f32 %v1489, %v1614
        %v1616 = vpop.f32.mrf.mxu0
        %v1617 = vadd.f32 %v1493, %v1616
        %1618 = vmatprep.mubr.bf16.mxu0 0
        %1619 = vmatmul.mubr.bf16.gmra.mxu0 %v1453
        %v1620 = vpop.f32.mrf.mxu0
        %v1621 = vadd.f32 %v1489, %v1620
        %v1622 = vpop.f32.mrf.mxu0
        %v1623 = vadd.f32 %v1493, %v1622
        %v1624 = vpop.f32.mrf.mxu0
        %v1625 = vadd.f32 %v1489, %v1624
        %v1626 = vpop.f32.mrf.mxu0
        %v1627 = vadd.f32 %v1493, %v1626
        %1628 = vmatprep.mubr.bf16.mxu0 0
        %1629 = vmatmul.mubr.bf16.gmra.mxu0 %v1454
        %v1630 = vpop.f32.mrf.mxu0
        %v1631 = vadd.f32 %v1489, %v1630
        %v1632 = vpop.f32.mrf.mxu0
        %v1633 = vadd.f32 %v1493, %v1632
        %v1634 = vpop.f32.mrf.mxu0
        %v1635 = vadd.f32 %v1489, %v1634
        %v1636 = vpop.f32.mrf.mxu0
        %v1637 = vadd.f32 %v1493, %v1636
        %1638 = vmatprep.mubr.bf16.mxu0 0
        %1639 = vmatmul.mubr.bf16.gmra.mxu0 %v1455
        %v1640 = vpop.f32.mrf.mxu0
        %v1641 = vadd.f32 %v1489, %v1640
        %v1642 = vpop.f32.mrf.mxu0
        %v1643 = vadd.f32 %v1493, %v1642
        %v1644 = vpop.f32.mrf.mxu0
        %v1645 = vadd.f32 %v1489, %v1644
        %v1646 = vpop.f32.mrf.mxu0
        %v1647 = vadd.f32 %v1493, %v1646
        %1648 = vmatprep.mubr.bf16.mxu0 0
        %1649 = vmatmul.mubr.bf16.gmra.mxu0 %v1456
        %v1650 = vpop.f32.mrf.mxu0
        %v1651 = vadd.f32 %v1489, %v1650
        %v1652 = vpop.f32.mrf.mxu0
        %v1653 = vadd.f32 %v1493, %v1652
        %v1654 = vpop.f32.mrf.mxu0
        %v1655 = vadd.f32 %v1489, %v1654
        %v1656 = vpop.f32.mrf.mxu0
        %v1657 = vadd.f32 %v1493, %v1656
        %1658 = vmatprep.mubr.bf16.mxu0 0
        %1659 = vmatmul.mubr.bf16.gmra.mxu0 %v1457
        %v1660 = vpop.f32.mrf.mxu0
        %v1661 = vadd.f32 %v1489, %v1660
        %v1662 = vpop.f32.mrf.mxu0
        %v1663 = vadd.f32 %v1493, %v1662
        %v1664 = vpop.f32.mrf.mxu0
        %v1665 = vadd.f32 %v1489, %v1664
        %v1666 = vpop.f32.mrf.mxu0
        %v1667 = vadd.f32 %v1493, %v1666
        %1668 = vmatprep.mubr.bf16.mxu0 0
        %1669 = vmatmul.mubr.bf16.gmra.mxu0 %v1458
        %v1670 = vpop.f32.mrf.mxu0
        %v1671 = vadd.f32 %v1489, %v1670
        %v1672 = vpop.f32.mrf.mxu0
        %v1673 = vadd.f32 %v1493, %v1672
        %v1674 = vpop.f32.mrf.mxu0
        %v1675 = vadd.f32 %v1489, %v1674
        %v1676 = vpop.f32.mrf.mxu0
        %v1677 = vadd.f32 %v1493, %v1676
        %1678 = vmatprep.mubr.bf16.mxu0 0
        %1679 = vmatmul.mubr.bf16.gmra.mxu0 %v1459
        %v1680 = vpop.f32.mrf.mxu0
        %v1681 = vadd.f32 %v1489, %v1680
        %v1682 = vpop.f32.mrf.mxu0
        %v1683 = vadd.f32 %v1493, %v1682
        %v1684 = vpop.f32.mrf.mxu0
        %v1685 = vadd.f32 %v1489, %v1684
        %v1686 = vpop.f32.mrf.mxu0
        %v1687 = vadd.f32 %v1493, %v1686
        %1688 = vmatprep.mubr.bf16.mxu0 0
        %1689 = vmatmul.mubr.bf16.gmra.mxu0 %v1460
        %v1690 = vpop.f32.mrf.mxu0
        %v1691 = vadd.f32 %v1489, %v1690
        %v1692 = vpop.f32.mrf.mxu0
        %v1693 = vadd.f32 %v1493, %v1692
        %v1694 = vpop.f32.mrf.mxu0
        %v1695 = vadd.f32 %v1489, %v1694
        %v1696 = vpop.f32.mrf.mxu0
        %v1697 = vadd.f32 %v1493, %v1696
        %1698 = vmatprep.mubr.bf16.mxu0 0
        %1699 = vmatmul.mubr.bf16.gmra.mxu0 %v1461
        %v1700 = vpop.f32.mrf.mxu0
        %v1701 = vadd.f32 %v1489, %v1700
        %v1702 = vpop.f32.mrf.mxu0
        %v1703 = vadd.f32 %v1493, %v1702
        %v1704 = vpop.f32.mrf.mxu0
        %v1705 = vadd.f32 %v1489, %v1704
        %v1706 = vpop.f32.mrf.mxu0
        %v1707 = vadd.f32 %v1493, %v1706
        %1708 = vmatprep.mubr.bf16.mxu0 0
        %1709 = vmatmul.mubr.bf16.gmra.mxu0 %v1462
        %v1710 = vpop.f32.mrf.mxu0
        %v1711 = vadd.f32 %v1489, %v1710
        %v1712 = vpop.f32.mrf.mxu0
        %v1713 = vadd.f32 %v1493, %v1712
        %v1714 = vpop.f32.mrf.mxu0
        %v1715 = vadd.f32 %v1489, %v1714
        %v1716 = vpop.f32.mrf.mxu0
        %v1717 = vadd.f32 %v1493, %v1716
        %1718 = vmatprep.mubr.bf16.mxu0 0
        %1719 = vmatmul.mubr.bf16.gmra.mxu0 %v1463
        %v1720 = vpop.f32.mrf.mxu0
        %v1721 = vadd.f32 %v1489, %v1720
        %v1722 = vpop.f32.mrf.mxu0
        %v1723 = vadd.f32 %v1493, %v1722
        %v1724 = vpop.f32.mrf.mxu0
        %v1725 = vadd.f32 %v1489, %v1724
        %v1726 = vpop.f32.mrf.mxu0
        %v1727 = vadd.f32 %v1493, %v1726
        %1728 = vmatprep.mubr.bf16.mxu0 0
        %1729 = vmatmul.mubr.bf16.gmra.mxu0 %v1464
        %v1730 = vpop.f32.mrf.mxu0
        %v1731 = vadd.f32 %v1489, %v1730
        %v1732 = vpop.f32.mrf.mxu0
        %v1733 = vadd.f32 %v1493, %v1732
        %v1734 = vpop.f32.mrf.mxu0
        %v1735 = vadd.f32 %v1489, %v1734
        %v1736 = vpop.f32.mrf.mxu0
        %v1737 = vadd.f32 %v1493, %v1736
        %1738 = vmatprep.mubr.bf16.mxu0 0
        %1739 = vmatmul.mubr.bf16.gmra.mxu0 %v1465
        %v1740 = vpop.f32.mrf.mxu0
        %v1741 = vadd.f32 %v1489, %v1740
        %v1742 = vpop.f32.mrf.mxu0
        %v1743 = vadd.f32 %v1493, %v1742
        %v1744 = vpop.f32.mrf.mxu0
        %v1745 = vadd.f32 %v1489, %v1744
        %v1746 = vpop.f32.mrf.mxu0
        %v1747 = vadd.f32 %v1493, %v1746
        %1748 = vmatprep.mubr.bf16.mxu0 0
        %1749 = vmatmul.mubr.bf16.gmra.mxu0 %v1466
        %v1750 = vpop.f32.mrf.mxu0
        %v1751 = vadd.f32 %v1489, %v1750
        %v1752 = vpop.f32.mrf.mxu0
        %v1753 = vadd.f32 %v1493, %v1752
        %v1754 = vpop.f32.mrf.mxu0
        %v1755 = vadd.f32 %v1489, %v1754
        %v1756 = vpop.f32.mrf.mxu0
        %v1757 = vadd.f32 %v1493, %v1756
        %1758 = vmatprep.mubr.bf16.mxu0 0
        %1759 = vmatmul.mubr.bf16.gmra.mxu0 %v1467
        %v1760 = vpop.f32.mrf.mxu0
        %v1761 = vadd.f32 %v1489, %v1760
        %v1762 = vpop.f32.mrf.mxu0
        %v1763 = vadd.f32 %v1493, %v1762
        %v1764 = vpop.f32.mrf.mxu0
        %v1765 = vadd.f32 %v1489, %v1764
        %v1766 = vpop.f32.mrf.mxu0
        %v1767 = vadd.f32 %v1493, %v1766
        %1768 = vdwg.mxu0
        %v1769 = vmax.f32 %v1611, 0.0
        %v1770 = vmax.f32 %v1613, 0.0
        %v1771 = vmax.f32 %v1615, 0.0
        %v1772 = vmax.f32 %v1617, 0.0
        %v1773 = vmax.f32 %v1621, 0.0
        %v1774 = vmax.f32 %v1623, 0.0
        %v1775 = vmax.f32 %v1625, 0.0
        %v1776 = vmax.f32 %v1627, 0.0
        %v1777 = vmax.f32 %v1631, 0.0
        %v1778 = vmax.f32 %v1633, 0.0
        %v1779 = vmax.f32 %v1635, 0.0
        %v1780 = vmax.f32 %v1637, 0.0
        %v1781 = vmax.f32 %v1641, 0.0
        %v1782 = vmax.f32 %v1643, 0.0
        %v1783 = vmax.f32 %v1645, 0.0
        %v1784 = vmax.f32 %v1647, 0.0
        %v1785 = vmax.f32 %v1651, 0.0
        %v1786 = vmax.f32 %v1653, 0.0
        %v1787 = vmax.f32 %v1655, 0.0
        %v1788 = vmax.f32 %v1657, 0.0
        %v1789 = vmax.f32 %v1661, 0.0
        %v1790 = vmax.f32 %v1663, 0.0
        %v1791 = vmax.f32 %v1665, 0.0
        %v1792 = vmax.f32 %v1667, 0.0
        %v1793 = vmax.f32 %v1671, 0.0
        %v1794 = vmax.f32 %v1673, 0.0
        %v1795 = vmax.f32 %v1675, 0.0
        %v1796 = vmax.f32 %v1677, 0.0
        %v1797 = vmax.f32 %v1681, 0.0
        %v1798 = vmax.f32 %v1683, 0.0
        %v1799 = vmax.f32 %v1685, 0.0
        %v1800 = vmax.f32 %v1687, 0.0
        %v1801 = vmax.f32 %v1691, 0.0
        %v1802 = vmax.f32 %v1693, 0.0
        %v1803 = vmax.f32 %v1695, 0.0
        %v1804 = vmax.f32 %v1697, 0.0
        %v1805 = vmax.f32 %v1701, 0.0
        %v1806 = vmax.f32 %v1703, 0.0
        %v1807 = vmax.f32 %v1705, 0.0
        %v1808 = vmax.f32 %v1707, 0.0
        %v1809 = vmax.f32 %v1711, 0.0
        %v1810 = vmax.f32 %v1713, 0.0
        %v1811 = vmax.f32 %v1715, 0.0
        %v1812 = vmax.f32 %v1717, 0.0
        %v1813 = vmax.f32 %v1721, 0.0
        %v1814 = vmax.f32 %v1723, 0.0
        %v1815 = vmax.f32 %v1725, 0.0
        %v1816 = vmax.f32 %v1727, 0.0
        %v1817 = vmax.f32 %v1731, 0.0
        %v1818 = vmax.f32 %v1733, 0.0
        %v1819 = vmax.f32 %v1735, 0.0
        %v1820 = vmax.f32 %v1737, 0.0
        %v1821 = vmax.f32 %v1741, 0.0
        %v1822 = vmax.f32 %v1743, 0.0
        %v1823 = vmax.f32 %v1745, 0.0
        %v1824 = vmax.f32 %v1747, 0.0
        %v1825 = vmax.f32 %v1751, 0.0
        %v1826 = vmax.f32 %v1753, 0.0
        %v1827 = vmax.f32 %v1755, 0.0
        %v1828 = vmax.f32 %v1757, 0.0
        %v1829 = vmax.f32 %v1761, 0.0
        %v1830 = vmax.f32 %v1763, 0.0
        %v1831 = vmax.f32 %v1765, 0.0
        %v1832 = vmax.f32 %v1767, 0.0
        %v1833 = vpack.c.bf16 %v1771, %v1769
        %v1834 = vpack.c.bf16 %v1772, %v1770
        %v1835 = vpack.c.bf16 %v1775, %v1773
        %v1836 = vpack.c.bf16 %v1776, %v1774
        %v1837 = vpack.c.bf16 %v1779, %v1777
        %v1838 = vpack.c.bf16 %v1780, %v1778
        %v1839 = vpack.c.bf16 %v1783, %v1781
        %v1840 = vpack.c.bf16 %v1784, %v1782
        %v1841 = vpack.c.bf16 %v1787, %v1785
        %v1842 = vpack.c.bf16 %v1788, %v1786
        %v1843 = vpack.c.bf16 %v1791, %v1789
        %v1844 = vpack.c.bf16 %v1792, %v1790
        %v1845 = vpack.c.bf16 %v1795, %v1793
        %v1846 = vpack.c.bf16 %v1796, %v1794
        %v1847 = vpack.c.bf16 %v1799, %v1797
        %v1848 = vpack.c.bf16 %v1800, %v1798
        %v1849 = vpack.c.bf16 %v1803, %v1801
        %v1850 = vpack.c.bf16 %v1804, %v1802
        %v1851 = vpack.c.bf16 %v1807, %v1805
        %v1852 = vpack.c.bf16 %v1808, %v1806
        %v1853 = vpack.c.bf16 %v1811, %v1809
        %v1854 = vpack.c.bf16 %v1812, %v1810
        %v1855 = vpack.c.bf16 %v1815, %v1813
        %v1856 = vpack.c.bf16 %v1816, %v1814
        %v1857 = vpack.c.bf16 %v1819, %v1817
        %v1858 = vpack.c.bf16 %v1820, %v1818
        %v1859 = vpack.c.bf16 %v1823, %v1821
        %v1860 = vpack.c.bf16 %v1824, %v1822
        %v1861 = vpack.c.bf16 %v1827, %v1825
        %v1862 = vpack.c.bf16 %v1828, %v1826
        %v1863 = vpack.c.bf16 %v1831, %v1829
        %v1864 = vpack.c.bf16 %v1832, %v1830
        %v1865 = vld [vmem:[%s510] sm:$0xf]
        %v1866 = vld [vmem:[%s510 + $0x4] sm:$0xf]
        %v1867 = vld [vmem:[%s510 + $0x8] sm:$0xf]
        %v1868 = vld [vmem:[%s510 + $0xc] sm:$0xf]
        %v1869 = vld [vmem:[%s510 + $0x10] sm:$0xf]
        %v1870 = vld [vmem:[%s510 + $0x14] sm:$0xf]
        %v1871 = vld [vmem:[%s510 + $0x18] sm:$0xf]
        %v1872 = vld [vmem:[%s510 + $0x1c] sm:$0xf]
        %v1873 = vld [vmem:[%s510 + $0x20] sm:$0xf]
        %v1874 = vld [vmem:[%s510 + $0x24] sm:$0xf]
        %v1875 = vld [vmem:[%s510 + $0x28] sm:$0xf]
        %v1876 = vld [vmem:[%s510 + $0x2c] sm:$0xf]
        %v1877 = vld [vmem:[%s510 + $0x30] sm:$0xf]
        %v1878 = vld [vmem:[%s510 + $0x34] sm:$0xf]
        %v1879 = vld [vmem:[%s510 + $0x38] sm:$0xf]
        %v1880 = vld [vmem:[%s510 + $0x3c] sm:$0xf]
        %v1881 = vld [vmem:[%s510 + $0x40] sm:$0xf]
        %v1882 = vld [vmem:[%s510 + $0x44] sm:$0xf]
        %v1883 = vld [vmem:[%s510 + $0x48] sm:$0xf]
        %v1884 = vld [vmem:[%s510 + $0x4c] sm:$0xf]
        %v1885 = vld [vmem:[%s510 + $0x50] sm:$0xf]
        %v1886 = vld [vmem:[%s510 + $0x54] sm:$0xf]
        %v1887 = vld [vmem:[%s510 + $0x58] sm:$0xf]
        %v1888 = vld [vmem:[%s510 + $0x5c] sm:$0xf]
        %v1889 = vld [vmem:[%s510 + $0x60] sm:$0xf]
        %v1890 = vld [vmem:[%s510 + $0x64] sm:$0xf]
        %v1891 = vld [vmem:[%s510 + $0x68] sm:$0xf]
        %v1892 = vld [vmem:[%s510 + $0x6c] sm:$0xf]
        %v1893 = vld [vmem:[%s510 + $0x70] sm:$0xf]
        %v1894 = vld [vmem:[%s510 + $0x74] sm:$0xf]
        %v1895 = vld [vmem:[%s510 + $0x78] sm:$0xf]
        %v1896 = vld [vmem:[%s510 + $0x7c] sm:$0xf]
        %v1897 = vld [vmem:[%s586] sm:$0x1]
        %v1899 = vlaneseq
        %v1900 = vshrl.u32 %v1899, 7
        %v1901 = vsub.s32 0, %v1900
        %v1902 = vrot.slane %v1897, %v1901
        %v1936 = vunpack.c.l.b16 %v1865
        %v1937 = vunpack.c.l.b16 %v1866
        %v1938 = vunpack.c.l.b16 %v1867
        %v1939 = vunpack.c.l.b16 %v1868
        %v1940 = vunpack.c.l.b16 %v1869
        %v1941 = vunpack.c.l.b16 %v1870
        %v1942 = vunpack.c.l.b16 %v1871
        %v1943 = vunpack.c.l.b16 %v1872
        %v1944 = vunpack.c.l.b16 %v1873
        %v1945 = vunpack.c.l.b16 %v1874
        %v1946 = vunpack.c.l.b16 %v1875
        %v1947 = vunpack.c.l.b16 %v1876
        %v1948 = vunpack.c.l.b16 %v1877
        %v1949 = vunpack.c.l.b16 %v1878
        %v1950 = vunpack.c.l.b16 %v1879
        %v1951 = vunpack.c.l.b16 %v1880
        %v1952 = vunpack.c.l.b16 %v1881
        %v1953 = vunpack.c.l.b16 %v1882
        %v1954 = vunpack.c.l.b16 %v1883
        %v1955 = vunpack.c.l.b16 %v1884
        %v1956 = vunpack.c.l.b16 %v1885
        %v1957 = vunpack.c.l.b16 %v1886
        %v1958 = vunpack.c.l.b16 %v1887
        %v1959 = vunpack.c.l.b16 %v1888
        %v1960 = vunpack.c.l.b16 %v1889
        %v1961 = vunpack.c.l.b16 %v1890
        %v1962 = vunpack.c.l.b16 %v1891
        %v1963 = vunpack.c.l.b16 %v1892
        %v1964 = vunpack.c.l.b16 %v1893
        %v1965 = vunpack.c.l.b16 %v1894
        %v1966 = vunpack.c.l.b16 %v1895
        %v1967 = vunpack.c.l.b16 %v1896
        %v1968 = vpack.c.b16 %v1937, %v1936
        %v1969 = vpack.c.b16 %v1939, %v1938
        %v1970 = vpack.c.b16 %v1941, %v1940
        %v1971 = vpack.c.b16 %v1943, %v1942
        %v1972 = vpack.c.b16 %v1945, %v1944
        %v1973 = vpack.c.b16 %v1947, %v1946
        %v1974 = vpack.c.b16 %v1949, %v1948
        %v1975 = vpack.c.b16 %v1951, %v1950
        %v1976 = vpack.c.b16 %v1953, %v1952
        %v1977 = vpack.c.b16 %v1955, %v1954
        %v1978 = vpack.c.b16 %v1957, %v1956
        %v1979 = vpack.c.b16 %v1959, %v1958
        %v1980 = vpack.c.b16 %v1961, %v1960
        %v1981 = vpack.c.b16 %v1963, %v1962
        %v1982 = vpack.c.b16 %v1965, %v1964
        %v1983 = vpack.c.b16 %v1967, %v1966
        %2000 = vmatprep.subr.bf16.mxu0 0
        %2001 = vmatpush1.bf16.msra.mxu0 %v1975
        %2002 = vmatprep.subr.bf16.mxu0 0
        %2003 = vmatpush1.bf16.msra.mxu0 %v1974
        %2004 = vmatprep.subr.bf16.mxu0 0
        %2005 = vmatpush1.bf16.msra.mxu0 %v1973
        %2006 = vmatprep.subr.bf16.mxu0 0
        %2007 = vmatpush1.bf16.msra.mxu0 %v1972
        %2008 = vmatprep.subr.bf16.mxu0 0
        %2009 = vmatpush1.bf16.msra.mxu0 %v1971
        %2010 = vmatprep.subr.bf16.mxu0 0
        %2011 = vmatpush1.bf16.msra.mxu0 %v1970
        %2012 = vmatprep.subr.bf16.mxu0 0
        %2013 = vmatpush1.bf16.msra.mxu0 %v1969
        %2014 = vmatprep.subr.bf16.mxu0 0
        %2015 = vmatpush1.bf16.msra.mxu0 %v1968
        %2016 = vmatprep.subr.bf16.mxu0 0
        %2017 = vmatpush2.bf16.msra.mxu0 %v1983
        %2018 = vmatprep.subr.bf16.mxu0 0
        %2019 = vmatpush2.bf16.msra.mxu0 %v1982
        %2020 = vmatprep.subr.bf16.mxu0 0
        %2021 = vmatpush2.bf16.msra.mxu0 %v1981
        %2022 = vmatprep.subr.bf16.mxu0 0
        %2023 = vmatpush2.bf16.msra.mxu0 %v1980
        %2024 = vmatprep.subr.bf16.mxu0 0
        %2025 = vmatpush2.bf16.msra.mxu0 %v1979
        %2026 = vmatprep.subr.bf16.mxu0 0
        %2027 = vmatpush2.bf16.msra.mxu0 %v1978
        %2028 = vmatprep.subr.bf16.mxu0 0
        %2029 = vmatpush2.bf16.msra.mxu0 %v1977
        %2030 = vmatprep.subr.bf16.mxu0 0
        %2031 = vmatpush2.bf16.msra.mxu0 %v1976
        %2032 = vmatprep.mubr.bf16.mxu0 %v1834
        %2033 = vmatmul.mubr.bf16.gmra.mxu0 %v1833
        %v2034 = vpop.f32.mrf.mxu0
        %v2035 = vadd.f32 %v1902, %v2034
        %v2036 = vpop.f32.mrf.mxu0
        %v2037 = vpop.f32.mrf.mxu0
        %v2038 = vadd.f32 %v1902, %v2037
        %v2039 = vpop.f32.mrf.mxu0
        %2040 = vmatprep.mubr.bf16.mxu0 %v1836
        %2041 = vmatmul.mubr.bf16.gmra.mxu0 %v1835
        %v2042 = vpop.f32.mrf.mxu0
        %v2043 = vadd.f32 %v1902, %v2042
        %v2044 = vpop.f32.mrf.mxu0
        %v2045 = vpop.f32.mrf.mxu0
        %v2046 = vadd.f32 %v1902, %v2045
        %v2047 = vpop.f32.mrf.mxu0
        %2048 = vmatprep.mubr.bf16.mxu0 %v1838
        %2049 = vmatmul.mubr.bf16.gmra.mxu0 %v1837
        %v2050 = vpop.f32.mrf.mxu0
        %v2051 = vadd.f32 %v1902, %v2050
        %v2052 = vpop.f32.mrf.mxu0
        %v2053 = vpop.f32.mrf.mxu0
        %v2054 = vadd.f32 %v1902, %v2053
        %v2055 = vpop.f32.mrf.mxu0
        %2056 = vmatprep.mubr.bf16.mxu0 %v1840
        %2057 = vmatmul.mubr.bf16.gmra.mxu0 %v1839
        %v2058 = vpop.f32.mrf.mxu0
        %v2059 = vadd.f32 %v1902, %v2058
        %v2060 = vpop.f32.mrf.mxu0
        %v2061 = vpop.f32.mrf.mxu0
        %v2062 = vadd.f32 %v1902, %v2061
        %v2063 = vpop.f32.mrf.mxu0
        %2064 = vmatprep.mubr.bf16.mxu0 %v1842
        %2065 = vmatmul.mubr.bf16.gmra.mxu0 %v1841
        %v2066 = vpop.f32.mrf.mxu0
        %v2067 = vadd.f32 %v1902, %v2066
        %v2068 = vpop.f32.mrf.mxu0
        %v2069 = vpop.f32.mrf.mxu0
        %v2070 = vadd.f32 %v1902, %v2069
        %v2071 = vpop.f32.mrf.mxu0
        %2072 = vmatprep.mubr.bf16.mxu0 %v1844
        %2073 = vmatmul.mubr.bf16.gmra.mxu0 %v1843
        %v2074 = vpop.f32.mrf.mxu0
        %v2075 = vadd.f32 %v1902, %v2074
        %v2076 = vpop.f32.mrf.mxu0
        %v2077 = vpop.f32.mrf.mxu0
        %v2078 = vadd.f32 %v1902, %v2077
        %v2079 = vpop.f32.mrf.mxu0
        %2080 = vmatprep.mubr.bf16.mxu0 %v1846
        %2081 = vmatmul.mubr.bf16.gmra.mxu0 %v1845
        %v2082 = vpop.f32.mrf.mxu0
        %v2083 = vadd.f32 %v1902, %v2082
        %v2084 = vpop.f32.mrf.mxu0
        %v2085 = vpop.f32.mrf.mxu0
        %v2086 = vadd.f32 %v1902, %v2085
        %v2087 = vpop.f32.mrf.mxu0
        %2088 = vmatprep.mubr.bf16.mxu0 %v1848
        %2089 = vmatmul.mubr.bf16.gmra.mxu0 %v1847
        %v2090 = vpop.f32.mrf.mxu0
        %v2091 = vadd.f32 %v1902, %v2090
        %v2092 = vpop.f32.mrf.mxu0
        %v2093 = vpop.f32.mrf.mxu0
        %v2094 = vadd.f32 %v1902, %v2093
        %v2095 = vpop.f32.mrf.mxu0
        %2096 = vmatprep.mubr.bf16.mxu0 %v1850
        %2097 = vmatmul.mubr.bf16.gmra.mxu0 %v1849
        %v2098 = vpop.f32.mrf.mxu0
        %v2099 = vadd.f32 %v1902, %v2098
        %v2100 = vpop.f32.mrf.mxu0
        %v2101 = vpop.f32.mrf.mxu0
        %v2102 = vadd.f32 %v1902, %v2101
        %v2103 = vpop.f32.mrf.mxu0
        %2104 = vmatprep.mubr.bf16.mxu0 %v1852
        %2105 = vmatmul.mubr.bf16.gmra.mxu0 %v1851
        %v2106 = vpop.f32.mrf.mxu0
        %v2107 = vadd.f32 %v1902, %v2106
        %v2108 = vpop.f32.mrf.mxu0
        %v2109 = vpop.f32.mrf.mxu0
        %v2110 = vadd.f32 %v1902, %v2109
        %v2111 = vpop.f32.mrf.mxu0
        %2112 = vmatprep.mubr.bf16.mxu0 %v1854
        %2113 = vmatmul.mubr.bf16.gmra.mxu0 %v1853
        %v2114 = vpop.f32.mrf.mxu0
        %v2115 = vadd.f32 %v1902, %v2114
        %v2116 = vpop.f32.mrf.mxu0
        %v2117 = vpop.f32.mrf.mxu0
        %v2118 = vadd.f32 %v1902, %v2117
        %v2119 = vpop.f32.mrf.mxu0
        %2120 = vmatprep.mubr.bf16.mxu0 %v1856
        %2121 = vmatmul.mubr.bf16.gmra.mxu0 %v1855
        %v2122 = vpop.f32.mrf.mxu0
        %v2123 = vadd.f32 %v1902, %v2122
        %v2124 = vpop.f32.mrf.mxu0
        %v2125 = vpop.f32.mrf.mxu0
        %v2126 = vadd.f32 %v1902, %v2125
        %v2127 = vpop.f32.mrf.mxu0
        %2128 = vmatprep.mubr.bf16.mxu0 %v1858
        %2129 = vmatmul.mubr.bf16.gmra.mxu0 %v1857
        %v2130 = vpop.f32.mrf.mxu0
        %v2131 = vadd.f32 %v1902, %v2130
        %v2132 = vpop.f32.mrf.mxu0
        %v2133 = vpop.f32.mrf.mxu0
        %v2134 = vadd.f32 %v1902, %v2133
        %v2135 = vpop.f32.mrf.mxu0
        %2136 = vmatprep.mubr.bf16.mxu0 %v1860
        %2137 = vmatmul.mubr.bf16.gmra.mxu0 %v1859
        %v2138 = vpop.f32.mrf.mxu0
        %v2139 = vadd.f32 %v1902, %v2138
        %v2140 = vpop.f32.mrf.mxu0
        %v2141 = vpop.f32.mrf.mxu0
        %v2142 = vadd.f32 %v1902, %v2141
        %v2143 = vpop.f32.mrf.mxu0
        %2144 = vmatprep.mubr.bf16.mxu0 %v1862
        %2145 = vmatmul.mubr.bf16.gmra.mxu0 %v1861
        %v2146 = vpop.f32.mrf.mxu0
        %v2147 = vadd.f32 %v1902, %v2146
        %v2148 = vpop.f32.mrf.mxu0
        %v2149 = vpop.f32.mrf.mxu0
        %v2150 = vadd.f32 %v1902, %v2149
        %v2151 = vpop.f32.mrf.mxu0
        %2152 = vmatprep.mubr.bf16.mxu0 %v1864
        %2153 = vmatmul.mubr.bf16.gmra.mxu0 %v1863
        %v2154 = vpop.f32.mrf.mxu0
        %v2155 = vadd.f32 %v1902, %v2154
        %v2156 = vpop.f32.mrf.mxu0
        %v2157 = vpop.f32.mrf.mxu0
        %v2158 = vadd.f32 %v1902, %v2157
        %v2159 = vpop.f32.mrf.mxu0
        %2160 = vdwg.mxu0
        %2161 = vadd.xlane.f32.xlu0 %v2035
        %v2162 = vpop.xlane.xlu0 %2161
        %2163 = vadd.xlane.f32.xlu0 %v2038
        %v2164 = vpop.xlane.xlu0 %2163
        %2165 = vadd.xlane.f32.xlu0 %v2043
        %v2166 = vpop.xlane.xlu0 %2165
        %2167 = vadd.xlane.f32.xlu0 %v2046
        %v2168 = vpop.xlane.xlu0 %2167
        %2169 = vadd.xlane.f32.xlu0 %v2051
        %v2170 = vpop.xlane.xlu0 %2169
        %2171 = vadd.xlane.f32.xlu0 %v2054
        %v2172 = vpop.xlane.xlu0 %2171
        %2173 = vadd.xlane.f32.xlu0 %v2059
        %v2174 = vpop.xlane.xlu0 %2173
        %2175 = vadd.xlane.f32.xlu0 %v2062
        %v2176 = vpop.xlane.xlu0 %2175
        %2177 = vadd.xlane.f32.xlu0 %v2067
        %v2178 = vpop.xlane.xlu0 %2177
        %2179 = vadd.xlane.f32.xlu0 %v2070
        %v2180 = vpop.xlane.xlu0 %2179
        %2181 = vadd.xlane.f32.xlu0 %v2075
        %v2182 = vpop.xlane.xlu0 %2181
        %2183 = vadd.xlane.f32.xlu0 %v2078
        %v2184 = vpop.xlane.xlu0 %2183
        %2185 = vadd.xlane.f32.xlu0 %v2083
        %v2186 = vpop.xlane.xlu0 %2185
        %2187 = vadd.xlane.f32.xlu0 %v2086
        %v2188 = vpop.xlane.xlu0 %2187
        %2189 = vadd.xlane.f32.xlu0 %v2091
        %v2190 = vpop.xlane.xlu0 %2189
        %2191 = vadd.xlane.f32.xlu0 %v2094
        %v2192 = vpop.xlane.xlu0 %2191
        %2193 = vadd.xlane.f32.xlu0 %v2099
        %v2194 = vpop.xlane.xlu0 %2193
        %2195 = vadd.xlane.f32.xlu0 %v2102
        %v2196 = vpop.xlane.xlu0 %2195
        %2197 = vadd.xlane.f32.xlu0 %v2107
        %v2198 = vpop.xlane.xlu0 %2197
        %2199 = vadd.xlane.f32.xlu0 %v2110
        %v2200 = vpop.xlane.xlu0 %2199
        %2201 = vadd.xlane.f32.xlu0 %v2115
        %v2202 = vpop.xlane.xlu0 %2201
        %2203 = vadd.xlane.f32.xlu0 %v2118
        %v2204 = vpop.xlane.xlu0 %2203
        %2205 = vadd.xlane.f32.xlu0 %v2123
        %v2206 = vpop.xlane.xlu0 %2205
        %2207 = vadd.xlane.f32.xlu0 %v2126
        %v2208 = vpop.xlane.xlu0 %2207
        %2209 = vadd.xlane.f32.xlu0 %v2131
        %v2210 = vpop.xlane.xlu0 %2209
        %2211 = vadd.xlane.f32.xlu0 %v2134
        %v2212 = vpop.xlane.xlu0 %2211
        %2213 = vadd.xlane.f32.xlu0 %v2139
        %v2214 = vpop.xlane.xlu0 %2213
        %2215 = vadd.xlane.f32.xlu0 %v2142
        %v2216 = vpop.xlane.xlu0 %2215
        %2217 = vadd.xlane.f32.xlu0 %v2147
        %v2218 = vpop.xlane.xlu0 %2217
        %2219 = vadd.xlane.f32.xlu0 %v2150
        %v2220 = vpop.xlane.xlu0 %2219
        %2221 = vadd.xlane.f32.xlu0 %v2155
        %v2222 = vpop.xlane.xlu0 %2221
        %2223 = vadd.xlane.f32.xlu0 %v2158
        %v2224 = vpop.xlane.xlu0 %2223
        %v2225 = vrcp.pop 128.0
        %v2226 = vmul.f32 %v2162, %v2225
        %v2227 = vmul.f32 %v2164, %v2225
        %v2228 = vmul.f32 %v2166, %v2225
        %v2229 = vmul.f32 %v2168, %v2225
        %v2230 = vmul.f32 %v2170, %v2225
        %v2231 = vmul.f32 %v2172, %v2225
        %v2232 = vmul.f32 %v2174, %v2225
        %v2233 = vmul.f32 %v2176, %v2225
        %v2234 = vmul.f32 %v2178, %v2225
        %v2235 = vmul.f32 %v2180, %v2225
        %v2236 = vmul.f32 %v2182, %v2225
        %v2237 = vmul.f32 %v2184, %v2225
        %v2238 = vmul.f32 %v2186, %v2225
        %v2239 = vmul.f32 %v2188, %v2225
        %v2240 = vmul.f32 %v2190, %v2225
        %v2241 = vmul.f32 %v2192, %v2225
        %v2242 = vmul.f32 %v2194, %v2225
        %v2243 = vmul.f32 %v2196, %v2225
        %v2244 = vmul.f32 %v2198, %v2225
        %v2245 = vmul.f32 %v2200, %v2225
        %v2246 = vmul.f32 %v2202, %v2225
        %v2247 = vmul.f32 %v2204, %v2225
        %v2248 = vmul.f32 %v2206, %v2225
        %v2249 = vmul.f32 %v2208, %v2225
        %v2250 = vmul.f32 %v2210, %v2225
        %v2251 = vmul.f32 %v2212, %v2225
        %v2252 = vmul.f32 %v2214, %v2225
        %v2253 = vmul.f32 %v2216, %v2225
        %v2254 = vmul.f32 %v2218, %v2225
        %v2255 = vmul.f32 %v2220, %v2225
        %v2256 = vmul.f32 %v2222, %v2225
        %v2257 = vmul.f32 %v2224, %v2225
        %v2258 = vsub.f32 %v2035, %v2226
        %v2259 = vsub.f32 %v2038, %v2227
        %v2260 = vsub.f32 %v2043, %v2228
        %v2261 = vsub.f32 %v2046, %v2229
        %v2262 = vsub.f32 %v2051, %v2230
        %v2263 = vsub.f32 %v2054, %v2231
        %v2264 = vsub.f32 %v2059, %v2232
        %v2265 = vsub.f32 %v2062, %v2233
        %v2266 = vsub.f32 %v2067, %v2234
        %v2267 = vsub.f32 %v2070, %v2235
        %v2268 = vsub.f32 %v2075, %v2236
        %v2269 = vsub.f32 %v2078, %v2237
        %v2270 = vsub.f32 %v2083, %v2238
        %v2271 = vsub.f32 %v2086, %v2239
        %v2272 = vsub.f32 %v2091, %v2240
        %v2273 = vsub.f32 %v2094, %v2241
        %v2274 = vsub.f32 %v2099, %v2242
        %v2275 = vsub.f32 %v2102, %v2243
        %v2276 = vsub.f32 %v2107, %v2244
        %v2277 = vsub.f32 %v2110, %v2245
        %v2278 = vsub.f32 %v2115, %v2246
        %v2279 = vsub.f32 %v2118, %v2247
        %v2280 = vsub.f32 %v2123, %v2248
        %v2281 = vsub.f32 %v2126, %v2249
        %v2282 = vsub.f32 %v2131, %v2250
        %v2283 = vsub.f32 %v2134, %v2251
        %v2284 = vsub.f32 %v2139, %v2252
        %v2285 = vsub.f32 %v2142, %v2253
        %v2286 = vsub.f32 %v2147, %v2254
        %v2287 = vsub.f32 %v2150, %v2255
        %v2288 = vsub.f32 %v2155, %v2256
        %v2289 = vsub.f32 %v2158, %v2257
        %v2290 = vmul.f32 %v2258, %v2258
        %v2291 = vmul.f32 %v2259, %v2259
        %v2292 = vmul.f32 %v2260, %v2260
        %v2293 = vmul.f32 %v2261, %v2261
        %v2294 = vmul.f32 %v2262, %v2262
        %v2295 = vmul.f32 %v2263, %v2263
        %v2296 = vmul.f32 %v2264, %v2264
        %v2297 = vmul.f32 %v2265, %v2265
        %v2298 = vmul.f32 %v2266, %v2266
        %v2299 = vmul.f32 %v2267, %v2267
        %v2300 = vmul.f32 %v2268, %v2268
        %v2301 = vmul.f32 %v2269, %v2269
        %v2302 = vmul.f32 %v2270, %v2270
        %v2303 = vmul.f32 %v2271, %v2271
        %v2304 = vmul.f32 %v2272, %v2272
        %v2305 = vmul.f32 %v2273, %v2273
        %v2306 = vmul.f32 %v2274, %v2274
        %v2307 = vmul.f32 %v2275, %v2275
        %v2308 = vmul.f32 %v2276, %v2276
        %v2309 = vmul.f32 %v2277, %v2277
        %v2310 = vmul.f32 %v2278, %v2278
        %v2311 = vmul.f32 %v2279, %v2279
        %v2312 = vmul.f32 %v2280, %v2280
        %v2313 = vmul.f32 %v2281, %v2281
        %v2314 = vmul.f32 %v2282, %v2282
        %v2315 = vmul.f32 %v2283, %v2283
        %v2316 = vmul.f32 %v2284, %v2284
        %v2317 = vmul.f32 %v2285, %v2285
        %v2318 = vmul.f32 %v2286, %v2286
        %v2319 = vmul.f32 %v2287, %v2287
        %v2320 = vmul.f32 %v2288, %v2288
        %v2321 = vmul.f32 %v2289, %v2289
        %2322 = vadd.xlane.f32.xlu0 %v2290
        %v2323 = vpop.xlane.xlu0 %2322
        %2324 = vadd.xlane.f32.xlu0 %v2291
        %v2325 = vpop.xlane.xlu0 %2324
        %2326 = vadd.xlane.f32.xlu0 %v2292
        %v2327 = vpop.xlane.xlu0 %2326
        %2328 = vadd.xlane.f32.xlu0 %v2293
        %v2329 = vpop.xlane.xlu0 %2328
        %2330 = vadd.xlane.f32.xlu0 %v2294
        %v2331 = vpop.xlane.xlu0 %2330
        %2332 = vadd.xlane.f32.xlu0 %v2295
        %v2333 = vpop.xlane.xlu0 %2332
        %2334 = vadd.xlane.f32.xlu0 %v2296
        %v2335 = vpop.xlane.xlu0 %2334
        %2336 = vadd.xlane.f32.xlu0 %v2297
        %v2337 = vpop.xlane.xlu0 %2336
        %2338 = vadd.xlane.f32.xlu0 %v2298
        %v2339 = vpop.xlane.xlu0 %2338
        %2340 = vadd.xlane.f32.xlu0 %v2299
        %v2341 = vpop.xlane.xlu0 %2340
        %2342 = vadd.xlane.f32.xlu0 %v2300
        %v2343 = vpop.xlane.xlu0 %2342
        %2344 = vadd.xlane.f32.xlu0 %v2301
        %v2345 = vpop.xlane.xlu0 %2344
        %2346 = vadd.xlane.f32.xlu0 %v2302
        %v2347 = vpop.xlane.xlu0 %2346
        %2348 = vadd.xlane.f32.xlu0 %v2303
        %v2349 = vpop.xlane.xlu0 %2348
        %2350 = vadd.xlane.f32.xlu0 %v2304
        %v2351 = vpop.xlane.xlu0 %2350
        %2352 = vadd.xlane.f32.xlu0 %v2305
        %v2353 = vpop.xlane.xlu0 %2352
        %2354 = vadd.xlane.f32.xlu0 %v2306
        %v2355 = vpop.xlane.xlu0 %2354
        %2356 = vadd.xlane.f32.xlu0 %v2307
        %v2357 = vpop.xlane.xlu0 %2356
        %2358 = vadd.xlane.f32.xlu0 %v2308
        %v2359 = vpop.xlane.xlu0 %2358
        %2360 = vadd.xlane.f32.xlu0 %v2309
        %v2361 = vpop.xlane.xlu0 %2360
        %2362 = vadd.xlane.f32.xlu0 %v2310
        %v2363 = vpop.xlane.xlu0 %2362
        %2364 = vadd.xlane.f32.xlu0 %v2311
        %v2365 = vpop.xlane.xlu0 %2364
        %2366 = vadd.xlane.f32.xlu0 %v2312
        %v2367 = vpop.xlane.xlu0 %2366
        %2368 = vadd.xlane.f32.xlu0 %v2313
        %v2369 = vpop.xlane.xlu0 %2368
        %2370 = vadd.xlane.f32.xlu0 %v2314
        %v2371 = vpop.xlane.xlu0 %2370
        %2372 = vadd.xlane.f32.xlu0 %v2315
        %v2373 = vpop.xlane.xlu0 %2372
        %2374 = vadd.xlane.f32.xlu0 %v2316
        %v2375 = vpop.xlane.xlu0 %2374
        %2376 = vadd.xlane.f32.xlu0 %v2317
        %v2377 = vpop.xlane.xlu0 %2376
        %2378 = vadd.xlane.f32.xlu0 %v2318
        %v2379 = vpop.xlane.xlu0 %2378
        %2380 = vadd.xlane.f32.xlu0 %v2319
        %v2381 = vpop.xlane.xlu0 %2380
        %2382 = vadd.xlane.f32.xlu0 %v2320
        %v2383 = vpop.xlane.xlu0 %2382
        %2384 = vadd.xlane.f32.xlu0 %v2321
        %v2385 = vpop.xlane.xlu0 %2384
        %v2386 = vmul.f32 %v2323, %v2225
        %v2387 = vmul.f32 %v2325, %v2225
        %v2388 = vmul.f32 %v2327, %v2225
        %v2389 = vmul.f32 %v2329, %v2225
        %v2390 = vmul.f32 %v2331, %v2225
        %v2391 = vmul.f32 %v2333, %v2225
        %v2392 = vmul.f32 %v2335, %v2225
        %v2393 = vmul.f32 %v2337, %v2225
        %v2394 = vmul.f32 %v2339, %v2225
        %v2395 = vmul.f32 %v2341, %v2225
        %v2396 = vmul.f32 %v2343, %v2225
        %v2397 = vmul.f32 %v2345, %v2225
        %v2398 = vmul.f32 %v2347, %v2225
        %v2399 = vmul.f32 %v2349, %v2225
        %v2400 = vmul.f32 %v2351, %v2225
        %v2401 = vmul.f32 %v2353, %v2225
        %v2402 = vmul.f32 %v2355, %v2225
        %v2403 = vmul.f32 %v2357, %v2225
        %v2404 = vmul.f32 %v2359, %v2225
        %v2405 = vmul.f32 %v2361, %v2225
        %v2406 = vmul.f32 %v2363, %v2225
        %v2407 = vmul.f32 %v2365, %v2225
        %v2408 = vmul.f32 %v2367, %v2225
        %v2409 = vmul.f32 %v2369, %v2225
        %v2410 = vmul.f32 %v2371, %v2225
        %v2411 = vmul.f32 %v2373, %v2225
        %v2412 = vmul.f32 %v2375, %v2225
        %v2413 = vmul.f32 %v2377, %v2225
        %v2414 = vmul.f32 %v2379, %v2225
        %v2415 = vmul.f32 %v2381, %v2225
        %v2416 = vmul.f32 %v2383, %v2225
        %v2417 = vmul.f32 %v2385, %v2225
        %v2418 = vadd.f32 %v2386, 1e-05
        %v2419 = vadd.f32 %v2387, 1e-05
        %v2420 = vadd.f32 %v2388, 1e-05
        %v2421 = vadd.f32 %v2389, 1e-05
        %v2422 = vadd.f32 %v2390, 1e-05
        %v2423 = vadd.f32 %v2391, 1e-05
        %v2424 = vadd.f32 %v2392, 1e-05
        %v2425 = vadd.f32 %v2393, 1e-05
        %v2426 = vadd.f32 %v2394, 1e-05
        %v2427 = vadd.f32 %v2395, 1e-05
        %v2428 = vadd.f32 %v2396, 1e-05
        %v2429 = vadd.f32 %v2397, 1e-05
        %v2430 = vadd.f32 %v2398, 1e-05
        %v2431 = vadd.f32 %v2399, 1e-05
        %v2432 = vadd.f32 %v2400, 1e-05
        %v2433 = vadd.f32 %v2401, 1e-05
        %v2434 = vadd.f32 %v2402, 1e-05
        %v2435 = vadd.f32 %v2403, 1e-05
        %v2436 = vadd.f32 %v2404, 1e-05
        %v2437 = vadd.f32 %v2405, 1e-05
        %v2438 = vadd.f32 %v2406, 1e-05
        %v2439 = vadd.f32 %v2407, 1e-05
        %v2440 = vadd.f32 %v2408, 1e-05
        %v2441 = vadd.f32 %v2409, 1e-05
        %v2442 = vadd.f32 %v2410, 1e-05
        %v2443 = vadd.f32 %v2411, 1e-05
        %v2444 = vadd.f32 %v2412, 1e-05
        %v2445 = vadd.f32 %v2413, 1e-05
        %v2446 = vadd.f32 %v2414, 1e-05
        %v2447 = vadd.f32 %v2415, 1e-05
        %v2448 = vadd.f32 %v2416, 1e-05
        %v2449 = vadd.f32 %v2417, 1e-05
        %v2450 = vrsqrt.pop %v2418
        %v2451 = vrsqrt.pop %v2419
        %v2452 = vrsqrt.pop %v2420
        %v2453 = vrsqrt.pop %v2421
        %v2454 = vrsqrt.pop %v2422
        %v2455 = vrsqrt.pop %v2423
        %v2456 = vrsqrt.pop %v2424
        %v2457 = vrsqrt.pop %v2425
        %v2458 = vrsqrt.pop %v2426
        %v2459 = vrsqrt.pop %v2427
        %v2460 = vrsqrt.pop %v2428
        %v2461 = vrsqrt.pop %v2429
        %v2462 = vrsqrt.pop %v2430
        %v2463 = vrsqrt.pop %v2431
        %v2464 = vrsqrt.pop %v2432
        %v2465 = vrsqrt.pop %v2433
        %v2466 = vrsqrt.pop %v2434
        %v2467 = vrsqrt.pop %v2435
        %v2468 = vrsqrt.pop %v2436
        %v2469 = vrsqrt.pop %v2437
        %v2470 = vrsqrt.pop %v2438
        %v2471 = vrsqrt.pop %v2439
        %v2472 = vrsqrt.pop %v2440
        %v2473 = vrsqrt.pop %v2441
        %v2474 = vrsqrt.pop %v2442
        %v2475 = vrsqrt.pop %v2443
        %v2476 = vrsqrt.pop %v2444
        %v2477 = vrsqrt.pop %v2445
        %v2478 = vrsqrt.pop %v2446
        %v2479 = vrsqrt.pop %v2447
        %v2480 = vrsqrt.pop %v2448
        %v2481 = vrsqrt.pop %v2449
        %v2482 = vmul.f32 %v2258, %v2450
        %v2483 = vmul.f32 %v2259, %v2451
        %v2484 = vmul.f32 %v2260, %v2452
        %v2485 = vmul.f32 %v2261, %v2453
        %v2486 = vmul.f32 %v2262, %v2454
        %v2487 = vmul.f32 %v2263, %v2455
        %v2488 = vmul.f32 %v2264, %v2456
        %v2489 = vmul.f32 %v2265, %v2457
        %v2490 = vmul.f32 %v2266, %v2458
        %v2491 = vmul.f32 %v2267, %v2459
        %v2492 = vmul.f32 %v2268, %v2460
        %v2493 = vmul.f32 %v2269, %v2461
        %v2494 = vmul.f32 %v2270, %v2462
        %v2495 = vmul.f32 %v2271, %v2463
        %v2496 = vmul.f32 %v2272, %v2464
        %v2497 = vmul.f32 %v2273, %v2465
        %v2498 = vmul.f32 %v2274, %v2466
        %v2499 = vmul.f32 %v2275, %v2467
        %v2500 = vmul.f32 %v2276, %v2468
        %v2501 = vmul.f32 %v2277, %v2469
        %v2502 = vmul.f32 %v2278, %v2470
        %v2503 = vmul.f32 %v2279, %v2471
        %v2504 = vmul.f32 %v2280, %v2472
        %v2505 = vmul.f32 %v2281, %v2473
        %v2506 = vmul.f32 %v2282, %v2474
        %v2507 = vmul.f32 %v2283, %v2475
        %v2508 = vmul.f32 %v2284, %v2476
        %v2509 = vmul.f32 %v2285, %v2477
        %v2510 = vmul.f32 %v2286, %v2478
        %v2511 = vmul.f32 %v2287, %v2479
        %v2512 = vmul.f32 %v2288, %v2480
        %v2513 = vmul.f32 %v2289, %v2481
        %v2514 = vld [vmem:[%s589] sm:$0x1]
        %v2516 = vlaneseq
        %v2517 = vshrl.u32 %v2516, 7
        %v2518 = vsub.s32 0, %v2517
        %v2519 = vrot.slane %v2514, %v2518
        %v2521 = vmul.f32 %v2482, %v2519
        %v2522 = vmul.f32 %v2483, %v2519
        %v2523 = vmul.f32 %v2484, %v2519
        %v2524 = vmul.f32 %v2485, %v2519
        %v2525 = vmul.f32 %v2486, %v2519
        %v2526 = vmul.f32 %v2487, %v2519
        %v2527 = vmul.f32 %v2488, %v2519
        %v2528 = vmul.f32 %v2489, %v2519
        %v2529 = vmul.f32 %v2490, %v2519
        %v2530 = vmul.f32 %v2491, %v2519
        %v2531 = vmul.f32 %v2492, %v2519
        %v2532 = vmul.f32 %v2493, %v2519
        %v2533 = vmul.f32 %v2494, %v2519
        %v2534 = vmul.f32 %v2495, %v2519
        %v2535 = vmul.f32 %v2496, %v2519
        %v2536 = vmul.f32 %v2497, %v2519
        %v2537 = vmul.f32 %v2498, %v2519
        %v2538 = vmul.f32 %v2499, %v2519
        %v2539 = vmul.f32 %v2500, %v2519
        %v2540 = vmul.f32 %v2501, %v2519
        %v2541 = vmul.f32 %v2502, %v2519
        %v2542 = vmul.f32 %v2503, %v2519
        %v2543 = vmul.f32 %v2504, %v2519
        %v2544 = vmul.f32 %v2505, %v2519
        %v2545 = vmul.f32 %v2506, %v2519
        %v2546 = vmul.f32 %v2507, %v2519
        %v2547 = vmul.f32 %v2508, %v2519
        %v2548 = vmul.f32 %v2509, %v2519
        %v2549 = vmul.f32 %v2510, %v2519
        %v2550 = vmul.f32 %v2511, %v2519
        %v2551 = vmul.f32 %v2512, %v2519
        %v2552 = vmul.f32 %v2513, %v2519
        %v2553 = vld [vmem:[%s592] sm:$0x1]
        %v2555 = vlaneseq
        %v2556 = vshrl.u32 %v2555, 7
        %v2557 = vsub.s32 0, %v2556
        %v2558 = vrot.slane %v2553, %v2557
        %v2560 = vadd.f32 %v2521, %v2558
        %v2561 = vadd.f32 %v2522, %v2558
        %v2562 = vadd.f32 %v2523, %v2558
        %v2563 = vadd.f32 %v2524, %v2558
        %v2564 = vadd.f32 %v2525, %v2558
        %v2565 = vadd.f32 %v2526, %v2558
        %v2566 = vadd.f32 %v2527, %v2558
        %v2567 = vadd.f32 %v2528, %v2558
        %v2568 = vadd.f32 %v2529, %v2558
        %v2569 = vadd.f32 %v2530, %v2558
        %v2570 = vadd.f32 %v2531, %v2558
        %v2571 = vadd.f32 %v2532, %v2558
        %v2572 = vadd.f32 %v2533, %v2558
        %v2573 = vadd.f32 %v2534, %v2558
        %v2574 = vadd.f32 %v2535, %v2558
        %v2575 = vadd.f32 %v2536, %v2558
        %v2576 = vadd.f32 %v2537, %v2558
        %v2577 = vadd.f32 %v2538, %v2558
        %v2578 = vadd.f32 %v2539, %v2558
        %v2579 = vadd.f32 %v2540, %v2558
        %v2580 = vadd.f32 %v2541, %v2558
        %v2581 = vadd.f32 %v2542, %v2558
        %v2582 = vadd.f32 %v2543, %v2558
        %v2583 = vadd.f32 %v2544, %v2558
        %v2584 = vadd.f32 %v2545, %v2558
        %v2585 = vadd.f32 %v2546, %v2558
        %v2586 = vadd.f32 %v2547, %v2558
        %v2587 = vadd.f32 %v2548, %v2558
        %v2588 = vadd.f32 %v2549, %v2558
        %v2589 = vadd.f32 %v2550, %v2558
        %v2590 = vadd.f32 %v2551, %v2558
        %v2591 = vadd.f32 %v2552, %v2558
        %p2592 = scmp.eq.s32.totalorder %s36, 2
        // Predicated region
        $region97: #{tpu_custom_call.1} parent=71 // pred_check
          %p2593 = pneg %p2592
        $region98: #{tpu_custom_call.1} parent=71 // pred_check_branch
          %2595 = sbr.rel (%p2593) target = $region100
        $region99: #{tpu_custom_call.1} parent=71 // pred_region
          %v2596 = vpack.c.bf16 %v2561, %v2560
          %v2597 = vpack.c.bf16 %v2563, %v2562
          %v2598 = vpack.c.bf16 %v2565, %v2564
          %v2599 = vpack.c.bf16 %v2567, %v2566
          %v2600 = vpack.c.bf16 %v2569, %v2568
          %v2601 = vpack.c.bf16 %v2571, %v2570
          %v2602 = vpack.c.bf16 %v2573, %v2572
          %v2603 = vpack.c.bf16 %v2575, %v2574
          %v2604 = vpack.c.bf16 %v2577, %v2576
          %v2605 = vpack.c.bf16 %v2579, %v2578
          %v2606 = vpack.c.bf16 %v2581, %v2580
          %v2607 = vpack.c.bf16 %v2583, %v2582
          %v2608 = vpack.c.bf16 %v2585, %v2584
          %v2609 = vpack.c.bf16 %v2587, %v2586
          %v2610 = vpack.c.bf16 %v2589, %v2588
          %v2611 = vpack.c.bf16 %v2591, %v2590
          %s2612 = smul.u32 %s600, 34
          %s2613 = smul.addr %s2612, 4
          %s2614 = scalar_lea.vmem [#allocation2], %s2613
          %v2631 = vunpack.c.l.b16 %v2596
          %v2632 = vunpack.c.h.b16 %v2596
          %v2633 = vunpack.c.l.b16 %v2597
          %v2634 = vunpack.c.h.b16 %v2597
          %v2635 = vunpack.c.l.b16 %v2598
          %v2636 = vunpack.c.h.b16 %v2598
          %v2637 = vunpack.c.l.b16 %v2599
          %v2638 = vunpack.c.h.b16 %v2599
          %v2639 = vunpack.c.l.b16 %v2600
          %v2640 = vunpack.c.h.b16 %v2600
          %v2641 = vunpack.c.l.b16 %v2601
          %v2642 = vunpack.c.h.b16 %v2601
          %v2643 = vunpack.c.l.b16 %v2602
          %v2644 = vunpack.c.h.b16 %v2602
          %v2645 = vunpack.c.l.b16 %v2603
          %v2646 = vunpack.c.h.b16 %v2603
          %v2647 = vunpack.c.l.b16 %v2604
          %v2648 = vunpack.c.h.b16 %v2604
          %v2649 = vunpack.c.l.b16 %v2605
          %v2650 = vunpack.c.h.b16 %v2605
          %v2651 = vunpack.c.l.b16 %v2606
          %v2652 = vunpack.c.h.b16 %v2606
          %v2653 = vunpack.c.l.b16 %v2607
          %v2654 = vunpack.c.h.b16 %v2607
          %v2655 = vunpack.c.l.b16 %v2608
          %v2656 = vunpack.c.h.b16 %v2608
          %v2657 = vunpack.c.l.b16 %v2609
          %v2658 = vunpack.c.h.b16 %v2609
          %v2659 = vunpack.c.l.b16 %v2610
          %v2660 = vunpack.c.h.b16 %v2610
          %v2661 = vunpack.c.l.b16 %v2611
          %v2662 = vunpack.c.h.b16 %v2611
          %v2663 = vpack.c.b16 %v2631, %v2631
          %v2664 = vpack.c.b16 %v2632, %v2632
          %v2665 = vpack.c.b16 %v2633, %v2633
          %v2666 = vpack.c.b16 %v2634, %v2634
          %v2667 = vpack.c.b16 %v2635, %v2635
          %v2668 = vpack.c.b16 %v2636, %v2636
          %v2669 = vpack.c.b16 %v2637, %v2637
          %v2670 = vpack.c.b16 %v2638, %v2638
          %v2671 = vpack.c.b16 %v2639, %v2639
          %v2672 = vpack.c.b16 %v2640, %v2640
          %v2673 = vpack.c.b16 %v2641, %v2641
          %v2674 = vpack.c.b16 %v2642, %v2642
          %v2675 = vpack.c.b16 %v2643, %v2643
          %v2676 = vpack.c.b16 %v2644, %v2644
          %v2677 = vpack.c.b16 %v2645, %v2645
          %v2678 = vpack.c.b16 %v2646, %v2646
          %v2679 = vpack.c.b16 %v2647, %v2647
          %v2680 = vpack.c.b16 %v2648, %v2648
          %v2681 = vpack.c.b16 %v2649, %v2649
          %v2682 = vpack.c.b16 %v2650, %v2650
          %v2683 = vpack.c.b16 %v2651, %v2651
          %v2684 = vpack.c.b16 %v2652, %v2652
          %v2685 = vpack.c.b16 %v2653, %v2653
          %v2686 = vpack.c.b16 %v2654, %v2654
          %v2687 = vpack.c.b16 %v2655, %v2655
          %v2688 = vpack.c.b16 %v2656, %v2656
          %v2689 = vpack.c.b16 %v2657, %v2657
          %v2690 = vpack.c.b16 %v2658, %v2658
          %v2691 = vpack.c.b16 %v2659, %v2659
          %v2692 = vpack.c.b16 %v2660, %v2660
          %v2693 = vpack.c.b16 %v2661, %v2661
          %v2694 = vpack.c.b16 %v2662, %v2662
          %s2727 = smul.addr %s633, 4
          %s2728 = scalar_lea.vmem %s2614, %s2727 [#allocation2]
          %2729 = vst [vmem:[%s2728] sm:$0xf] %v2663
          %2730 = vst [vmem:[%s2728 + $0x4] sm:$0xf] %v2664
          %2731 = vst [vmem:[%s2728 + $0x8] sm:$0xf] %v2665
          %2732 = vst [vmem:[%s2728 + $0xc] sm:$0xf] %v2666
          %2733 = vst [vmem:[%s2728 + $0x10] sm:$0xf] %v2667
          %2734 = vst [vmem:[%s2728 + $0x14] sm:$0xf] %v2668
          %2735 = vst [vmem:[%s2728 + $0x18] sm:$0xf] %v2669
          %2736 = vst [vmem:[%s2728 + $0x1c] sm:$0xf] %v2670
          %2737 = vst [vmem:[%s2728 + $0x20] sm:$0xf] %v2671
          %2738 = vst [vmem:[%s2728 + $0x24] sm:$0xf] %v2672
          %2739 = vst [vmem:[%s2728 + $0x28] sm:$0xf] %v2673
          %2740 = vst [vmem:[%s2728 + $0x2c] sm:$0xf] %v2674
          %2741 = vst [vmem:[%s2728 + $0x30] sm:$0xf] %v2675
          %2742 = vst [vmem:[%s2728 + $0x34] sm:$0xf] %v2676
          %2743 = vst [vmem:[%s2728 + $0x38] sm:$0xf] %v2677
          %2744 = vst [vmem:[%s2728 + $0x3c] sm:$0xf] %v2678
          %2745 = vst [vmem:[%s2728 + $0x40] sm:$0xf] %v2679
          %2746 = vst [vmem:[%s2728 + $0x44] sm:$0xf] %v2680
          %2747 = vst [vmem:[%s2728 + $0x48] sm:$0xf] %v2681
          %2748 = vst [vmem:[%s2728 + $0x4c] sm:$0xf] %v2682
          %2749 = vst [vmem:[%s2728 + $0x50] sm:$0xf] %v2683
          %2750 = vst [vmem:[%s2728 + $0x54] sm:$0xf] %v2684
          %2751 = vst [vmem:[%s2728 + $0x58] sm:$0xf] %v2685
          %2752 = vst [vmem:[%s2728 + $0x5c] sm:$0xf] %v2686
          %2753 = vst [vmem:[%s2728 + $0x60] sm:$0xf] %v2687
          %2754 = vst [vmem:[%s2728 + $0x64] sm:$0xf] %v2688
          %2755 = vst [vmem:[%s2728 + $0x68] sm:$0xf] %v2689
          %2756 = vst [vmem:[%s2728 + $0x6c] sm:$0xf] %v2690
          %2757 = vst [vmem:[%s2728 + $0x70] sm:$0xf] %v2691
          %2758 = vst [vmem:[%s2728 + $0x74] sm:$0xf] %v2692
          %2759 = vst [vmem:[%s2728 + $0x78] sm:$0xf] %v2693
          %2760 = vst [vmem:[%s2728 + $0x7c] sm:$0xf] %v2694
        $region100: #{tpu_custom_call.1} parent=71 // pred_fallthru
          _
        %p2761 = scmp.ne.s32.totalorder %s36, 2
        // Predicated region
        $region101: #{tpu_custom_call.1} parent=71 // pred_check
          %p2762 = pneg %p2761
        $region102: #{tpu_custom_call.1} parent=71 // pred_check_branch
          %2764 = sbr.rel (%p2762) target = $region104
        $region103: #{tpu_custom_call.1} parent=71 // pred_region
          %v2765 = vmax.f32 %v2560, 0.0
          %v2766 = vmax.f32 %v2561, 0.0
          %v2767 = vmax.f32 %v2562, 0.0
          %v2768 = vmax.f32 %v2563, 0.0
          %v2769 = vmax.f32 %v2564, 0.0
          %v2770 = vmax.f32 %v2565, 0.0
          %v2771 = vmax.f32 %v2566, 0.0
          %v2772 = vmax.f32 %v2567, 0.0
          %v2773 = vmax.f32 %v2568, 0.0
          %v2774 = vmax.f32 %v2569, 0.0
          %v2775 = vmax.f32 %v2570, 0.0
          %v2776 = vmax.f32 %v2571, 0.0
          %v2777 = vmax.f32 %v2572, 0.0
          %v2778 = vmax.f32 %v2573, 0.0
          %v2779 = vmax.f32 %v2574, 0.0
          %v2780 = vmax.f32 %v2575, 0.0
          %v2781 = vmax.f32 %v2576, 0.0
          %v2782 = vmax.f32 %v2577, 0.0
          %v2783 = vmax.f32 %v2578, 0.0
          %v2784 = vmax.f32 %v2579, 0.0
          %v2785 = vmax.f32 %v2580, 0.0
          %v2786 = vmax.f32 %v2581, 0.0
          %v2787 = vmax.f32 %v2582, 0.0
          %v2788 = vmax.f32 %v2583, 0.0
          %v2789 = vmax.f32 %v2584, 0.0
          %v2790 = vmax.f32 %v2585, 0.0
          %v2791 = vmax.f32 %v2586, 0.0
          %v2792 = vmax.f32 %v2587, 0.0
          %v2793 = vmax.f32 %v2588, 0.0
          %v2794 = vmax.f32 %v2589, 0.0
          %v2795 = vmax.f32 %v2590, 0.0
          %v2796 = vmax.f32 %v2591, 0.0
          %v2797 = vpack.c.bf16 %v2766, %v2765
          %v2798 = vpack.c.bf16 %v2768, %v2767
          %v2799 = vpack.c.bf16 %v2770, %v2769
          %v2800 = vpack.c.bf16 %v2772, %v2771
          %v2801 = vpack.c.bf16 %v2774, %v2773
          %v2802 = vpack.c.bf16 %v2776, %v2775
          %v2803 = vpack.c.bf16 %v2778, %v2777
          %v2804 = vpack.c.bf16 %v2780, %v2779
          %v2805 = vpack.c.bf16 %v2782, %v2781
          %v2806 = vpack.c.bf16 %v2784, %v2783
          %v2807 = vpack.c.bf16 %v2786, %v2785
          %v2808 = vpack.c.bf16 %v2788, %v2787
          %v2809 = vpack.c.bf16 %v2790, %v2789
          %v2810 = vpack.c.bf16 %v2792, %v2791
          %v2811 = vpack.c.bf16 %v2794, %v2793
          %v2812 = vpack.c.bf16 %v2796, %v2795
          %s2813 = smul.u32 %s600, 34
          %s2814 = smul.addr %s2813, 4
          %s2815 = scalar_lea.vmem [#allocation2], %s2814
          %v2832 = vunpack.c.l.b16 %v2797
          %v2833 = vunpack.c.h.b16 %v2797
          %v2834 = vunpack.c.l.b16 %v2798
          %v2835 = vunpack.c.h.b16 %v2798
          %v2836 = vunpack.c.l.b16 %v2799
          %v2837 = vunpack.c.h.b16 %v2799
          %v2838 = vunpack.c.l.b16 %v2800
          %v2839 = vunpack.c.h.b16 %v2800
          %v2840 = vunpack.c.l.b16 %v2801
          %v2841 = vunpack.c.h.b16 %v2801
          %v2842 = vunpack.c.l.b16 %v2802
          %v2843 = vunpack.c.h.b16 %v2802
          %v2844 = vunpack.c.l.b16 %v2803
          %v2845 = vunpack.c.h.b16 %v2803
          %v2846 = vunpack.c.l.b16 %v2804
          %v2847 = vunpack.c.h.b16 %v2804
          %v2848 = vunpack.c.l.b16 %v2805
          %v2849 = vunpack.c.h.b16 %v2805
          %v2850 = vunpack.c.l.b16 %v2806
          %v2851 = vunpack.c.h.b16 %v2806
          %v2852 = vunpack.c.l.b16 %v2807
          %v2853 = vunpack.c.h.b16 %v2807
          %v2854 = vunpack.c.l.b16 %v2808
          %v2855 = vunpack.c.h.b16 %v2808
          %v2856 = vunpack.c.l.b16 %v2809
          %v2857 = vunpack.c.h.b16 %v2809
          %v2858 = vunpack.c.l.b16 %v2810
          %v2859 = vunpack.c.h.b16 %v2810
          %v2860 = vunpack.c.l.b16 %v2811
          %v2861 = vunpack.c.h.b16 %v2811
          %v2862 = vunpack.c.l.b16 %v2812
          %v2863 = vunpack.c.h.b16 %v2812
          %v2864 = vpack.c.b16 %v2832, %v2832
          %v2865 = vpack.c.b16 %v2833, %v2833
          %v2866 = vpack.c.b16 %v2834, %v2834
          %v2867 = vpack.c.b16 %v2835, %v2835
          %v2868 = vpack.c.b16 %v2836, %v2836
          %v2869 = vpack.c.b16 %v2837, %v2837
          %v2870 = vpack.c.b16 %v2838, %v2838
          %v2871 = vpack.c.b16 %v2839, %v2839
          %v2872 = vpack.c.b16 %v2840, %v2840
          %v2873 = vpack.c.b16 %v2841, %v2841
          %v2874 = vpack.c.b16 %v2842, %v2842
          %v2875 = vpack.c.b16 %v2843, %v2843
          %v2876 = vpack.c.b16 %v2844, %v2844
          %v2877 = vpack.c.b16 %v2845, %v2845
          %v2878 = vpack.c.b16 %v2846, %v2846
          %v2879 = vpack.c.b16 %v2847, %v2847
          %v2880 = vpack.c.b16 %v2848, %v2848
          %v2881 = vpack.c.b16 %v2849, %v2849
          %v2882 = vpack.c.b16 %v2850, %v2850
          %v2883 = vpack.c.b16 %v2851, %v2851
          %v2884 = vpack.c.b16 %v2852, %v2852
          %v2885 = vpack.c.b16 %v2853, %v2853
          %v2886 = vpack.c.b16 %v2854, %v2854
          %v2887 = vpack.c.b16 %v2855, %v2855
          %v2888 = vpack.c.b16 %v2856, %v2856
          %v2889 = vpack.c.b16 %v2857, %v2857
          %v2890 = vpack.c.b16 %v2858, %v2858
          %v2891 = vpack.c.b16 %v2859, %v2859
          %v2892 = vpack.c.b16 %v2860, %v2860
          %v2893 = vpack.c.b16 %v2861, %v2861
          %v2894 = vpack.c.b16 %v2862, %v2862
          %v2895 = vpack.c.b16 %v2863, %v2863
          %s2928 = smul.addr %s633, 4
          %s2929 = scalar_lea.vmem %s2815, %s2928 [#allocation2]
          %2930 = vst [vmem:[%s2929] sm:$0xf] %v2864
          %2931 = vst [vmem:[%s2929 + $0x4] sm:$0xf] %v2865
          %2932 = vst [vmem:[%s2929 + $0x8] sm:$0xf] %v2866
          %2933 = vst [vmem:[%s2929 + $0xc] sm:$0xf] %v2867
          %2934 = vst [vmem:[%s2929 + $0x10] sm:$0xf] %v2868
          %2935 = vst [vmem:[%s2929 + $0x14] sm:$0xf] %v2869
          %2936 = vst [vmem:[%s2929 + $0x18] sm:$0xf] %v2870
          %2937 = vst [vmem:[%s2929 + $0x1c] sm:$0xf] %v2871
          %2938 = vst [vmem:[%s2929 + $0x20] sm:$0xf] %v2872
          %2939 = vst [vmem:[%s2929 + $0x24] sm:$0xf] %v2873
          %2940 = vst [vmem:[%s2929 + $0x28] sm:$0xf] %v2874
          %2941 = vst [vmem:[%s2929 + $0x2c] sm:$0xf] %v2875
          %2942 = vst [vmem:[%s2929 + $0x30] sm:$0xf] %v2876
          %2943 = vst [vmem:[%s2929 + $0x34] sm:$0xf] %v2877
          %2944 = vst [vmem:[%s2929 + $0x38] sm:$0xf] %v2878
          %2945 = vst [vmem:[%s2929 + $0x3c] sm:$0xf] %v2879
          %2946 = vst [vmem:[%s2929 + $0x40] sm:$0xf] %v2880
          %2947 = vst [vmem:[%s2929 + $0x44] sm:$0xf] %v2881
          %2948 = vst [vmem:[%s2929 + $0x48] sm:$0xf] %v2882
          %2949 = vst [vmem:[%s2929 + $0x4c] sm:$0xf] %v2883
          %2950 = vst [vmem:[%s2929 + $0x50] sm:$0xf] %v2884
          %2951 = vst [vmem:[%s2929 + $0x54] sm:$0xf] %v2885
          %2952 = vst [vmem:[%s2929 + $0x58] sm:$0xf] %v2886
          %2953 = vst [vmem:[%s2929 + $0x5c] sm:$0xf] %v2887
          %2954 = vst [vmem:[%s2929 + $0x60] sm:$0xf] %v2888
          %2955 = vst [vmem:[%s2929 + $0x64] sm:$0xf] %v2889
          %2956 = vst [vmem:[%s2929 + $0x68] sm:$0xf] %v2890
          %2957 = vst [vmem:[%s2929 + $0x6c] sm:$0xf] %v2891
          %2958 = vst [vmem:[%s2929 + $0x70] sm:$0xf] %v2892
          %2959 = vst [vmem:[%s2929 + $0x74] sm:$0xf] %v2893
          %2960 = vst [vmem:[%s2929 + $0x78] sm:$0xf] %v2894
          %2961 = vst [vmem:[%s2929 + $0x7c] sm:$0xf] %v2895
        $region104: #{tpu_custom_call.1} parent=71 // pred_fallthru
          _
        %p2962 = pnand %p2592, %p602
        %p2963 = pneg %p2962
        // Predicated region
        $region105: #{tpu_custom_call.1} parent=71 // pred_check
          _
        $region106: #{tpu_custom_call.1} parent=71 // pred_check_branch
          %2965 = sbr.rel (%p2962) target = $region108
        $region107: #{tpu_custom_call.1} parent=71 // pred_region
          %s2966 = scalar_lea.vmem [#allocation2], 136
          %v2967 = vld [vmem:[%s2966] sm:$0xf]
          %v2968 = vld [vmem:[%s2966 + $0x4] sm:$0xf]
          %v2969 = vld [vmem:[%s2966 + $0x8] sm:$0xf]
          %v2970 = vld [vmem:[%s2966 + $0xc] sm:$0xf]
          %v2971 = vld [vmem:[%s2966 + $0x10] sm:$0xf]
          %v2972 = vld [vmem:[%s2966 + $0x14] sm:$0xf]
          %v2973 = vld [vmem:[%s2966 + $0x18] sm:$0xf]
          %v2974 = vld [vmem:[%s2966 + $0x1c] sm:$0xf]
          %v2975 = vld [vmem:[%s2966 + $0x20] sm:$0xf]
          %v2976 = vld [vmem:[%s2966 + $0x24] sm:$0xf]
          %v2977 = vld [vmem:[%s2966 + $0x28] sm:$0xf]
          %v2978 = vld [vmem:[%s2966 + $0x2c] sm:$0xf]
          %v2979 = vld [vmem:[%s2966 + $0x30] sm:$0xf]
          %v2980 = vld [vmem:[%s2966 + $0x34] sm:$0xf]
          %v2981 = vld [vmem:[%s2966 + $0x38] sm:$0xf]
          %v2982 = vld [vmem:[%s2966 + $0x3c] sm:$0xf]
          %v2983 = vld [vmem:[%s2966 + $0x40] sm:$0xf]
          %v2984 = vld [vmem:[%s2966 + $0x44] sm:$0xf]
          %v2985 = vld [vmem:[%s2966 + $0x48] sm:$0xf]
          %v2986 = vld [vmem:[%s2966 + $0x4c] sm:$0xf]
          %v2987 = vld [vmem:[%s2966 + $0x50] sm:$0xf]
          %v2988 = vld [vmem:[%s2966 + $0x54] sm:$0xf]
          %v2989 = vld [vmem:[%s2966 + $0x58] sm:$0xf]
          %v2990 = vld [vmem:[%s2966 + $0x5c] sm:$0xf]
          %v2991 = vld [vmem:[%s2966 + $0x60] sm:$0xf]
          %v2992 = vld [vmem:[%s2966 + $0x64] sm:$0xf]
          %v2993 = vld [vmem:[%s2966 + $0x68] sm:$0xf]
          %v2994 = vld [vmem:[%s2966 + $0x6c] sm:$0xf]
          %v2995 = vld [vmem:[%s2966 + $0x70] sm:$0xf]
          %v2996 = vld [vmem:[%s2966 + $0x74] sm:$0xf]
          %v2997 = vld [vmem:[%s2966 + $0x78] sm:$0xf]
          %v2998 = vld [vmem:[%s2966 + $0x7c] sm:$0xf]
          %v2999 = vld [vmem:[%s2966 + $0x80] sm:$0xf]
          %v3000 = vld [vmem:[%s2966 + $0x84] sm:$0xf]
          %v3001 = vunpack.c.l.bf16 %v2967
          %v3002 = vunpack.c.l.bf16 %v2968
          %v3003 = vunpack.c.l.bf16 %v2969
          %v3004 = vunpack.c.l.bf16 %v2970
          %v3005 = vunpack.c.l.bf16 %v2971
          %v3006 = vunpack.c.l.bf16 %v2972
          %v3007 = vunpack.c.l.bf16 %v2973
          %v3008 = vunpack.c.l.bf16 %v2974
          %v3009 = vunpack.c.l.bf16 %v2975
          %v3010 = vunpack.c.l.bf16 %v2976
          %v3011 = vunpack.c.l.bf16 %v2977
          %v3012 = vunpack.c.l.bf16 %v2978
          %v3013 = vunpack.c.l.bf16 %v2979
          %v3014 = vunpack.c.l.bf16 %v2980
          %v3015 = vunpack.c.l.bf16 %v2981
          %v3016 = vunpack.c.l.bf16 %v2982
          %v3017 = vunpack.c.l.bf16 %v2983
          %v3018 = vunpack.c.l.bf16 %v2984
          %v3019 = vunpack.c.l.bf16 %v2985
          %v3020 = vunpack.c.l.bf16 %v2986
          %v3021 = vunpack.c.l.bf16 %v2987
          %v3022 = vunpack.c.l.bf16 %v2988
          %v3023 = vunpack.c.l.bf16 %v2989
          %v3024 = vunpack.c.l.bf16 %v2990
          %v3025 = vunpack.c.l.bf16 %v2991
          %v3026 = vunpack.c.l.bf16 %v2992
          %v3027 = vunpack.c.l.bf16 %v2993
          %v3028 = vunpack.c.l.bf16 %v2994
          %v3029 = vunpack.c.l.bf16 %v2995
          %v3030 = vunpack.c.l.bf16 %v2996
          %v3031 = vunpack.c.l.bf16 %v2997
          %v3032 = vunpack.c.l.bf16 %v2998
          %v3033 = vunpack.c.l.bf16 %v2999
          %v3034 = vunpack.c.l.bf16 %v3000
          %v3035 = vld [vmem:[%s9] sm:$0x3f]
          %v3037 = vcombine.high %v3035, %v3035
          %v3039 = vunpack.c.l.s4 1983009808
          %v3040 = vunpack.c.0.s8 %v3039
          %v3041 = vlaneseq
          %v3042 = vshrl.u32 %v3041, 7
          %v3043 = vsub.s32 %v3040, %v3042
          %v3044 = vrot.slane %v3035, %v3043
          %v3046 = vunpack.c.l.s4 1983009808
          %v3047 = vunpack.c.0.s8 %v3046
          %v3048 = vlaneseq
          %v3049 = vshrl.u32 %v3048, 7
          %v3050 = vsub.s32 %v3047, %v3049
          %v3051 = vrot.slane %v3037, %v3050
          %v3052 = vcombine.high %v3044, %v3044
          %v3055 = vsel %vm1081, %v3051, 0
          %3057 = vmatprep.subr.mxu0 0.0
          %3058 = vmatpush1.msra.mxu0 %v3016
          %3059 = vmatprep.subr.mxu0 0.0
          %3060 = vmatpush1.msra.mxu0 %v3015
          %3061 = vmatprep.subr.mxu0 0.0
          %3062 = vmatpush1.msra.mxu0 %v3014
          %3063 = vmatprep.subr.mxu0 0.0
          %3064 = vmatpush1.msra.mxu0 %v3013
          %3065 = vmatprep.subr.mxu0 0.0
          %3066 = vmatpush1.msra.mxu0 %v3012
          %3067 = vmatprep.subr.mxu0 0.0
          %3068 = vmatpush1.msra.mxu0 %v3011
          %3069 = vmatprep.subr.mxu0 0.0
          %3070 = vmatpush1.msra.mxu0 %v3010
          %3071 = vmatprep.subr.mxu0 0.0
          %3072 = vmatpush1.msra.mxu0 %v3009
          %3073 = vmatprep.subr.mxu0 0.0
          %3074 = vmatpush1.msra.mxu0 %v3008
          %3075 = vmatprep.subr.mxu0 0.0
          %3076 = vmatpush1.msra.mxu0 %v3007
          %3077 = vmatprep.subr.mxu0 0.0
          %3078 = vmatpush1.msra.mxu0 %v3006
          %3079 = vmatprep.subr.mxu0 0.0
          %3080 = vmatpush1.msra.mxu0 %v3005
          %3081 = vmatprep.subr.mxu0 0.0
          %3082 = vmatpush1.msra.mxu0 %v3004
          %3083 = vmatprep.subr.mxu0 0.0
          %3084 = vmatpush1.msra.mxu0 %v3003
          %3085 = vmatprep.subr.mxu0 0.0
          %3086 = vmatpush1.msra.mxu0 %v3002
          %3087 = vmatprep.subr.mxu0 0.0
          %3088 = vmatpush1.msra.mxu0 %v3001
          %3089 = vmatprep.subr.mxu0 0.0
          %3090 = vmatpush2.msra.mxu0 %v3032
          %3091 = vmatprep.subr.mxu0 0.0
          %3092 = vmatpush2.msra.mxu0 %v3031
          %3093 = vmatprep.subr.mxu0 0.0
          %3094 = vmatpush2.msra.mxu0 %v3030
          %3095 = vmatprep.subr.mxu0 0.0
          %3096 = vmatpush2.msra.mxu0 %v3029
          %3097 = vmatprep.subr.mxu0 0.0
          %3098 = vmatpush2.msra.mxu0 %v3028
          %3099 = vmatprep.subr.mxu0 0.0
          %3100 = vmatpush2.msra.mxu0 %v3027
          %3101 = vmatprep.subr.mxu0 0.0
          %3102 = vmatpush2.msra.mxu0 %v3026
          %3103 = vmatprep.subr.mxu0 0.0
          %3104 = vmatpush2.msra.mxu0 %v3025
          %3105 = vmatprep.subr.mxu0 0.0
          %3106 = vmatpush2.msra.mxu0 %v3024
          %3107 = vmatprep.subr.mxu0 0.0
          %3108 = vmatpush2.msra.mxu0 %v3023
          %3109 = vmatprep.subr.mxu0 0.0
          %3110 = vmatpush2.msra.mxu0 %v3022
          %3111 = vmatprep.subr.mxu0 0.0
          %3112 = vmatpush2.msra.mxu0 %v3021
          %3113 = vmatprep.subr.mxu0 0.0
          %3114 = vmatpush2.msra.mxu0 %v3020
          %3115 = vmatprep.subr.mxu0 0.0
          %3116 = vmatpush2.msra.mxu0 %v3019
          %3117 = vmatprep.subr.mxu0 0.0
          %3118 = vmatpush2.msra.mxu0 %v3018
          %3119 = vmatprep.subr.mxu0 0.0
          %3120 = vmatpush2.msra.mxu0 %v3017
          %3121 = vmatprep.mubr.f32.mxu0 %v3052
          %3122 = vmatmul.mubr.f32.gmra.mxu0 %v3044
          %v3123 = vpop.f32.mrf.mxu0
          %v3124 = vadd.f32 0.0, %v3123
          %v3125 = vpop.f32.mrf.mxu0
          %3126 = vdwg.mxu0
          %3127 = vmatprep.subr.mxu0 0.0
          %3128 = vmatpush1.msra.mxu0 0.0
          %3129 = vmatprep.subr.mxu0 0.0
          %3130 = vmatpush1.msra.mxu0 0.0
          %3131 = vmatprep.subr.mxu0 0.0
          %3132 = vmatpush1.msra.mxu0 0.0
          %3133 = vmatprep.subr.mxu0 0.0
          %3134 = vmatpush1.msra.mxu0 0.0
          %3135 = vmatprep.subr.mxu0 0.0
          %3136 = vmatpush1.msra.mxu0 0.0
          %3137 = vmatprep.subr.mxu0 0.0
          %3138 = vmatpush1.msra.mxu0 0.0
          %3139 = vmatprep.subr.mxu0 0.0
          %3140 = vmatpush1.msra.mxu0 0.0
          %3141 = vmatprep.subr.mxu0 0.0
          %3142 = vmatpush1.msra.mxu0 0.0
          %3143 = vmatprep.subr.mxu0 0.0
          %3144 = vmatpush1.msra.mxu0 0.0
          %3145 = vmatprep.subr.mxu0 0.0
          %3146 = vmatpush1.msra.mxu0 0.0
          %3147 = vmatprep.subr.mxu0 0.0
          %3148 = vmatpush1.msra.mxu0 0.0
          %3149 = vmatprep.subr.mxu0 0.0
          %3150 = vmatpush1.msra.mxu0 0.0
          %3151 = vmatprep.subr.mxu0 0.0
          %3152 = vmatpush1.msra.mxu0 0.0
          %3153 = vmatprep.subr.mxu0 0.0
          %3154 = vmatpush1.msra.mxu0 0.0
          %3155 = vmatprep.subr.mxu0 0.0
          %3156 = vmatpush1.msra.mxu0 %v3034
          %3157 = vmatprep.subr.mxu0 0.0
          %3158 = vmatpush1.msra.mxu0 %v3033
          %3159 = vmatprep.subr.mxu0 0.0
          %3160 = vmatpush2.msra.mxu0 0.0
          %3161 = vmatprep.subr.mxu0 0.0
          %3162 = vmatpush2.msra.mxu0 0.0
          %3163 = vmatprep.subr.mxu0 0.0
          %3164 = vmatpush2.msra.mxu0 0.0
          %3165 = vmatprep.subr.mxu0 0.0
          %3166 = vmatpush2.msra.mxu0 0.0
          %3167 = vmatprep.subr.mxu0 0.0
          %3168 = vmatpush2.msra.mxu0 0.0
          %3169 = vmatprep.subr.mxu0 0.0
          %3170 = vmatpush2.msra.mxu0 0.0
          %3171 = vmatprep.subr.mxu0 0.0
          %3172 = vmatpush2.msra.mxu0 0.0
          %3173 = vmatprep.subr.mxu0 0.0
          %3174 = vmatpush2.msra.mxu0 0.0
          %3175 = vmatprep.subr.mxu0 0.0
          %3176 = vmatpush2.msra.mxu0 0.0
          %3177 = vmatprep.subr.mxu0 0.0
          %3178 = vmatpush2.msra.mxu0 0.0
          %3179 = vmatprep.subr.mxu0 0.0
          %3180 = vmatpush2.msra.mxu0 0.0
          %3181 = vmatprep.subr.mxu0 0.0
          %3182 = vmatpush2.msra.mxu0 0.0
          %3183 = vmatprep.subr.mxu0 0.0
          %3184 = vmatpush2.msra.mxu0 0.0
          %3185 = vmatprep.subr.mxu0 0.0
          %3186 = vmatpush2.msra.mxu0 0.0
          %3187 = vmatprep.subr.mxu0 0.0
          %3188 = vmatpush2.msra.mxu0 0.0
          %3189 = vmatprep.subr.mxu0 0.0
          %3190 = vmatpush2.msra.mxu0 0.0
          %3191 = vmatprep.mubr.f32.mxu0 0.0
          %3192 = vmatmul.mubr.f32.gmra.mxu0 %v3055
          %v3193 = vpop.f32.mrf.mxu0
          %v3194 = vadd.f32 %v3124, %v3193
          %v3195 = vpop.f32.mrf.mxu0
          %3196 = vdwg.mxu0
          %v3197 = vld [vmem:[%s10] sm:$0xff]
          %v3198 = vld [vmem:[%s10 + $0x8] sm:$0xff]
          %v3199 = vld [vmem:[%s10 + $0x10] sm:$0xff]
          %v3200 = vld [vmem:[%s10 + $0x18] sm:$0xff]
          %v3201 = vld [vmem:[%s10 + $0x20] sm:$0xff]
          %v3202 = vld [vmem:[%s10 + $0x28] sm:$0xff]
          %v3203 = vld [vmem:[%s10 + $0x30] sm:$0xff]
          %v3204 = vld [vmem:[%s10 + $0x38] sm:$0xff]
          %v3205 = vld [vmem:[%s10 + $0x40] sm:$0xff]
          %v3206 = vld [vmem:[%s10 + $0x48] sm:$0xff]
          %v3207 = vld [vmem:[%s10 + $0x50] sm:$0xff]
          %v3208 = vld [vmem:[%s10 + $0x58] sm:$0xff]
          %v3209 = vld [vmem:[%s10 + $0x60] sm:$0xff]
          %v3210 = vld [vmem:[%s10 + $0x68] sm:$0xff]
          %v3211 = vld [vmem:[%s10 + $0x70] sm:$0xff]
          %v3212 = vld [vmem:[%s10 + $0x78] sm:$0xff]
          %v3213 = vld [vmem:[%s10 + $0x80] sm:$0xff]
          %v3214 = vld [vmem:[%s10 + $0x88] sm:$0xff]
          %v3215 = vld [vmem:[%s10 + $0x90] sm:$0xff]
          %v3216 = vld [vmem:[%s10 + $0x98] sm:$0xff]
          %v3217 = vld [vmem:[%s10 + $0xa0] sm:$0xff]
          %v3218 = vld [vmem:[%s10 + $0xa8] sm:$0xff]
          %v3219 = vld [vmem:[%s10 + $0xb0] sm:$0xff]
          %v3220 = vld [vmem:[%s10 + $0xb8] sm:$0xff]
          %v3221 = vld [vmem:[%s10 + $0xc0] sm:$0xff]
          %v3222 = vld [vmem:[%s10 + $0xc8] sm:$0xff]
          %v3223 = vld [vmem:[%s10 + $0xd0] sm:$0xff]
          %v3224 = vld [vmem:[%s10 + $0xd8] sm:$0xff]
          %v3225 = vld [vmem:[%s10 + $0xe0] sm:$0xff]
          %v3226 = vld [vmem:[%s10 + $0xe8] sm:$0xff]
          %v3227 = vld [vmem:[%s10 + $0xf0] sm:$0xff]
          %v3228 = vld [vmem:[%s10 + $0xf8] sm:$0xff]
          %v3229 = vld [vmem:[%s11] sm:$0x3]
          %v3231 = vlaneseq
          %v3232 = vshrl.u32 %v3231, 7
          %v3233 = vsub.s32 0, %v3232
          %v3234 = vrot.slane %v3229, %v3233
          %v3235 = vlaneseq
          %v3236 = vshrl.u32 %v3235, 7
          %v3237 = vsub.s32 1, %v3236
          %v3238 = vrot.slane %v3229, %v3237
          %3241 = vmatprep.subr.mxu0 %v3228
          %3242 = vmatpush1.msra.mxu0 %v3227
          %3243 = vmatprep.subr.mxu0 %v3226
          %3244 = vmatpush1.msra.mxu0 %v3225
          %3245 = vmatprep.subr.mxu0 %v3224
          %3246 = vmatpush1.msra.mxu0 %v3223
          %3247 = vmatprep.subr.mxu0 %v3222
          %3248 = vmatpush1.msra.mxu0 %v3221
          %3249 = vmatprep.subr.mxu0 %v3220
          %3250 = vmatpush1.msra.mxu0 %v3219
          %3251 = vmatprep.subr.mxu0 %v3218
          %3252 = vmatpush1.msra.mxu0 %v3217
          %3253 = vmatprep.subr.mxu0 %v3216
          %3254 = vmatpush1.msra.mxu0 %v3215
          %3255 = vmatprep.subr.mxu0 %v3214
          %3256 = vmatpush1.msra.mxu0 %v3213
          %3257 = vmatprep.subr.mxu0 %v3212
          %3258 = vmatpush1.msra.mxu0 %v3211
          %3259 = vmatprep.subr.mxu0 %v3210
          %3260 = vmatpush1.msra.mxu0 %v3209
          %3261 = vmatprep.subr.mxu0 %v3208
          %3262 = vmatpush1.msra.mxu0 %v3207
          %3263 = vmatprep.subr.mxu0 %v3206
          %3264 = vmatpush1.msra.mxu0 %v3205
          %3265 = vmatprep.subr.mxu0 %v3204
          %3266 = vmatpush1.msra.mxu0 %v3203
          %3267 = vmatprep.subr.mxu0 %v3202
          %3268 = vmatpush1.msra.mxu0 %v3201
          %3269 = vmatprep.subr.mxu0 %v3200
          %3270 = vmatpush1.msra.mxu0 %v3199
          %3271 = vmatprep.subr.mxu0 %v3198
          %3272 = vmatpush1.msra.mxu0 %v3197
          %3273 = vmatprep.subr.mxu0 0.0
          %3274 = vmatpush2.msra.mxu0 0.0
          %3275 = vmatprep.subr.mxu0 0.0
          %3276 = vmatpush2.msra.mxu0 0.0
          %3277 = vmatprep.subr.mxu0 0.0
          %3278 = vmatpush2.msra.mxu0 0.0
          %3279 = vmatprep.subr.mxu0 0.0
          %3280 = vmatpush2.msra.mxu0 0.0
          %3281 = vmatprep.subr.mxu0 0.0
          %3282 = vmatpush2.msra.mxu0 0.0
          %3283 = vmatprep.subr.mxu0 0.0
          %3284 = vmatpush2.msra.mxu0 0.0
          %3285 = vmatprep.subr.mxu0 0.0
          %3286 = vmatpush2.msra.mxu0 0.0
          %3287 = vmatprep.subr.mxu0 0.0
          %3288 = vmatpush2.msra.mxu0 0.0
          %3289 = vmatprep.subr.mxu0 0.0
          %3290 = vmatpush2.msra.mxu0 0.0
          %3291 = vmatprep.subr.mxu0 0.0
          %3292 = vmatpush2.msra.mxu0 0.0
          %3293 = vmatprep.subr.mxu0 0.0
          %3294 = vmatpush2.msra.mxu0 0.0
          %3295 = vmatprep.subr.mxu0 0.0
          %3296 = vmatpush2.msra.mxu0 0.0
          %3297 = vmatprep.subr.mxu0 0.0
          %3298 = vmatpush2.msra.mxu0 0.0
          %3299 = vmatprep.subr.mxu0 0.0
          %3300 = vmatpush2.msra.mxu0 0.0
          %3301 = vmatprep.subr.mxu0 0.0
          %3302 = vmatpush2.msra.mxu0 0.0
          %3303 = vmatprep.subr.mxu0 0.0
          %3304 = vmatpush2.msra.mxu0 0.0
          %3305 = vmatprep.mubr.f32.mxu0 0.0
          %3306 = vmatmul.mubr.f32.gmra.mxu0 %v3194
          %v3307 = vpop.f32.mrf.mxu0
          %v3308 = vadd.f32 %v3234, %v3307
          %v3309 = vpop.f32.mrf.mxu0
          %v3310 = vadd.f32 %v3238, %v3309
          %3311 = vdwg.mxu0
          %vm3312 = vcmp.ge.f32.partialorder %v3308, 0.0
          %vm3313 = vcmp.ge.f32.partialorder %v3310, 0.0
          %v3314 = vmul.f32 %v3308, 0.01
          %v3315 = vmul.f32 %v3310, 0.01
          %v3316 = vsel %vm3312, %v3308, %v3314
          %v3317 = vsel %vm3313, %v3310, %v3315
          %v3318 = vld [vmem:[#allocation9] sm:$0xff]
          %v3319 = vld [vmem:[#allocation9 + $0x8] sm:$0xff]
          %v3320 = vld [vmem:[#allocation9 + $0x10] sm:$0xff]
          %v3321 = vld [vmem:[#allocation9 + $0x18] sm:$0xff]
          %v3322 = vld [vmem:[#allocation9 + $0x20] sm:$0xff]
          %v3323 = vld [vmem:[#allocation9 + $0x28] sm:$0xff]
          %v3324 = vld [vmem:[#allocation9 + $0x30] sm:$0xff]
          %v3325 = vld [vmem:[#allocation9 + $0x38] sm:$0xff]
          %v3326 = vld [vmem:[#allocation9 + $0x40] sm:$0xff]
          %v3327 = vld [vmem:[#allocation9 + $0x48] sm:$0xff]
          %v3328 = vld [vmem:[#allocation9 + $0x50] sm:$0xff]
          %v3329 = vld [vmem:[#allocation9 + $0x58] sm:$0xff]
          %v3330 = vld [vmem:[#allocation9 + $0x60] sm:$0xff]
          %v3331 = vld [vmem:[#allocation9 + $0x68] sm:$0xff]
          %v3332 = vld [vmem:[#allocation9 + $0x70] sm:$0xff]
          %v3333 = vld [vmem:[#allocation9 + $0x78] sm:$0xff]
          %v3334 = vld [vmem:[#allocation9 + $0x80] sm:$0xff]
          %v3335 = vld [vmem:[#allocation9 + $0x88] sm:$0xff]
          %v3336 = vld [vmem:[#allocation9 + $0x90] sm:$0xff]
          %v3337 = vld [vmem:[#allocation9 + $0x98] sm:$0xff]
          %v3338 = vld [vmem:[#allocation9 + $0xa0] sm:$0xff]
          %v3339 = vld [vmem:[#allocation9 + $0xa8] sm:$0xff]
          %v3340 = vld [vmem:[#allocation9 + $0xb0] sm:$0xff]
          %v3341 = vld [vmem:[#allocation9 + $0xb8] sm:$0xff]
          %v3342 = vld [vmem:[#allocation9 + $0xc0] sm:$0xff]
          %v3343 = vld [vmem:[#allocation9 + $0xc8] sm:$0xff]
          %v3344 = vld [vmem:[#allocation9 + $0xd0] sm:$0xff]
          %v3345 = vld [vmem:[#allocation9 + $0xd8] sm:$0xff]
          %v3346 = vld [vmem:[#allocation9 + $0xe0] sm:$0xff]
          %v3347 = vld [vmem:[#allocation9 + $0xe8] sm:$0xff]
          %v3348 = vld [vmem:[#allocation9 + $0xf0] sm:$0xff]
          %v3349 = vld [vmem:[#allocation9 + $0xf8] sm:$0xff]
          %v3350 = vld [vmem:[%s13] sm:$0x1]
          %v3352 = vlaneseq
          %v3353 = vshrl.u32 %v3352, 7
          %v3354 = vsub.s32 0, %v3353
          %v3355 = vrot.slane %v3350, %v3354
          %3357 = vmatprep.subr.mxu0 0.0
          %3358 = vmatpush1.msra.mxu0 %v3333
          %3359 = vmatprep.subr.mxu0 0.0
          %3360 = vmatpush1.msra.mxu0 %v3332
          %3361 = vmatprep.subr.mxu0 0.0
          %3362 = vmatpush1.msra.mxu0 %v3331
          %3363 = vmatprep.subr.mxu0 0.0
          %3364 = vmatpush1.msra.mxu0 %v3330
          %3365 = vmatprep.subr.mxu0 0.0
          %3366 = vmatpush1.msra.mxu0 %v3329
          %3367 = vmatprep.subr.mxu0 0.0
          %3368 = vmatpush1.msra.mxu0 %v3328
          %3369 = vmatprep.subr.mxu0 0.0
          %3370 = vmatpush1.msra.mxu0 %v3327
          %3371 = vmatprep.subr.mxu0 0.0
          %3372 = vmatpush1.msra.mxu0 %v3326
          %3373 = vmatprep.subr.mxu0 0.0
          %3374 = vmatpush1.msra.mxu0 %v3325
          %3375 = vmatprep.subr.mxu0 0.0
          %3376 = vmatpush1.msra.mxu0 %v3324
          %3377 = vmatprep.subr.mxu0 0.0
          %3378 = vmatpush1.msra.mxu0 %v3323
          %3379 = vmatprep.subr.mxu0 0.0
          %3380 = vmatpush1.msra.mxu0 %v3322
          %3381 = vmatprep.subr.mxu0 0.0
          %3382 = vmatpush1.msra.mxu0 %v3321
          %3383 = vmatprep.subr.mxu0 0.0
          %3384 = vmatpush1.msra.mxu0 %v3320
          %3385 = vmatprep.subr.mxu0 0.0
          %3386 = vmatpush1.msra.mxu0 %v3319
          %3387 = vmatprep.subr.mxu0 0.0
          %3388 = vmatpush1.msra.mxu0 %v3318
          %3389 = vmatprep.subr.mxu0 0.0
          %3390 = vmatpush2.msra.mxu0 %v3349
          %3391 = vmatprep.subr.mxu0 0.0
          %3392 = vmatpush2.msra.mxu0 %v3348
          %3393 = vmatprep.subr.mxu0 0.0
          %3394 = vmatpush2.msra.mxu0 %v3347
          %3395 = vmatprep.subr.mxu0 0.0
          %3396 = vmatpush2.msra.mxu0 %v3346
          %3397 = vmatprep.subr.mxu0 0.0
          %3398 = vmatpush2.msra.mxu0 %v3345
          %3399 = vmatprep.subr.mxu0 0.0
          %3400 = vmatpush2.msra.mxu0 %v3344
          %3401 = vmatprep.subr.mxu0 0.0
          %3402 = vmatpush2.msra.mxu0 %v3343
          %3403 = vmatprep.subr.mxu0 0.0
          %3404 = vmatpush2.msra.mxu0 %v3342
          %3405 = vmatprep.subr.mxu0 0.0
          %3406 = vmatpush2.msra.mxu0 %v3341
          %3407 = vmatprep.subr.mxu0 0.0
          %3408 = vmatpush2.msra.mxu0 %v3340
          %3409 = vmatprep.subr.mxu0 0.0
          %3410 = vmatpush2.msra.mxu0 %v3339
          %3411 = vmatprep.subr.mxu0 0.0
          %3412 = vmatpush2.msra.mxu0 %v3338
          %3413 = vmatprep.subr.mxu0 0.0
          %3414 = vmatpush2.msra.mxu0 %v3337
          %3415 = vmatprep.subr.mxu0 0.0
          %3416 = vmatpush2.msra.mxu0 %v3336
          %3417 = vmatprep.subr.mxu0 0.0
          %3418 = vmatpush2.msra.mxu0 %v3335
          %3419 = vmatprep.subr.mxu0 0.0
          %3420 = vmatpush2.msra.mxu0 %v3334
          %3421 = vmatprep.mubr.f32.mxu0 %v3317
          %3422 = vmatmul.mubr.f32.gmra.mxu0 %v3316
          %v3423 = vpop.f32.mrf.mxu0
          %v3424 = vadd.f32 %v3355, %v3423
          %v3425 = vpop.f32.mrf.mxu0
          %3426 = vdwg.mxu0
          %3427 = vst [vmem:[#allocation10] sm:$0x3] %v3424
        $region108: #{tpu_custom_call.1} parent=71 // pred_fallthru
          _
        // Predicated region
        $region109: #{tpu_custom_call.1} parent=71 // pred_check
          %p3428 = pneg %p365
        $region110: #{tpu_custom_call.1} parent=71 // pred_check_branch
          %3430 = sbr.rel (%p3428) target = $region112
        $region111: #{tpu_custom_call.1} parent=71 // pred_region
          %s3432 = ssub.s32 32, 32
          %3433 = vsyncadd [#allocation6], %s3432
          %s3435 = sshll.u32 [#allocation10], 4
          %s3436 = int_to_ptr.vmem [resolvable:$true] %s3435
          %3438 = dma.vmem_to_hbm [thread:$0]  %s3436, 32, %s14, [#allocation6]
        $region112: #{tpu_custom_call.1} parent=71 // pred_fallthru
          _
        // Predicated region
        $region113: #{tpu_custom_call.1} parent=71 // pred_check
          %p3439 = pneg %p365
        $region114: #{tpu_custom_call.1} parent=71 // pred_check_branch
          %3441 = sbr.rel (%p3439) target = $region116
        $region115: #{tpu_custom_call.1} parent=71 // pred_region
          %3442 = dma.done [#allocation6], 32
        $region116: #{tpu_custom_call.1} parent=71 // pred_fallthru
          _
      $region72: #{tpu_custom_call.1} parent=5 // pred_fallthru
        _
      %p3443 = scmp.le.s32.totalorder 2, %s27
      // Predicated region
      $region117: #{tpu_custom_call.1} parent=5 // pred_check
        %p3444 = pneg %p3443
      $region118: #{tpu_custom_call.1} parent=5 // pred_check_branch
        %3446 = sbr.rel (%p3444) target = $region120
      $region119: #{tpu_custom_call.1} parent=5 // pred_region
        %s3447 = ssub.s32 %s27, 2
      $region120: #{tpu_custom_call.1} parent=5 // pred_fallthru
        _
    $region6: #{tpu_custom_call.1} parent=1 // loop_footer
      %s31 = sadd.s32 1, %s27
    $region7: #{tpu_custom_call.1} parent=1 // loop_footer_branch
      %26 = sbr.rel target = $region3
    $region8: #{tpu_custom_call.1} parent=1 // loop_exit
      _
    %3448 = vsyncpa [#allocation5], 1
    %s3449 = scalar_lea.sflag [#allocation5], 1
    %3450 = vsyncpa %s3449, 1
    %3451 = vsyncpa [#allocation8], 1
    %s3452 = scalar_lea.sflag [#allocation8], 1
    %3453 = vsyncpa %s3452, 1
    %3454 = vsyncpa [#allocation6], 1
    %s3455 = scalar_lea.sflag [#allocation6], 1
    %3456 = vsyncpa %s3455, 1
  %3457 = vsyncmov [#allocation3]
  %s3458 = vpop.sfrf %3457
  %p3459 = scmp.eq.s32.totalorder %s3458, 0
  %p3460 = pneg %p3459
  %3462 = shalt.err (%p3460)

</llo_original>
